<compile_context>
chip_gen: v7x
topology: tpu7x:2x2x1
jax: 0.10.0
libtpu: 0.0.40
codegen_flags: <defaults>
</compile_context>

<pallas_src>
import functools

import jax
import jax.numpy as jnp
from jax.experimental import pallas as pl
from jax.experimental.pallas import tpu as pltpu

IN_FEATURES = 64   # stand-in for base_model.fc.in_features
HEAD_PAD = 128     # pad the 10-wide head outputs to a full lane group


# ------------------------------------------------------------------ kernel

def _fused_kernel(h, w,
                  x_ref, cw_ref, cb_ref,
                  w1_ref, b1_ref,
                  wh1_ref, bh1_ref,
                  wh2_ref, bh2_ref,
                  w2_ref, b2_ref,
                  out1_ref, out2_ref):
    """One grid step == one batch element. Conv+ReLU+GAP+heads, all in VMEM."""
    hw = h * w
    f = cw_ref.shape[2]

    # ---- stand-in backbone: 3x3 conv (pad=1) -> ReLU -> global avg pool ----
    # x_ref block: (1, (h+2)*w + 2, Cin) bf16 = height-padded image, flattened
    # row-major, with one guard zero-row at each end.  For tap (kh, kw) the
    # rows needed for all H*W outputs are the contiguous slice starting at
    # kh*w + kw; width padding is handled by masking edge columns.
    w_pos = jax.lax.broadcasted_iota(jnp.int32, (hw, 1), 0) % w
    left_edge = w_pos != 0          # mask for kw == 0 taps
    right_edge = w_pos != w - 1     # mask for kw == 2 taps

    acc = jnp.zeros((hw, f), jnp.float32)
    for kh in range(3):
        for kw in range(3):
            start = kh * w + kw
            lhs = x_ref[0, start:start + hw, :]            # (hw, Cin) bf16
            if kw == 0:
                lhs = jnp.where(left_edge, lhs, jnp.zeros_like(lhs))
            elif kw == 2:
                lhs = jnp.where(right_edge, lhs, jnp.zeros_like(lhs))
            acc = acc + jnp.dot(lhs, cw_ref[kh * 3 + kw],
                                preferred_element_type=jnp.float32)
    y = jnp.maximum(acc + cb_ref[...], 0.0)                # f32 epilogue

    # Global average pool as a matmul with a 1/(h*w) row vector (MXU).
    ones_row = jnp.full((1, hw), 1.0 / hw, dtype=jnp.float32)
    feat = jnp.dot(ones_row, y, preferred_element_type=jnp.float32)   # (1, F)
    feat_bf = feat.astype(jnp.bfloat16)

    # ---- heads (feat never leaves VMEM) ------------------------------------
    out1 = (jnp.dot(feat_bf, w1_ref[...], preferred_element_type=jnp.float32)
            + b1_ref[...])
    hid = jnp.maximum(
        jnp.dot(feat_bf, wh1_ref[...], preferred_element_type=jnp.float32)
        + bh1_ref[...], 0.0)
    hid = jnp.maximum(
        jnp.dot(hid.astype(jnp.bfloat16), wh2_ref[...],
                preferred_element_type=jnp.float32) + bh2_ref[...], 0.0)
    out2 = (jnp.dot(hid.astype(jnp.bfloat16), w2_ref[...],
                    preferred_element_type=jnp.float32) + b2_ref[...])

    out1_ref[0] = out1                                     # (1, HEAD_PAD)
    out2_ref[0] = out2


# ------------------------------------------------------------------ params

def init_params(key, c_in=4, in_features=IN_FEATURES):
    ks = jax.random.split(key, 10)
    s = 0.05
    return {
        # stand-in backbone: 3x3 conv, tap-major weights (9, Cin, F)
        "conv_w": jax.random.normal(ks[0], (9, c_in, in_features), jnp.float32) * s,
        "conv_b": jnp.zeros((1, in_features), jnp.float32),
        # fc1: Linear(in_features, 10)  (stored as (in, out))
        "fc1_w": jax.random.normal(ks[1], (in_features, 10), jnp.float32) * s,
        "fc1_b": jax.random.normal(ks[2], (1, 10), jnp.float32) * s,
        # hidden1: Linear(in_features, 512)
        "h1_w": jax.random.normal(ks[3], (in_features, 512), jnp.float32) * s,
        "h1_b": jax.random.normal(ks[4], (1, 512), jnp.float32) * s,
        # hidden2: Linear(512, 256)
        "h2_w": jax.random.normal(ks[5], (512, 256), jnp.float32) * s,
        "h2_b": jax.random.normal(ks[6], (1, 256), jnp.float32) * s,
        # fc2: Linear(256, 10)
        "fc2_w": jax.random.normal(ks[7], (256, 10), jnp.float32) * s,
        "fc2_b": jax.random.normal(ks[8], (1, 10), jnp.float32) * s,
    }


# ------------------------------------------------------------------ forward

@jax.jit
def custom_resnet_forward(x_nchw, params):
    """Equivalent of CustomResNet.forward: returns (out1, out2), each (B, 10)."""
    b, c, h, w = x_nchw.shape
    f = params["conv_w"].shape[2]
    h1d = params["h1_w"].shape[1]
    h2d = params["h2_w"].shape[1]
    rows = (h + 2) * w + 2   # height-padded + flattened + 2 guard rows

    # NCHW -> NHWC, pad height, flatten spatial, add guard rows (glue only).
    x = jnp.transpose(x_nchw, (0, 2, 3, 1))
    x = jnp.pad(x, ((0, 0), (1, 1), (0, 0), (0, 0)))            # (B, H+2, W, C)
    x = x.reshape(b, (h + 2) * w, c)
    x = jnp.pad(x, ((0, 0), (1, 1), (0, 0))).astype(jnp.bfloat16)  # (B, rows, C)

    # Weights in bf16 (f32 MXU accumulation in-kernel), biases f32; pad the
    # 10-wide head weights/biases to 128 lanes for lane-dense stores.
    cw = params["conv_w"].astype(jnp.bfloat16)
    cb = params["conv_b"]
    w1 = jnp.pad(params["fc1_w"], ((0, 0), (0, HEAD_PAD - 10))).astype(jnp.bfloat16)
    b1 = jnp.pad(params["fc1_b"], ((0, 0), (0, HEAD_PAD - 10)))
    wh1 = params["h1_w"].astype(jnp.bfloat16)
    bh1 = params["h1_b"]
    wh2 = params["h2_w"].astype(jnp.bfloat16)
    bh2 = params["h2_b"]
    w2 = jnp.pad(params["fc2_w"], ((0, 0), (0, HEAD_PAD - 10))).astype(jnp.bfloat16)
    b2 = jnp.pad(params["fc2_b"], ((0, 0), (0, HEAD_PAD - 10)))

    def _const(shape):
        zero = (0,) * len(shape)
        return pl.BlockSpec(shape, lambda bb: zero)   # same block every step

    out1_p, out2_p = pl.pallas_call(
        functools.partial(_fused_kernel, h, w),
        out_shape=(jax.ShapeDtypeStruct((b, 1, HEAD_PAD), jnp.float32),
                   jax.ShapeDtypeStruct((b, 1, HEAD_PAD), jnp.float32)),
        grid=(b,),
        in_specs=[
            pl.BlockSpec((1, rows, c), lambda bb: (bb, 0, 0)),   # input image
            _const((9, c, f)), _const((1, f)),                   # conv
            _const((f, HEAD_PAD)), _const((1, HEAD_PAD)),        # fc1 (padded)
            _const((f, h1d)), _const((1, h1d)),                  # hidden1
            _const((h1d, h2d)), _const((1, h2d)),                # hidden2
            _const((h2d, HEAD_PAD)), _const((1, HEAD_PAD)),      # fc2 (padded)
        ],
        out_specs=(pl.BlockSpec((1, 1, HEAD_PAD), lambda bb: (bb, 0, 0)),
                   pl.BlockSpec((1, 1, HEAD_PAD), lambda bb: (bb, 0, 0))),
        compiler_params=pltpu.CompilerParams(
            dimension_semantics=("parallel",),
            vmem_limit_bytes=32 * 1024 * 1024),
    )(x, cw, cb, w1, b1, wh1, bh1, wh2, bh2, w2, b2)

    out1 = out1_p.reshape(b, HEAD_PAD)[:, :10]
    out2 = out2_p.reshape(b, HEAD_PAD)[:, :10]
    return out1, out2


# ------------------------------------------------------------------ reference

def reference_forward(x_nchw, params):
    """Pure-jnp f32 reference of the same stand-in backbone + heads."""
    b, c, h, w = x_nchw.shape
    f = params["conv_w"].shape[2]
    x = jnp.transpose(x_nchw, (0, 2, 3, 1)).astype(jnp.float32)
    xp = jnp.pad(x, ((0, 0), (1, 1), (1, 1), (0, 0)))
    patches = jnp.stack([xp[:, i:i + h, j:j + w, :]
                         for i in range(3) for j in range(3)], axis=3)
    patches = patches.reshape(b, h * w, 9 * c)
    y = jnp.maximum(patches @ params["conv_w"].reshape(9 * c, f)
                    + params["conv_b"], 0.0)
    feat = jnp.mean(y, axis=1)
    out1 = feat @ params["fc1_w"] + params["fc1_b"]
    hid = jnp.maximum(feat @ params["h1_w"] + params["h1_b"], 0.0)
    hid = jnp.maximum(hid @ params["h2_w"] + params["h2_b"], 0.0)
    out2 = hid @ params["fc2_w"] + params["fc2_b"]
    return out1, out2


# ------------------------------------------------------------------ main

if __name__ == "__main__":
    key = jax.random.PRNGKey(0)
    k_param, k_x = jax.random.split(key)

    params = init_params(k_param, c_in=4, in_features=IN_FEATURES)
    x = jax.random.normal(k_x, (2, 4, 16, 16), jnp.float32)   # NCHW like PyTorch

    out1, out2 = custom_resnet_forward(x, params)
    jax.block_until_ready((out1, out2))

    assert out1.shape == (2, 10) and out2.shape == (2, 10)
    assert out1.dtype == jnp.float32 and out2.dtype == jnp.float32

    r1, r2 = reference_forward(x, params)
    assert jnp.allclose(out1, r1, atol=2e-2, rtol=5e-2), "out1 mismatch vs reference"
    assert jnp.allclose(out2, r2, atol=2e-2, rtol=5e-2), "out2 mismatch vs reference"

    print("KERNEL_OK")
</pallas_src>

<mosaic_0001>
module attributes {stable_mosaic.version = 11 : i64} {
  func.func @_fused_kernel(%arg0: i32, %arg1: memref<1x290x4xbf16, #tpu.memory_space<vmem>>, %arg2: memref<9x4x64xbf16, #tpu.memory_space<vmem>>, %arg3: memref<1x64xf32, #tpu.memory_space<vmem>>, %arg4: memref<64x128xbf16, #tpu.memory_space<vmem>>, %arg5: memref<1x128xf32, #tpu.memory_space<vmem>>, %arg6: memref<64x512xbf16, #tpu.memory_space<vmem>>, %arg7: memref<1x512xf32, #tpu.memory_space<vmem>>, %arg8: memref<512x256xbf16, #tpu.memory_space<vmem>>, %arg9: memref<1x256xf32, #tpu.memory_space<vmem>>, %arg10: memref<256x128xbf16, #tpu.memory_space<vmem>>, %arg11: memref<1x128xf32, #tpu.memory_space<vmem>>, %arg12: memref<1x1x128xf32, #tpu.memory_space<vmem>>, %arg13: memref<1x1x128xf32, #tpu.memory_space<vmem>>) attributes {dimension_semantics = [#tpu.dimension_semantics<parallel>], iteration_bounds = array<i64: 2>, scalar_prefetch = 0 : i64, scratch_operands = 0 : i64, tpu.core_type = #tpu.core_type<tc>, window_params = [{transform_indices = @transform_0, window_bounds = array<i64: 1, 290, 4>}, {pipeline_mode = #tpu.pipeline_mode<synchronous>, transform_indices = @transform_1, window_bounds = array<i64: 9, 4, 64>}, {pipeline_mode = #tpu.pipeline_mode<synchronous>, transform_indices = @transform_2, window_bounds = array<i64: 1, 64>}, {pipeline_mode = #tpu.pipeline_mode<synchronous>, transform_indices = @transform_3, window_bounds = array<i64: 64, 128>}, {pipeline_mode = #tpu.pipeline_mode<synchronous>, transform_indices = @transform_4, window_bounds = array<i64: 1, 128>}, {pipeline_mode = #tpu.pipeline_mode<synchronous>, transform_indices = @transform_5, window_bounds = array<i64: 64, 512>}, {pipeline_mode = #tpu.pipeline_mode<synchronous>, transform_indices = @transform_6, window_bounds = array<i64: 1, 512>}, {pipeline_mode = #tpu.pipeline_mode<synchronous>, transform_indices = @transform_7, window_bounds = array<i64: 512, 256>}, {pipeline_mode = #tpu.pipeline_mode<synchronous>, transform_indices = @transform_8, window_bounds = array<i64: 1, 256>}, {pipeline_mode = #tpu.pipeline_mode<synchronous>, transform_indices = @transform_9, window_bounds = array<i64: 256, 128>}, {pipeline_mode = #tpu.pipeline_mode<synchronous>, transform_indices = @transform_10, window_bounds = array<i64: 1, 128>}, {transform_indices = @transform_11, window_bounds = array<i64: 1, 1, 128>}, {transform_indices = @transform_12, window_bounds = array<i64: 1, 1, 128>}]} {
    %0 = tpu.iota {dimensions = array<i32: 0>} : vector<256x1xi32>
    %c16_i32 = arith.constant 16 : i32
    %c0_i32 = arith.constant 0 : i32
    %1 = arith.cmpi eq, %c16_i32, %c0_i32 : i32
    %c1_i32 = arith.constant 1 : i32
    %2 = arith.select %1, %c1_i32, %c16_i32 : i32
    %3 = vector.broadcast %2 : i32 to vector<256x1xi32>
    %4 = arith.remsi %0, %3 : vector<256x1xi32>
    %c0_i32_0 = arith.constant 0 : i32
    %5 = vector.broadcast %c0_i32_0 : i32 to vector<256x1xi32>
    %6 = arith.cmpi ne, %4, %5 : vector<256x1xi32>
    %c0_i32_1 = arith.constant 0 : i32
    %7 = vector.broadcast %c0_i32_1 : i32 to vector<256x1xi32>
    %8 = arith.cmpi slt, %4, %7 : vector<256x1xi32>
    %c0_i32_2 = arith.constant 0 : i32
    %9 = arith.cmpi slt, %2, %c0_i32_2 : i32
    %10 = vector.broadcast %9 : i1 to vector<256x1xi1>
    %11 = vector.broadcast %10 : vector<256x1xi1> to vector<256x1xi1>
    %12 = arith.xori %8, %11 : vector<256x1xi1>
    %13 = arith.andi %12, %6 : vector<256x1xi1>
    %14 = vector.broadcast %2 : i32 to vector<256x1xi32>
    %15 = arith.addi %4, %14 : vector<256x1xi32>
    %16 = arith.select %13, %15, %4 : vector<256x1xi1>, vector<256x1xi32>
    %c0_i32_3 = arith.constant 0 : i32
    %17 = vector.broadcast %c0_i32_3 : i32 to vector<256x1xi32>
    %18 = arith.cmpi ne, %16, %17 : vector<256x1xi32>
    %c15_i32 = arith.constant 15 : i32
    %19 = vector.broadcast %c15_i32 : i32 to vector<256x1xi32>
    %20 = arith.cmpi ne, %16, %19 : vector<256x1xi32>
    %cst = arith.constant 0.000000e+00 : f32
    %21 = vector.broadcast %cst : f32 to vector<256x64xf32>
    %c0 = arith.constant 0 : index
    %c0_4 = arith.constant 0 : index
    %c0_5 = arith.constant 0 : index
    %22 = vector.load %arg1[%c0, %c0_4, %c0_5] : memref<1x290x4xbf16, #tpu.memory_space<vmem>>, vector<1x256x4xbf16>
    %23 = vector.shape_cast %22 : vector<1x256x4xbf16> to vector<256x4xbf16>
    %cst_6 = arith.constant 0.000000e+00 : bf16
    %24 = vector.broadcast %cst_6 : bf16 to vector<256x4xbf16>
    %25 = vector.shape_cast %18 : vector<256x1xi1> to vector<256x1xi1>
    %26 = vector.broadcast %25 : vector<256x1xi1> to vector<256x4xi1>
    %27 = arith.select %26, %23, %24 : vector<256x4xi1>, vector<256x4xbf16>
    %c0_7 = arith.constant 0 : index
    %c0_8 = arith.constant 0 : index
    %c0_9 = arith.constant 0 : index
    %28 = vector.load %arg2[%c0_7, %c0_8, %c0_9] : memref<9x4x64xbf16, #tpu.memory_space<vmem>>, vector<1x4x64xbf16>
    %29 = vector.shape_cast %28 : vector<1x4x64xbf16> to vector<4x64xbf16>
    %cst_10 = arith.constant dense<0.000000e+00> : vector<256x64xf32>
    %30 = tpu.matmul %27, %29, %cst_10 {dimension_numbers = #tpu.dot_dimension_numbers<[1], [0], [0], [1], [0, 0, 1, 1], [], []>} : vector<256x4xbf16>, vector<4x64xbf16>, vector<256x64xf32> -> vector<256x64xf32>
    %31 = arith.addf %21, %30 : vector<256x64xf32>
    %c0_11 = arith.constant 0 : index
    %c1 = arith.constant 1 : index
    %c0_12 = arith.constant 0 : index
    %32 = vector.load %arg1[%c0_11, %c1, %c0_12] : memref<1x290x4xbf16, #tpu.memory_space<vmem>>, vector<1x256x4xbf16>
    %33 = vector.shape_cast %32 : vector<1x256x4xbf16> to vector<256x4xbf16>
    %c1_13 = arith.constant 1 : index
    %c0_14 = arith.constant 0 : index
    %c0_15 = arith.constant 0 : index
    %34 = vector.load %arg2[%c1_13, %c0_14, %c0_15] : memref<9x4x64xbf16, #tpu.memory_space<vmem>>, vector<1x4x64xbf16>
    %35 = vector.shape_cast %34 : vector<1x4x64xbf16> to vector<4x64xbf16>
    %cst_16 = arith.constant dense<0.000000e+00> : vector<256x64xf32>
    %36 = tpu.matmul %33, %35, %cst_16 {dimension_numbers = #tpu.dot_dimension_numbers<[1], [0], [0], [1], [0, 0, 1, 1], [], []>} : vector<256x4xbf16>, vector<4x64xbf16>, vector<256x64xf32> -> vector<256x64xf32>
    %37 = arith.addf %31, %36 : vector<256x64xf32>
    %c0_17 = arith.constant 0 : index
    %c2 = arith.constant 2 : index
    %c0_18 = arith.constant 0 : index
    %38 = vector.load %arg1[%c0_17, %c2, %c0_18] : memref<1x290x4xbf16, #tpu.memory_space<vmem>>, vector<1x256x4xbf16>
    %39 = vector.shape_cast %38 : vector<1x256x4xbf16> to vector<256x4xbf16>
    %cst_19 = arith.constant 0.000000e+00 : bf16
    %40 = vector.broadcast %cst_19 : bf16 to vector<256x4xbf16>
    %41 = vector.shape_cast %20 : vector<256x1xi1> to vector<256x1xi1>
    %42 = vector.broadcast %41 : vector<256x1xi1> to vector<256x4xi1>
    %43 = arith.select %42, %39, %40 : vector<256x4xi1>, vector<256x4xbf16>
    %c2_20 = arith.constant 2 : index
    %c0_21 = arith.constant 0 : index
    %c0_22 = arith.constant 0 : index
    %44 = vector.load %arg2[%c2_20, %c0_21, %c0_22] : memref<9x4x64xbf16, #tpu.memory_space<vmem>>, vector<1x4x64xbf16>
    %45 = vector.shape_cast %44 : vector<1x4x64xbf16> to vector<4x64xbf16>
    %cst_23 = arith.constant dense<0.000000e+00> : vector<256x64xf32>
    %46 = tpu.matmul %43, %45, %cst_23 {dimension_numbers = #tpu.dot_dimension_numbers<[1], [0], [0], [1], [0, 0, 1, 1], [], []>} : vector<256x4xbf16>, vector<4x64xbf16>, vector<256x64xf32> -> vector<256x64xf32>
    %47 = arith.addf %37, %46 : vector<256x64xf32>
    %c0_24 = arith.constant 0 : index
    %c16 = arith.constant 16 : index
    %c0_25 = arith.constant 0 : index
    %48 = vector.load %arg1[%c0_24, %c16, %c0_25] : memref<1x290x4xbf16, #tpu.memory_space<vmem>>, vector<1x256x4xbf16>
    %49 = vector.shape_cast %48 : vector<1x256x4xbf16> to vector<256x4xbf16>
    %cst_26 = arith.constant 0.000000e+00 : bf16
    %50 = vector.broadcast %cst_26 : bf16 to vector<256x4xbf16>
    %51 = vector.shape_cast %18 : vector<256x1xi1> to vector<256x1xi1>
    %52 = vector.broadcast %51 : vector<256x1xi1> to vector<256x4xi1>
    %53 = arith.select %52, %49, %50 : vector<256x4xi1>, vector<256x4xbf16>
    %c3 = arith.constant 3 : index
    %c0_27 = arith.constant 0 : index
    %c0_28 = arith.constant 0 : index
    %54 = vector.load %arg2[%c3, %c0_27, %c0_28] : memref<9x4x64xbf16, #tpu.memory_space<vmem>>, vector<1x4x64xbf16>
    %55 = vector.shape_cast %54 : vector<1x4x64xbf16> to vector<4x64xbf16>
    %cst_29 = arith.constant dense<0.000000e+00> : vector<256x64xf32>
    %56 = tpu.matmul %53, %55, %cst_29 {dimension_numbers = #tpu.dot_dimension_numbers<[1], [0], [0], [1], [0, 0, 1, 1], [], []>} : vector<256x4xbf16>, vector<4x64xbf16>, vector<256x64xf32> -> vector<256x64xf32>
    %57 = arith.addf %47, %56 : vector<256x64xf32>
    %c0_30 = arith.constant 0 : index
    %c17 = arith.constant 17 : index
    %c0_31 = arith.constant 0 : index
    %58 = vector.load %arg1[%c0_30, %c17, %c0_31] : memref<1x290x4xbf16, #tpu.memory_space<vmem>>, vector<1x256x4xbf16>
    %59 = vector.shape_cast %58 : vector<1x256x4xbf16> to vector<256x4xbf16>
    %c4 = arith.constant 4 : index
    %c0_32 = arith.constant 0 : index
    %c0_33 = arith.constant 0 : index
    %60 = vector.load %arg2[%c4, %c0_32, %c0_33] : memref<9x4x64xbf16, #tpu.memory_space<vmem>>, vector<1x4x64xbf16>
    %61 = vector.shape_cast %60 : vector<1x4x64xbf16> to vector<4x64xbf16>
    %cst_34 = arith.constant dense<0.000000e+00> : vector<256x64xf32>
    %62 = tpu.matmul %59, %61, %cst_34 {dimension_numbers = #tpu.dot_dimension_numbers<[1], [0], [0], [1], [0, 0, 1, 1], [], []>} : vector<256x4xbf16>, vector<4x64xbf16>, vector<256x64xf32> -> vector<256x64xf32>
    %63 = arith.addf %57, %62 : vector<256x64xf32>
    %c0_35 = arith.constant 0 : index
    %c18 = arith.constant 18 : index
    %c0_36 = arith.constant 0 : index
    %64 = vector.load %arg1[%c0_35, %c18, %c0_36] : memref<1x290x4xbf16, #tpu.memory_space<vmem>>, vector<1x256x4xbf16>
    %65 = vector.shape_cast %64 : vector<1x256x4xbf16> to vector<256x4xbf16>
    %cst_37 = arith.constant 0.000000e+00 : bf16
    %66 = vector.broadcast %cst_37 : bf16 to vector<256x4xbf16>
    %67 = vector.shape_cast %20 : vector<256x1xi1> to vector<256x1xi1>
    %68 = vector.broadcast %67 : vector<256x1xi1> to vector<256x4xi1>
    %69 = arith.select %68, %65, %66 : vector<256x4xi1>, vector<256x4xbf16>
    %c5 = arith.constant 5 : index
    %c0_38 = arith.constant 0 : index
    %c0_39 = arith.constant 0 : index
    %70 = vector.load %arg2[%c5, %c0_38, %c0_39] : memref<9x4x64xbf16, #tpu.memory_space<vmem>>, vector<1x4x64xbf16>
    %71 = vector.shape_cast %70 : vector<1x4x64xbf16> to vector<4x64xbf16>
    %cst_40 = arith.constant dense<0.000000e+00> : vector<256x64xf32>
    %72 = tpu.matmul %69, %71, %cst_40 {dimension_numbers = #tpu.dot_dimension_numbers<[1], [0], [0], [1], [0, 0, 1, 1], [], []>} : vector<256x4xbf16>, vector<4x64xbf16>, vector<256x64xf32> -> vector<256x64xf32>
    %73 = arith.addf %63, %72 : vector<256x64xf32>
    %c0_41 = arith.constant 0 : index
    %c32 = arith.constant 32 : index
    %c0_42 = arith.constant 0 : index
    %74 = vector.load %arg1[%c0_41, %c32, %c0_42] : memref<1x290x4xbf16, #tpu.memory_space<vmem>>, vector<1x256x4xbf16>
    %75 = vector.shape_cast %74 : vector<1x256x4xbf16> to vector<256x4xbf16>
    %cst_43 = arith.constant 0.000000e+00 : bf16
    %76 = vector.broadcast %cst_43 : bf16 to vector<256x4xbf16>
    %77 = vector.shape_cast %18 : vector<256x1xi1> to vector<256x1xi1>
    %78 = vector.broadcast %77 : vector<256x1xi1> to vector<256x4xi1>
    %79 = arith.select %78, %75, %76 : vector<256x4xi1>, vector<256x4xbf16>
    %c6 = arith.constant 6 : index
    %c0_44 = arith.constant 0 : index
    %c0_45 = arith.constant 0 : index
    %80 = vector.load %arg2[%c6, %c0_44, %c0_45] : memref<9x4x64xbf16, #tpu.memory_space<vmem>>, vector<1x4x64xbf16>
    %81 = vector.shape_cast %80 : vector<1x4x64xbf16> to vector<4x64xbf16>
    %cst_46 = arith.constant dense<0.000000e+00> : vector<256x64xf32>
    %82 = tpu.matmul %79, %81, %cst_46 {dimension_numbers = #tpu.dot_dimension_numbers<[1], [0], [0], [1], [0, 0, 1, 1], [], []>} : vector<256x4xbf16>, vector<4x64xbf16>, vector<256x64xf32> -> vector<256x64xf32>
    %83 = arith.addf %73, %82 : vector<256x64xf32>
    %c0_47 = arith.constant 0 : index
    %c33 = arith.constant 33 : index
    %c0_48 = arith.constant 0 : index
    %84 = vector.load %arg1[%c0_47, %c33, %c0_48] : memref<1x290x4xbf16, #tpu.memory_space<vmem>>, vector<1x256x4xbf16>
    %85 = vector.shape_cast %84 : vector<1x256x4xbf16> to vector<256x4xbf16>
    %c7 = arith.constant 7 : index
    %c0_49 = arith.constant 0 : index
    %c0_50 = arith.constant 0 : index
    %86 = vector.load %arg2[%c7, %c0_49, %c0_50] : memref<9x4x64xbf16, #tpu.memory_space<vmem>>, vector<1x4x64xbf16>
    %87 = vector.shape_cast %86 : vector<1x4x64xbf16> to vector<4x64xbf16>
    %cst_51 = arith.constant dense<0.000000e+00> : vector<256x64xf32>
    %88 = tpu.matmul %85, %87, %cst_51 {dimension_numbers = #tpu.dot_dimension_numbers<[1], [0], [0], [1], [0, 0, 1, 1], [], []>} : vector<256x4xbf16>, vector<4x64xbf16>, vector<256x64xf32> -> vector<256x64xf32>
    %89 = arith.addf %83, %88 : vector<256x64xf32>
    %c0_52 = arith.constant 0 : index
    %c34 = arith.constant 34 : index
    %c0_53 = arith.constant 0 : index
    %90 = vector.load %arg1[%c0_52, %c34, %c0_53] : memref<1x290x4xbf16, #tpu.memory_space<vmem>>, vector<1x256x4xbf16>
    %91 = vector.shape_cast %90 : vector<1x256x4xbf16> to vector<256x4xbf16>
    %cst_54 = arith.constant 0.000000e+00 : bf16
    %92 = vector.broadcast %cst_54 : bf16 to vector<256x4xbf16>
    %93 = vector.shape_cast %20 : vector<256x1xi1> to vector<256x1xi1>
    %94 = vector.broadcast %93 : vector<256x1xi1> to vector<256x4xi1>
    %95 = arith.select %94, %91, %92 : vector<256x4xi1>, vector<256x4xbf16>
    %c8 = arith.constant 8 : index
    %c0_55 = arith.constant 0 : index
    %c0_56 = arith.constant 0 : index
    %96 = vector.load %arg2[%c8, %c0_55, %c0_56] : memref<9x4x64xbf16, #tpu.memory_space<vmem>>, vector<1x4x64xbf16>
    %97 = vector.shape_cast %96 : vector<1x4x64xbf16> to vector<4x64xbf16>
    %cst_57 = arith.constant dense<0.000000e+00> : vector<256x64xf32>
    %98 = tpu.matmul %95, %97, %cst_57 {dimension_numbers = #tpu.dot_dimension_numbers<[1], [0], [0], [1], [0, 0, 1, 1], [], []>} : vector<256x4xbf16>, vector<4x64xbf16>, vector<256x64xf32> -> vector<256x64xf32>
    %99 = arith.addf %89, %98 : vector<256x64xf32>
    %c0_58 = arith.constant 0 : index
    %c0_59 = arith.constant 0 : index
    %100 = vector.load %arg3[%c0_58, %c0_59] : memref<1x64xf32, #tpu.memory_space<vmem>>, vector<1x64xf32>
    %101 = vector.broadcast %100 : vector<1x64xf32> to vector<256x64xf32>
    %102 = arith.addf %99, %101 : vector<256x64xf32>
    %cst_60 = arith.constant 0.000000e+00 : f32
    %103 = vector.broadcast %cst_60 : f32 to vector<256x64xf32>
    %104 = arith.maximumf %102, %103 : vector<256x64xf32>
    %cst_61 = arith.constant 3.906250e-03 : f32
    %105 = vector.broadcast %cst_61 : f32 to vector<1x256xf32>
    %cst_62 = arith.constant dense<0.000000e+00> : vector<1x64xf32>
    %106 = tpu.matmul %105, %104, %cst_62 {dimension_numbers = #tpu.dot_dimension_numbers<[1], [0], [0], [1], [0, 0, 1, 1], [], []>} : vector<1x256xf32>, vector<256x64xf32>, vector<1x64xf32> -> vector<1x64xf32>
    %107 = arith.truncf %106 : vector<1x64xf32> to vector<1x64xbf16>
    %c0_63 = arith.constant 0 : index
    %c0_64 = arith.constant 0 : index
    %108 = vector.load %arg4[%c0_63, %c0_64] : memref<64x128xbf16, #tpu.memory_space<vmem>>, vector<64x128xbf16>
    %cst_65 = arith.constant dense<0.000000e+00> : vector<1x128xf32>
    %109 = tpu.matmul %107, %108, %cst_65 {dimension_numbers = #tpu.dot_dimension_numbers<[1], [0], [0], [1], [0, 0, 1, 1], [], []>} : vector<1x64xbf16>, vector<64x128xbf16>, vector<1x128xf32> -> vector<1x128xf32>
    %c0_66 = arith.constant 0 : index
    %c0_67 = arith.constant 0 : index
    %110 = vector.load %arg5[%c0_66, %c0_67] : memref<1x128xf32, #tpu.memory_space<vmem>>, vector<1x128xf32>
    %111 = arith.addf %109, %110 : vector<1x128xf32>
    %c0_68 = arith.constant 0 : index
    %c0_69 = arith.constant 0 : index
    %112 = vector.load %arg6[%c0_68, %c0_69] : memref<64x512xbf16, #tpu.memory_space<vmem>>, vector<64x512xbf16>
    %cst_70 = arith.constant dense<0.000000e+00> : vector<1x512xf32>
    %113 = tpu.matmul %107, %112, %cst_70 {dimension_numbers = #tpu.dot_dimension_numbers<[1], [0], [0], [1], [0, 0, 1, 1], [], []>} : vector<1x64xbf16>, vector<64x512xbf16>, vector<1x512xf32> -> vector<1x512xf32>
    %c0_71 = arith.constant 0 : index
    %c0_72 = arith.constant 0 : index
    %114 = vector.load %arg7[%c0_71, %c0_72] : memref<1x512xf32, #tpu.memory_space<vmem>>, vector<1x512xf32>
    %115 = arith.addf %113, %114 : vector<1x512xf32>
    %cst_73 = arith.constant 0.000000e+00 : f32
    %116 = vector.broadcast %cst_73 : f32 to vector<1x512xf32>
    %117 = arith.maximumf %115, %116 : vector<1x512xf32>
    %118 = arith.truncf %117 : vector<1x512xf32> to vector<1x512xbf16>
    %c0_74 = arith.constant 0 : index
    %c0_75 = arith.constant 0 : index
    %119 = vector.load %arg8[%c0_74, %c0_75] : memref<512x256xbf16, #tpu.memory_space<vmem>>, vector<512x256xbf16>
    %cst_76 = arith.constant dense<0.000000e+00> : vector<1x256xf32>
    %120 = tpu.matmul %118, %119, %cst_76 {dimension_numbers = #tpu.dot_dimension_numbers<[1], [0], [0], [1], [0, 0, 1, 1], [], []>} : vector<1x512xbf16>, vector<512x256xbf16>, vector<1x256xf32> -> vector<1x256xf32>
    %c0_77 = arith.constant 0 : index
    %c0_78 = arith.constant 0 : index
    %121 = vector.load %arg9[%c0_77, %c0_78] : memref<1x256xf32, #tpu.memory_space<vmem>>, vector<1x256xf32>
    %122 = arith.addf %120, %121 : vector<1x256xf32>
    %cst_79 = arith.constant 0.000000e+00 : f32
    %123 = vector.broadcast %cst_79 : f32 to vector<1x256xf32>
    %124 = arith.maximumf %122, %123 : vector<1x256xf32>
    %125 = arith.truncf %124 : vector<1x256xf32> to vector<1x256xbf16>
    %c0_80 = arith.constant 0 : index
    %c0_81 = arith.constant 0 : index
    %126 = vector.load %arg10[%c0_80, %c0_81] : memref<256x128xbf16, #tpu.memory_space<vmem>>, vector<256x128xbf16>
    %cst_82 = arith.constant dense<0.000000e+00> : vector<1x128xf32>
    %127 = tpu.matmul %125, %126, %cst_82 {dimension_numbers = #tpu.dot_dimension_numbers<[1], [0], [0], [1], [0, 0, 1, 1], [], []>} : vector<1x256xbf16>, vector<256x128xbf16>, vector<1x128xf32> -> vector<1x128xf32>
    %c0_83 = arith.constant 0 : index
    %c0_84 = arith.constant 0 : index
    %128 = vector.load %arg11[%c0_83, %c0_84] : memref<1x128xf32, #tpu.memory_space<vmem>>, vector<1x128xf32>
    %129 = arith.addf %127, %128 : vector<1x128xf32>
    %c0_85 = arith.constant 0 : index
    %c0_86 = arith.constant 0 : index
    %c0_87 = arith.constant 0 : index
    %130 = vector.load %arg12[%c0_85, %c0_86, %c0_87] : memref<1x1x128xf32, #tpu.memory_space<vmem>>, vector<1x1x128xf32>
    %131 = vector.shape_cast %130 : vector<1x1x128xf32> to vector<1x128xf32>
    %132 = vector.shape_cast %111 : vector<1x128xf32> to vector<1x1x128xf32>
    tpu.vector_store %arg12[%c0_85, %c0_86, %c0_87], %132 {strides = array<i32>} : memref<1x1x128xf32, #tpu.memory_space<vmem>>, vector<1x1x128xf32>,
    %c0_88 = arith.constant 0 : index
    %c0_89 = arith.constant 0 : index
    %c0_90 = arith.constant 0 : index
    %133 = vector.load %arg13[%c0_88, %c0_89, %c0_90] : memref<1x1x128xf32, #tpu.memory_space<vmem>>, vector<1x1x128xf32>
    %134 = vector.shape_cast %133 : vector<1x1x128xf32> to vector<1x128xf32>
    %135 = vector.shape_cast %129 : vector<1x128xf32> to vector<1x1x128xf32>
    tpu.vector_store %arg13[%c0_88, %c0_89, %c0_90], %135 {strides = array<i32>} : memref<1x1x128xf32, #tpu.memory_space<vmem>>, vector<1x1x128xf32>,
    return
  }
  func.func @transform_0(%arg0: i32) -> (i32, i32, i32) {
    %c0_i32 = arith.constant 0 : i32
    %c0_i32_0 = arith.constant 0 : i32
    %c0_i32_1 = arith.constant 0 : i32
    return %arg0, %c0_i32, %c0_i32_0 : i32, i32, i32
  }
  func.func @transform_1(%arg0: i32) -> (i32, i32, i32) {
    %c0_i32 = arith.constant 0 : i32
    %c0_i32_0 = arith.constant 0 : i32
    %c0_i32_1 = arith.constant 0 : i32
    %c0_i32_2 = arith.constant 0 : i32
    return %c0_i32, %c0_i32_0, %c0_i32_1 : i32, i32, i32
  }
  func.func @transform_2(%arg0: i32) -> (i32, i32) {
    %c0_i32 = arith.constant 0 : i32
    %c0_i32_0 = arith.constant 0 : i32
    %c0_i32_1 = arith.constant 0 : i32
    return %c0_i32, %c0_i32_0 : i32, i32
  }
  func.func @transform_3(%arg0: i32) -> (i32, i32) {
    %c0_i32 = arith.constant 0 : i32
    %c0_i32_0 = arith.constant 0 : i32
    %c0_i32_1 = arith.constant 0 : i32
    return %c0_i32, %c0_i32_0 : i32, i32
  }
  func.func @transform_4(%arg0: i32) -> (i32, i32) {
    %c0_i32 = arith.constant 0 : i32
    %c0_i32_0 = arith.constant 0 : i32
    %c0_i32_1 = arith.constant 0 : i32
    return %c0_i32, %c0_i32_0 : i32, i32
  }
  func.func @transform_5(%arg0: i32) -> (i32, i32) {
    %c0_i32 = arith.constant 0 : i32
    %c0_i32_0 = arith.constant 0 : i32
    %c0_i32_1 = arith.constant 0 : i32
    return %c0_i32, %c0_i32_0 : i32, i32
  }
  func.func @transform_6(%arg0: i32) -> (i32, i32) {
    %c0_i32 = arith.constant 0 : i32
    %c0_i32_0 = arith.constant 0 : i32
    %c0_i32_1 = arith.constant 0 : i32
    return %c0_i32, %c0_i32_0 : i32, i32
  }
  func.func @transform_7(%arg0: i32) -> (i32, i32) {
    %c0_i32 = arith.constant 0 : i32
    %c0_i32_0 = arith.constant 0 : i32
    %c0_i32_1 = arith.constant 0 : i32
    return %c0_i32, %c0_i32_0 : i32, i32
  }
  func.func @transform_8(%arg0: i32) -> (i32, i32) {
    %c0_i32 = arith.constant 0 : i32
    %c0_i32_0 = arith.constant 0 : i32
    %c0_i32_1 = arith.constant 0 : i32
    return %c0_i32, %c0_i32_0 : i32, i32
  }
  func.func @transform_9(%arg0: i32) -> (i32, i32) {
    %c0_i32 = arith.constant 0 : i32
    %c0_i32_0 = arith.constant 0 : i32
    %c0_i32_1 = arith.constant 0 : i32
    return %c0_i32, %c0_i32_0 : i32, i32
  }
  func.func @transform_10(%arg0: i32) -> (i32, i32) {
    %c0_i32 = arith.constant 0 : i32
    %c0_i32_0 = arith.constant 0 : i32
    %c0_i32_1 = arith.constant 0 : i32
    return %c0_i32, %c0_i32_0 : i32, i32
  }
  func.func @transform_11(%arg0: i32) -> (i32, i32, i32) {
    %c0_i32 = arith.constant 0 : i32
    %c0_i32_0 = arith.constant 0 : i32
    %c0_i32_1 = arith.constant 0 : i32
    return %arg0, %c0_i32, %c0_i32_0 : i32, i32, i32
  }
  func.func @transform_12(%arg0: i32) -> (i32, i32, i32) {
    %c0_i32 = arith.constant 0 : i32
    %c0_i32_0 = arith.constant 0 : i32
    %c0_i32_1 = arith.constant 0 : i32
    return %arg0, %c0_i32, %c0_i32_0 : i32, i32, i32
  }
}

</mosaic_0001>

<llo_original>
// kernel: custom_resnet_forward.1
$region0: #{custom_resnet_forward.1}
  #allocation0 [shape = 'u32[]', space=smem, size = 0x4, offset = 0x4, fixed_abs, tag = 'smem constant byte address 0x4 - core index']
  #allocation1 [shape = 'u32[144,128]{1,0:T(1,128)}', space=vmem, size = 0x12000, scoped, tag = 'internal scratch']
  %s0 = inlined_call_operand.vmem [shape: bf16[2,290,4], index: 0, kind: input, shape index: {}]
  %s1 = inlined_call_operand.vmem [shape: bf16[9,4,64], index: 1, kind: input, shape index: {}]
  %s2 = inlined_call_operand.vmem [shape: f32[1,64], index: 2, kind: input, shape index: {}]
  %s3 = inlined_call_operand.vmem [shape: bf16[64,128], index: 3, kind: input, shape index: {}]
  %s4 = inlined_call_operand.vmem [shape: f32[1,128], index: 4, kind: input, shape index: {}]
  %s5 = inlined_call_operand.vmem [shape: bf16[64,512], index: 5, kind: input, shape index: {}]
  %s6 = inlined_call_operand.vmem [shape: f32[1,512], index: 6, kind: input, shape index: {}]
  %s7 = inlined_call_operand.vmem [shape: bf16[512,256], index: 7, kind: input, shape index: {}]
  %s8 = inlined_call_operand.vmem [shape: f32[1,256], index: 8, kind: input, shape index: {}]
  %s9 = inlined_call_operand.vmem [shape: bf16[256,128], index: 9, kind: input, shape index: {}]
  %s10 = inlined_call_operand.vmem [shape: f32[1,128], index: 10, kind: input, shape index: {}]
  %s11 = inlined_call_operand.hbm [shape: f32[2,1,128], index: 11, kind: output, shape index: {0}]
  %s12 = inlined_call_operand.hbm [shape: f32[2,1,128], index: 12, kind: output, shape index: {1}]
  %13 = xla_tuple %s11, %s12
  %s14 = sld [smem:[#allocation0]]
  $region85: #{custom_resnet_forward.1} parent=0
    _
  %s16 = ssub.s32 1, %s14
  %s17 = scalar_select 0, %s16, %s14
  $region1: #{custom_resnet_forward.1} parent=0
    #allocation2 [shape = 'u8[1024]{0}', space=vmem, size = 0x400, scoped, tag = 'output window, operand 0']
    #allocation3 [shape = 's32[2]{0}', space=sflag, size = 0x8, scoped, tag = 'scoped memory for custom_resnet_forward.1']
    #allocation4 [shape = 'u8[1024]{0}', space=vmem, size = 0x400, scoped, tag = 'output window, operand 1']
    #allocation5 [shape = 's32[2]{0}', space=sflag, size = 0x8, scoped, tag = 'scoped memory for custom_resnet_forward.1']
    %18 = vsyncpa [#allocation3], 0
    %s19 = scalar_lea.sflag [#allocation3], 1
    %20 = vsyncpa %s19, 0
    %21 = vsyncpa [#allocation5], 0
    %s22 = scalar_lea.sflag [#allocation5], 1
    %23 = vsyncpa %s22, 0
    loop: start=0, step=1, limit=4
    $region2: #{custom_resnet_forward.1} parent=1 // loop_pre_header
      _
    $region3: #{custom_resnet_forward.1} parent=1 // loop_header
      %s25 = sphi 0, %s29
      %p26 = scmp.ge.s32.totalorder %s25, 4
      %s35 = sphi 0, %s37
      %s38 = sphi 0, %s35
      %s39 = sphi 0, %s38
      %s55 = sphi 0, %s39
      %s59 = sphi 0, %s59
      %s61 = sphi 0, %s59
      %s62 = sphi 0, %s61
      %s76 = sphi 0, %s62
      %s80 = sphi 0, %s80
      %s82 = sphi 0, %s80
      %s83 = sphi 0, %s82
      %s97 = sphi 0, %s83
      %s101 = sphi 0, %s101
      %s103 = sphi 0, %s101
      %s104 = sphi 0, %s103
      %s118 = sphi 0, %s104
      %s122 = sphi 0, %s122
      %s124 = sphi 0, %s122
      %s125 = sphi 0, %s124
      %s139 = sphi 0, %s125
      %s143 = sphi 0, %s143
      %s145 = sphi 0, %s143
      %s146 = sphi 0, %s145
      %s160 = sphi 0, %s146
      %s164 = sphi 0, %s164
      %s166 = sphi 0, %s164
      %s167 = sphi 0, %s166
      %s181 = sphi 0, %s167
      %s185 = sphi 0, %s185
      %s187 = sphi 0, %s185
      %s188 = sphi 0, %s187
      %s202 = sphi 0, %s188
      %s206 = sphi 0, %s206
      %s208 = sphi 0, %s206
      %s209 = sphi 0, %s208
      %s223 = sphi 0, %s209
      %s227 = sphi 0, %s227
      %s229 = sphi 0, %s227
      %s230 = sphi 0, %s229
      %s244 = sphi 0, %s230
      %s248 = sphi 0, %s248
      %s250 = sphi 0, %s248
      %s251 = sphi 0, %s250
      %s265 = sphi 0, %s251
      %s271 = sphi 0, %s273
      %s274 = sphi 0, %s271
      %s275 = sphi 0, %s274
      %s291 = sphi 0, %s275
      %s297 = sphi 0, %s299
      %s300 = sphi 0, %s297
      %s301 = sphi 0, %s300
      %s317 = sphi 0, %s301
    $region4: #{custom_resnet_forward.1} parent=1 // loop_header_branch
      %28 = sbr.rel (%p26) target = $region8
    $region5: #{custom_resnet_forward.1} parent=1 // loop_body
      %s30 = ssub.s32 %s25, 1
      %s31 = ssub.s32 %s25, 2
      %s32 = sadd.s32 %s25, 1
      %s33 = ssub.s32 %s25, %s32
      %p34 = scmp.eq.s32.totalorder %s33, 0
      %s36 = sadd.s32 %s35, 1
      %s37 = scalar_select %p34, %s35, %s36
      %p40 = pneg %p34
      %p41 = scmp.eq.s32.totalorder %s25, 1
      %p42 = por %p40, %p41
      %p43 = scmp.ne.s32.totalorder %s35, %s38
      %p44 = scmp.eq.s32.totalorder %s25, 0
      %p45 = por %p43, %p44
      %p46 = scmp.ne.s32.totalorder %s35, %s38
      %p47 = scmp.eq.s32.totalorder %s30, 1
      %p48 = por %p46, %p47
      %p49 = scmp.ne.s32.totalorder %s38, %s39
      %p50 = scmp.eq.s32.totalorder %s30, 0
      %p51 = por %p49, %p50
      %p52 = scmp.ne.s32.totalorder %s38, %s39
      %p53 = scmp.eq.s32.totalorder %s31, 1
      %p54 = por %p52, %p53
      %p56 = scmp.ne.s32.totalorder %s39, %s55
      %p57 = scmp.eq.s32.totalorder %s31, 0
      %p58 = por %p56, %p57
      %s60 = sadd.s32 %s59, 1
      %p63 = scmp.eq.s32.totalorder %s25, 1
      %p64 = scmp.ne.s32.totalorder %s59, %s61
      %p65 = scmp.eq.s32.totalorder %s25, 0
      %p66 = por %p64, %p65
      %p67 = scmp.ne.s32.totalorder %s59, %s61
      %p68 = scmp.eq.s32.totalorder %s30, 1
      %p69 = por %p67, %p68
      %p70 = scmp.ne.s32.totalorder %s61, %s62
      %p71 = scmp.eq.s32.totalorder %s30, 0
      %p72 = por %p70, %p71
      %p73 = scmp.ne.s32.totalorder %s61, %s62
      %p74 = scmp.eq.s32.totalorder %s31, 1
      %p75 = por %p73, %p74
      %p77 = scmp.ne.s32.totalorder %s62, %s76
      %p78 = scmp.eq.s32.totalorder %s31, 0
      %p79 = por %p77, %p78
      %s81 = sadd.s32 %s80, 1
      %p84 = scmp.eq.s32.totalorder %s25, 1
      %p85 = scmp.ne.s32.totalorder %s80, %s82
      %p86 = scmp.eq.s32.totalorder %s25, 0
      %p87 = por %p85, %p86
      %p88 = scmp.ne.s32.totalorder %s80, %s82
      %p89 = scmp.eq.s32.totalorder %s30, 1
      %p90 = por %p88, %p89
      %p91 = scmp.ne.s32.totalorder %s82, %s83
      %p92 = scmp.eq.s32.totalorder %s30, 0
      %p93 = por %p91, %p92
      %p94 = scmp.ne.s32.totalorder %s82, %s83
      %p95 = scmp.eq.s32.totalorder %s31, 1
      %p96 = por %p94, %p95
      %p98 = scmp.ne.s32.totalorder %s83, %s97
      %p99 = scmp.eq.s32.totalorder %s31, 0
      %p100 = por %p98, %p99
      %s102 = sadd.s32 %s101, 1
      %p105 = scmp.eq.s32.totalorder %s25, 1
      %p106 = scmp.ne.s32.totalorder %s101, %s103
      %p107 = scmp.eq.s32.totalorder %s25, 0
      %p108 = por %p106, %p107
      %p109 = scmp.ne.s32.totalorder %s101, %s103
      %p110 = scmp.eq.s32.totalorder %s30, 1
      %p111 = por %p109, %p110
      %p112 = scmp.ne.s32.totalorder %s103, %s104
      %p113 = scmp.eq.s32.totalorder %s30, 0
      %p114 = por %p112, %p113
      %p115 = scmp.ne.s32.totalorder %s103, %s104
      %p116 = scmp.eq.s32.totalorder %s31, 1
      %p117 = por %p115, %p116
      %p119 = scmp.ne.s32.totalorder %s104, %s118
      %p120 = scmp.eq.s32.totalorder %s31, 0
      %p121 = por %p119, %p120
      %s123 = sadd.s32 %s122, 1
      %p126 = scmp.eq.s32.totalorder %s25, 1
      %p127 = scmp.ne.s32.totalorder %s122, %s124
      %p128 = scmp.eq.s32.totalorder %s25, 0
      %p129 = por %p127, %p128
      %p130 = scmp.ne.s32.totalorder %s122, %s124
      %p131 = scmp.eq.s32.totalorder %s30, 1
      %p132 = por %p130, %p131
      %p133 = scmp.ne.s32.totalorder %s124, %s125
      %p134 = scmp.eq.s32.totalorder %s30, 0
      %p135 = por %p133, %p134
      %p136 = scmp.ne.s32.totalorder %s124, %s125
      %p137 = scmp.eq.s32.totalorder %s31, 1
      %p138 = por %p136, %p137
      %p140 = scmp.ne.s32.totalorder %s125, %s139
      %p141 = scmp.eq.s32.totalorder %s31, 0
      %p142 = por %p140, %p141
      %s144 = sadd.s32 %s143, 1
      %p147 = scmp.eq.s32.totalorder %s25, 1
      %p148 = scmp.ne.s32.totalorder %s143, %s145
      %p149 = scmp.eq.s32.totalorder %s25, 0
      %p150 = por %p148, %p149
      %p151 = scmp.ne.s32.totalorder %s143, %s145
      %p152 = scmp.eq.s32.totalorder %s30, 1
      %p153 = por %p151, %p152
      %p154 = scmp.ne.s32.totalorder %s145, %s146
      %p155 = scmp.eq.s32.totalorder %s30, 0
      %p156 = por %p154, %p155
      %p157 = scmp.ne.s32.totalorder %s145, %s146
      %p158 = scmp.eq.s32.totalorder %s31, 1
      %p159 = por %p157, %p158
      %p161 = scmp.ne.s32.totalorder %s146, %s160
      %p162 = scmp.eq.s32.totalorder %s31, 0
      %p163 = por %p161, %p162
      %s165 = sadd.s32 %s164, 1
      %p168 = scmp.eq.s32.totalorder %s25, 1
      %p169 = scmp.ne.s32.totalorder %s164, %s166
      %p170 = scmp.eq.s32.totalorder %s25, 0
      %p171 = por %p169, %p170
      %p172 = scmp.ne.s32.totalorder %s164, %s166
      %p173 = scmp.eq.s32.totalorder %s30, 1
      %p174 = por %p172, %p173
      %p175 = scmp.ne.s32.totalorder %s166, %s167
      %p176 = scmp.eq.s32.totalorder %s30, 0
      %p177 = por %p175, %p176
      %p178 = scmp.ne.s32.totalorder %s166, %s167
      %p179 = scmp.eq.s32.totalorder %s31, 1
      %p180 = por %p178, %p179
      %p182 = scmp.ne.s32.totalorder %s167, %s181
      %p183 = scmp.eq.s32.totalorder %s31, 0
      %p184 = por %p182, %p183
      %s186 = sadd.s32 %s185, 1
      %p189 = scmp.eq.s32.totalorder %s25, 1
      %p190 = scmp.ne.s32.totalorder %s185, %s187
      %p191 = scmp.eq.s32.totalorder %s25, 0
      %p192 = por %p190, %p191
      %p193 = scmp.ne.s32.totalorder %s185, %s187
      %p194 = scmp.eq.s32.totalorder %s30, 1
      %p195 = por %p193, %p194
      %p196 = scmp.ne.s32.totalorder %s187, %s188
      %p197 = scmp.eq.s32.totalorder %s30, 0
      %p198 = por %p196, %p197
      %p199 = scmp.ne.s32.totalorder %s187, %s188
      %p200 = scmp.eq.s32.totalorder %s31, 1
      %p201 = por %p199, %p200
      %p203 = scmp.ne.s32.totalorder %s188, %s202
      %p204 = scmp.eq.s32.totalorder %s31, 0
      %p205 = por %p203, %p204
      %s207 = sadd.s32 %s206, 1
      %p210 = scmp.eq.s32.totalorder %s25, 1
      %p211 = scmp.ne.s32.totalorder %s206, %s208
      %p212 = scmp.eq.s32.totalorder %s25, 0
      %p213 = por %p211, %p212
      %p214 = scmp.ne.s32.totalorder %s206, %s208
      %p215 = scmp.eq.s32.totalorder %s30, 1
      %p216 = por %p214, %p215
      %p217 = scmp.ne.s32.totalorder %s208, %s209
      %p218 = scmp.eq.s32.totalorder %s30, 0
      %p219 = por %p217, %p218
      %p220 = scmp.ne.s32.totalorder %s208, %s209
      %p221 = scmp.eq.s32.totalorder %s31, 1
      %p222 = por %p220, %p221
      %p224 = scmp.ne.s32.totalorder %s209, %s223
      %p225 = scmp.eq.s32.totalorder %s31, 0
      %p226 = por %p224, %p225
      %s228 = sadd.s32 %s227, 1
      %p231 = scmp.eq.s32.totalorder %s25, 1
      %p232 = scmp.ne.s32.totalorder %s227, %s229
      %p233 = scmp.eq.s32.totalorder %s25, 0
      %p234 = por %p232, %p233
      %p235 = scmp.ne.s32.totalorder %s227, %s229
      %p236 = scmp.eq.s32.totalorder %s30, 1
      %p237 = por %p235, %p236
      %p238 = scmp.ne.s32.totalorder %s229, %s230
      %p239 = scmp.eq.s32.totalorder %s30, 0
      %p240 = por %p238, %p239
      %p241 = scmp.ne.s32.totalorder %s229, %s230
      %p242 = scmp.eq.s32.totalorder %s31, 1
      %p243 = por %p241, %p242
      %p245 = scmp.ne.s32.totalorder %s230, %s244
      %p246 = scmp.eq.s32.totalorder %s31, 0
      %p247 = por %p245, %p246
      %s249 = sadd.s32 %s248, 1
      %p252 = scmp.eq.s32.totalorder %s25, 1
      %p253 = scmp.ne.s32.totalorder %s248, %s250
      %p254 = scmp.eq.s32.totalorder %s25, 0
      %p255 = por %p253, %p254
      %p256 = scmp.ne.s32.totalorder %s248, %s250
      %p257 = scmp.eq.s32.totalorder %s30, 1
      %p258 = por %p256, %p257
      %p259 = scmp.ne.s32.totalorder %s250, %s251
      %p260 = scmp.eq.s32.totalorder %s30, 0
      %p261 = por %p259, %p260
      %p262 = scmp.ne.s32.totalorder %s250, %s251
      %p263 = scmp.eq.s32.totalorder %s31, 1
      %p264 = por %p262, %p263
      %p266 = scmp.ne.s32.totalorder %s251, %s265
      %p267 = scmp.eq.s32.totalorder %s31, 0
      %p268 = por %p266, %p267
      %s269 = ssub.s32 %s25, %s32
      %p270 = scmp.eq.s32.totalorder %s269, 0
      %s272 = sadd.s32 %s271, 1
      %s273 = scalar_select %p270, %s271, %s272
      %p276 = pneg %p270
      %p277 = scmp.eq.s32.totalorder %s25, 1
      %p278 = por %p276, %p277
      %p279 = scmp.ne.s32.totalorder %s271, %s274
      %p280 = scmp.eq.s32.totalorder %s25, 0
      %p281 = por %p279, %p280
      %p282 = scmp.ne.s32.totalorder %s271, %s274
      %p283 = scmp.eq.s32.totalorder %s30, 1
      %p284 = por %p282, %p283
      %p285 = scmp.ne.s32.totalorder %s274, %s275
      %p286 = scmp.eq.s32.totalorder %s30, 0
      %p287 = por %p285, %p286
      %p288 = scmp.ne.s32.totalorder %s274, %s275
      %p289 = scmp.eq.s32.totalorder %s31, 1
      %p290 = por %p288, %p289
      %p292 = scmp.ne.s32.totalorder %s275, %s291
      %p293 = scmp.eq.s32.totalorder %s31, 0
      %p294 = por %p292, %p293
      %s295 = ssub.s32 %s25, %s32
      %p296 = scmp.eq.s32.totalorder %s295, 0
      %s298 = sadd.s32 %s297, 1
      %s299 = scalar_select %p296, %s297, %s298
      %p302 = pneg %p296
      %p303 = scmp.eq.s32.totalorder %s25, 1
      %p304 = por %p302, %p303
      %p305 = scmp.ne.s32.totalorder %s297, %s300
      %p306 = scmp.eq.s32.totalorder %s25, 0
      %p307 = por %p305, %p306
      %p308 = scmp.ne.s32.totalorder %s297, %s300
      %p309 = scmp.eq.s32.totalorder %s30, 1
      %p310 = por %p308, %p309
      %p311 = scmp.ne.s32.totalorder %s300, %s301
      %p312 = scmp.eq.s32.totalorder %s30, 0
      %p313 = por %p311, %p312
      %p314 = scmp.ne.s32.totalorder %s300, %s301
      %p315 = scmp.eq.s32.totalorder %s31, 1
      %p316 = por %p314, %p315
      %p318 = scmp.ne.s32.totalorder %s301, %s317
      %p319 = scmp.eq.s32.totalorder %s31, 0
      %p320 = por %p318, %p319
      %p321 = scmp.le.s32.totalorder 1, %s25
      %p322 = scmp.lt.s32.totalorder %s25, 3
      %p323 = pnand %p321, %p322
      %p324 = pneg %p323
      // Predicated region
      $region9: #{custom_resnet_forward.1} parent=5 // pred_check
        _
      $region10: #{custom_resnet_forward.1} parent=5 // pred_check_branch
        %326 = sbr.rel (%p323) target = $region12
      $region11: #{custom_resnet_forward.1} parent=5 // pred_region
        %s327 = ssub.s32 %s25, 1
        // Predicated region
        $region13: #{custom_resnet_forward.1} parent=11 // pred_check
          %p328 = pneg %p72
        $region14: #{custom_resnet_forward.1} parent=11 // pred_check_branch
          %330 = sbr.rel (%p328) target = $region16
        $region15: #{custom_resnet_forward.1} parent=11 // pred_region
          _
        $region16: #{custom_resnet_forward.1} parent=11 // pred_fallthru
          _
        // Predicated region
        $region17: #{custom_resnet_forward.1} parent=11 // pred_check
          %p331 = pneg %p93
        $region18: #{custom_resnet_forward.1} parent=11 // pred_check_branch
          %333 = sbr.rel (%p331) target = $region20
        $region19: #{custom_resnet_forward.1} parent=11 // pred_region
          _
        $region20: #{custom_resnet_forward.1} parent=11 // pred_fallthru
          _
        // Predicated region
        $region21: #{custom_resnet_forward.1} parent=11 // pred_check
          %p334 = pneg %p114
        $region22: #{custom_resnet_forward.1} parent=11 // pred_check_branch
          %336 = sbr.rel (%p334) target = $region24
        $region23: #{custom_resnet_forward.1} parent=11 // pred_region
          _
        $region24: #{custom_resnet_forward.1} parent=11 // pred_fallthru
          _
        // Predicated region
        $region25: #{custom_resnet_forward.1} parent=11 // pred_check
          %p337 = pneg %p135
        $region26: #{custom_resnet_forward.1} parent=11 // pred_check_branch
          %339 = sbr.rel (%p337) target = $region28
        $region27: #{custom_resnet_forward.1} parent=11 // pred_region
          _
        $region28: #{custom_resnet_forward.1} parent=11 // pred_fallthru
          _
        // Predicated region
        $region29: #{custom_resnet_forward.1} parent=11 // pred_check
          %p340 = pneg %p156
        $region30: #{custom_resnet_forward.1} parent=11 // pred_check_branch
          %342 = sbr.rel (%p340) target = $region32
        $region31: #{custom_resnet_forward.1} parent=11 // pred_region
          _
        $region32: #{custom_resnet_forward.1} parent=11 // pred_fallthru
          _
        // Predicated region
        $region33: #{custom_resnet_forward.1} parent=11 // pred_check
          %p343 = pneg %p177
        $region34: #{custom_resnet_forward.1} parent=11 // pred_check_branch
          %345 = sbr.rel (%p343) target = $region36
        $region35: #{custom_resnet_forward.1} parent=11 // pred_region
          _
        $region36: #{custom_resnet_forward.1} parent=11 // pred_fallthru
          _
        // Predicated region
        $region37: #{custom_resnet_forward.1} parent=11 // pred_check
          %p346 = pneg %p198
        $region38: #{custom_resnet_forward.1} parent=11 // pred_check_branch
          %348 = sbr.rel (%p346) target = $region40
        $region39: #{custom_resnet_forward.1} parent=11 // pred_region
          _
        $region40: #{custom_resnet_forward.1} parent=11 // pred_fallthru
          _
        // Predicated region
        $region41: #{custom_resnet_forward.1} parent=11 // pred_check
          %p349 = pneg %p219
        $region42: #{custom_resnet_forward.1} parent=11 // pred_check_branch
          %351 = sbr.rel (%p349) target = $region44
        $region43: #{custom_resnet_forward.1} parent=11 // pred_region
          _
        $region44: #{custom_resnet_forward.1} parent=11 // pred_fallthru
          _
        // Predicated region
        $region45: #{custom_resnet_forward.1} parent=11 // pred_check
          %p352 = pneg %p240
        $region46: #{custom_resnet_forward.1} parent=11 // pred_check_branch
          %354 = sbr.rel (%p352) target = $region48
        $region47: #{custom_resnet_forward.1} parent=11 // pred_region
          _
        $region48: #{custom_resnet_forward.1} parent=11 // pred_fallthru
          _
        // Predicated region
        $region49: #{custom_resnet_forward.1} parent=11 // pred_check
          %p355 = pneg %p261
        $region50: #{custom_resnet_forward.1} parent=11 // pred_check_branch
          %357 = sbr.rel (%p355) target = $region52
        $region51: #{custom_resnet_forward.1} parent=11 // pred_region
          _
        $region52: #{custom_resnet_forward.1} parent=11 // pred_fallthru
          _
      $region12: #{custom_resnet_forward.1} parent=5 // pred_fallthru
        _
      %p358 = scmp.lt.s32.totalorder %s25, 2
      // Predicated region
      $region53: #{custom_resnet_forward.1} parent=5 // pred_check
        %p359 = pneg %p358
      $region54: #{custom_resnet_forward.1} parent=5 // pred_check_branch
        %361 = sbr.rel (%p359) target = $region56
      $region55: #{custom_resnet_forward.1} parent=5 // pred_region
        // Predicated region
        $region57: #{custom_resnet_forward.1} parent=55 // pred_check
          %p362 = pneg %p45
        $region58: #{custom_resnet_forward.1} parent=55 // pred_check_branch
          %364 = sbr.rel (%p362) target = $region60
        $region59: #{custom_resnet_forward.1} parent=55 // pred_region
          %p365 = scmp.lt.s32.totalorder %s25, 1
          %s366 = scalar_select %p365, %s25, 1
          %s367 = smul.addr %s366, 37
          %s368 = smul.addr %s367, 4
          %s369 = scalar_lea.vmem %s0, %s368
        $region60: #{custom_resnet_forward.1} parent=55 // pred_fallthru
          _
      $region56: #{custom_resnet_forward.1} parent=5 // pred_fallthru
        _
      %p370 = scmp.le.s32.totalorder 1, %s25
      %p371 = scmp.lt.s32.totalorder %s25, 3
      %p372 = pnand %p370, %p371
      %p373 = pneg %p372
      // Predicated region
      $region61: #{custom_resnet_forward.1} parent=5 // pred_check
        _
      $region62: #{custom_resnet_forward.1} parent=5 // pred_check_branch
        %375 = sbr.rel (%p372) target = $region64
      $region63: #{custom_resnet_forward.1} parent=5 // pred_region
        %s376 = ssub.s32 %s25, 1
        %p377 = scmp.lt.s32.totalorder %s30, 1
        %s378 = scalar_select %p377, %s30, 1
        %s379 = smul.addr %s378, 37
        %s380 = smul.addr %s379, 4
        %s381 = scalar_lea.vmem %s0, %s380
        %p382 = pneg %p51
        %p383 = pneg %p48
        %p384 = pneg %p72
        %p385 = pneg %p69
        %p386 = pneg %p93
        %p387 = pneg %p90
        %p388 = pneg %p114
        %p389 = pneg %p111
        %p390 = pneg %p135
        %p391 = pneg %p132
        %p392 = pneg %p156
        %p393 = pneg %p153
        %p394 = pneg %p177
        %p395 = pneg %p174
        %p396 = pneg %p198
        %p397 = pneg %p195
        %p398 = pneg %p219
        %p399 = pneg %p216
        %p400 = pneg %p240
        %p401 = pneg %p237
        %p402 = pneg %p261
        %p403 = pneg %p258
        %p404 = pneg %p287
        %p405 = pneg %p284
        %s406 = sand.u32 %s274, 1
        %s407 = scalar_lea.sflag [#allocation3], %s406
        %s408 = sand.u32 %s274, 1
        %s409 = scalar_lea.vmem [#allocation2], %s408
        %p410 = pneg %p313
        %p411 = pneg %p310
        %s412 = sand.u32 %s300, 1
        %s413 = scalar_lea.sflag [#allocation5], %s412
        %s414 = sand.u32 %s300, 1
        %s415 = scalar_lea.vmem [#allocation4], %s414
        %p416 = scmp.lt.s32.totalorder %s30, 1
        %s417 = scalar_select %p416, %s30, 1
        %s418 = smul.addr %s417, 37
        %s419 = smul.addr %s418, 4
        %s420 = scalar_lea.vmem %s0, %s419
        %v424 = vlaneseq
        %v425 = vshrl.u32 %v424, 7
        %v426 = vadd.s32 %v425, 8
        %v427 = vadd.s32 %v425, 16
        %v428 = vadd.s32 %v425, 24
        %v429 = vadd.s32 %v425, 32
        %v430 = vadd.s32 %v425, 40
        %v431 = vadd.s32 %v425, 48
        %v432 = vadd.s32 %v425, 56
        %v433 = vadd.s32 %v425, 64
        %v434 = vadd.s32 %v425, 72
        %v435 = vadd.s32 %v425, 80
        %v436 = vadd.s32 %v425, 88
        %v437 = vadd.s32 %v425, 96
        %v438 = vadd.s32 %v425, 104
        %v439 = vadd.s32 %v425, 112
        %v440 = vadd.s32 %v425, 120
        %v441 = vadd.s32 %v425, 128
        %v442 = vadd.s32 %v425, 136
        %v443 = vadd.s32 %v425, 144
        %v444 = vadd.s32 %v425, 152
        %v445 = vadd.s32 %v425, 160
        %v446 = vadd.s32 %v425, 168
        %v447 = vadd.s32 %v425, 176
        %v448 = vadd.s32 %v425, 184
        %v449 = vadd.s32 %v425, 192
        %v450 = vadd.s32 %v425, 200
        %v451 = vadd.s32 %v425, 208
        %v452 = vadd.s32 %v425, 216
        %v453 = vadd.s32 %v425, 224
        %v454 = vadd.s32 %v425, 232
        %v455 = vadd.s32 %v425, 240
        %v456 = vadd.s32 %v425, 248
        %vm457 = vcmp.lt.s32.totalorder %v425, 0
        %v458 = vsub.s32 0, %v425
        %v459 = vsel %vm457, %v458, %v425
        %v460 = vshrl.u32 %v459, 4
        %v461 = vand.u32 %v459, 15
        %v462 = vsub.s32 0, %v461
        %v463 = vsel %vm457, %v462, %v461
        %vm464 = vcmp.lt.s32.totalorder %v426, 0
        %v465 = vsub.s32 0, %v426
        %v466 = vsel %vm464, %v465, %v426
        %v467 = vshrl.u32 %v466, 4
        %v468 = vand.u32 %v466, 15
        %v469 = vsub.s32 0, %v468
        %v470 = vsel %vm464, %v469, %v468
        %vm471 = vcmp.lt.s32.totalorder %v427, 0
        %v472 = vsub.s32 0, %v427
        %v473 = vsel %vm471, %v472, %v427
        %v474 = vshrl.u32 %v473, 4
        %v475 = vand.u32 %v473, 15
        %v476 = vsub.s32 0, %v475
        %v477 = vsel %vm471, %v476, %v475
        %vm478 = vcmp.lt.s32.totalorder %v428, 0
        %v479 = vsub.s32 0, %v428
        %v480 = vsel %vm478, %v479, %v428
        %v481 = vshrl.u32 %v480, 4
        %v482 = vand.u32 %v480, 15
        %v483 = vsub.s32 0, %v482
        %v484 = vsel %vm478, %v483, %v482
        %vm485 = vcmp.lt.s32.totalorder %v429, 0
        %v486 = vsub.s32 0, %v429
        %v487 = vsel %vm485, %v486, %v429
        %v488 = vshrl.u32 %v487, 4
        %v489 = vand.u32 %v487, 15
        %v490 = vsub.s32 0, %v489
        %v491 = vsel %vm485, %v490, %v489
        %vm492 = vcmp.lt.s32.totalorder %v430, 0
        %v493 = vsub.s32 0, %v430
        %v494 = vsel %vm492, %v493, %v430
        %v495 = vshrl.u32 %v494, 4
        %v496 = vand.u32 %v494, 15
        %v497 = vsub.s32 0, %v496
        %v498 = vsel %vm492, %v497, %v496
        %vm499 = vcmp.lt.s32.totalorder %v431, 0
        %v500 = vsub.s32 0, %v431
        %v501 = vsel %vm499, %v500, %v431
        %v502 = vshrl.u32 %v501, 4
        %v503 = vand.u32 %v501, 15
        %v504 = vsub.s32 0, %v503
        %v505 = vsel %vm499, %v504, %v503
        %vm506 = vcmp.lt.s32.totalorder %v432, 0
        %v507 = vsub.s32 0, %v432
        %v508 = vsel %vm506, %v507, %v432
        %v509 = vshrl.u32 %v508, 4
        %v510 = vand.u32 %v508, 15
        %v511 = vsub.s32 0, %v510
        %v512 = vsel %vm506, %v511, %v510
        %vm513 = vcmp.lt.s32.totalorder %v433, 0
        %v514 = vsub.s32 0, %v433
        %v515 = vsel %vm513, %v514, %v433
        %v516 = vshrl.u32 %v515, 4
        %v517 = vand.u32 %v515, 15
        %v518 = vsub.s32 0, %v517
        %v519 = vsel %vm513, %v518, %v517
        %vm520 = vcmp.lt.s32.totalorder %v434, 0
        %v521 = vsub.s32 0, %v434
        %v522 = vsel %vm520, %v521, %v434
        %v523 = vshrl.u32 %v522, 4
        %v524 = vand.u32 %v522, 15
        %v525 = vsub.s32 0, %v524
        %v526 = vsel %vm520, %v525, %v524
        %vm527 = vcmp.lt.s32.totalorder %v435, 0
        %v528 = vsub.s32 0, %v435
        %v529 = vsel %vm527, %v528, %v435
        %v530 = vshrl.u32 %v529, 4
        %v531 = vand.u32 %v529, 15
        %v532 = vsub.s32 0, %v531
        %v533 = vsel %vm527, %v532, %v531
        %vm534 = vcmp.lt.s32.totalorder %v436, 0
        %v535 = vsub.s32 0, %v436
        %v536 = vsel %vm534, %v535, %v436
        %v537 = vshrl.u32 %v536, 4
        %v538 = vand.u32 %v536, 15
        %v539 = vsub.s32 0, %v538
        %v540 = vsel %vm534, %v539, %v538
        %vm541 = vcmp.lt.s32.totalorder %v437, 0
        %v542 = vsub.s32 0, %v437
        %v543 = vsel %vm541, %v542, %v437
        %v544 = vshrl.u32 %v543, 4
        %v545 = vand.u32 %v543, 15
        %v546 = vsub.s32 0, %v545
        %v547 = vsel %vm541, %v546, %v545
        %vm548 = vcmp.lt.s32.totalorder %v438, 0
        %v549 = vsub.s32 0, %v438
        %v550 = vsel %vm548, %v549, %v438
        %v551 = vshrl.u32 %v550, 4
        %v552 = vand.u32 %v550, 15
        %v553 = vsub.s32 0, %v552
        %v554 = vsel %vm548, %v553, %v552
        %vm555 = vcmp.lt.s32.totalorder %v439, 0
        %v556 = vsub.s32 0, %v439
        %v557 = vsel %vm555, %v556, %v439
        %v558 = vshrl.u32 %v557, 4
        %v559 = vand.u32 %v557, 15
        %v560 = vsub.s32 0, %v559
        %v561 = vsel %vm555, %v560, %v559
        %vm562 = vcmp.lt.s32.totalorder %v440, 0
        %v563 = vsub.s32 0, %v440
        %v564 = vsel %vm562, %v563, %v440
        %v565 = vshrl.u32 %v564, 4
        %v566 = vand.u32 %v564, 15
        %v567 = vsub.s32 0, %v566
        %v568 = vsel %vm562, %v567, %v566
        %vm569 = vcmp.lt.s32.totalorder %v441, 0
        %v570 = vsub.s32 0, %v441
        %v571 = vsel %vm569, %v570, %v441
        %v572 = vshrl.u32 %v571, 4
        %v573 = vand.u32 %v571, 15
        %v574 = vsub.s32 0, %v573
        %v575 = vsel %vm569, %v574, %v573
        %vm576 = vcmp.lt.s32.totalorder %v442, 0
        %v577 = vsub.s32 0, %v442
        %v578 = vsel %vm576, %v577, %v442
        %v579 = vshrl.u32 %v578, 4
        %v580 = vand.u32 %v578, 15
        %v581 = vsub.s32 0, %v580
        %v582 = vsel %vm576, %v581, %v580
        %vm583 = vcmp.lt.s32.totalorder %v443, 0
        %v584 = vsub.s32 0, %v443
        %v585 = vsel %vm583, %v584, %v443
        %v586 = vshrl.u32 %v585, 4
        %v587 = vand.u32 %v585, 15
        %v588 = vsub.s32 0, %v587
        %v589 = vsel %vm583, %v588, %v587
        %vm590 = vcmp.lt.s32.totalorder %v444, 0
        %v591 = vsub.s32 0, %v444
        %v592 = vsel %vm590, %v591, %v444
        %v593 = vshrl.u32 %v592, 4
        %v594 = vand.u32 %v592, 15
        %v595 = vsub.s32 0, %v594
        %v596 = vsel %vm590, %v595, %v594
        %vm597 = vcmp.lt.s32.totalorder %v445, 0
        %v598 = vsub.s32 0, %v445
        %v599 = vsel %vm597, %v598, %v445
        %v600 = vshrl.u32 %v599, 4
        %v601 = vand.u32 %v599, 15
        %v602 = vsub.s32 0, %v601
        %v603 = vsel %vm597, %v602, %v601
        %vm604 = vcmp.lt.s32.totalorder %v446, 0
        %v605 = vsub.s32 0, %v446
        %v606 = vsel %vm604, %v605, %v446
        %v607 = vshrl.u32 %v606, 4
        %v608 = vand.u32 %v606, 15
        %v609 = vsub.s32 0, %v608
        %v610 = vsel %vm604, %v609, %v608
        %vm611 = vcmp.lt.s32.totalorder %v447, 0
        %v612 = vsub.s32 0, %v447
        %v613 = vsel %vm611, %v612, %v447
        %v614 = vshrl.u32 %v613, 4
        %v615 = vand.u32 %v613, 15
        %v616 = vsub.s32 0, %v615
        %v617 = vsel %vm611, %v616, %v615
        %vm618 = vcmp.lt.s32.totalorder %v448, 0
        %v619 = vsub.s32 0, %v448
        %v620 = vsel %vm618, %v619, %v448
        %v621 = vshrl.u32 %v620, 4
        %v622 = vand.u32 %v620, 15
        %v623 = vsub.s32 0, %v622
        %v624 = vsel %vm618, %v623, %v622
        %vm625 = vcmp.lt.s32.totalorder %v449, 0
        %v626 = vsub.s32 0, %v449
        %v627 = vsel %vm625, %v626, %v449
        %v628 = vshrl.u32 %v627, 4
        %v629 = vand.u32 %v627, 15
        %v630 = vsub.s32 0, %v629
        %v631 = vsel %vm625, %v630, %v629
        %vm632 = vcmp.lt.s32.totalorder %v450, 0
        %v633 = vsub.s32 0, %v450
        %v634 = vsel %vm632, %v633, %v450
        %v635 = vshrl.u32 %v634, 4
        %v636 = vand.u32 %v634, 15
        %v637 = vsub.s32 0, %v636
        %v638 = vsel %vm632, %v637, %v636
        %vm639 = vcmp.lt.s32.totalorder %v451, 0
        %v640 = vsub.s32 0, %v451
        %v641 = vsel %vm639, %v640, %v451
        %v642 = vshrl.u32 %v641, 4
        %v643 = vand.u32 %v641, 15
        %v644 = vsub.s32 0, %v643
        %v645 = vsel %vm639, %v644, %v643
        %vm646 = vcmp.lt.s32.totalorder %v452, 0
        %v647 = vsub.s32 0, %v452
        %v648 = vsel %vm646, %v647, %v452
        %v649 = vshrl.u32 %v648, 4
        %v650 = vand.u32 %v648, 15
        %v651 = vsub.s32 0, %v650
        %v652 = vsel %vm646, %v651, %v650
        %vm653 = vcmp.lt.s32.totalorder %v453, 0
        %v654 = vsub.s32 0, %v453
        %v655 = vsel %vm653, %v654, %v453
        %v656 = vshrl.u32 %v655, 4
        %v657 = vand.u32 %v655, 15
        %v658 = vsub.s32 0, %v657
        %v659 = vsel %vm653, %v658, %v657
        %vm660 = vcmp.lt.s32.totalorder %v454, 0
        %v661 = vsub.s32 0, %v454
        %v662 = vsel %vm660, %v661, %v454
        %v663 = vshrl.u32 %v662, 4
        %v664 = vand.u32 %v662, 15
        %v665 = vsub.s32 0, %v664
        %v666 = vsel %vm660, %v665, %v664
        %vm667 = vcmp.lt.s32.totalorder %v455, 0
        %v668 = vsub.s32 0, %v455
        %v669 = vsel %vm667, %v668, %v455
        %v670 = vshrl.u32 %v669, 4
        %v671 = vand.u32 %v669, 15
        %v672 = vsub.s32 0, %v671
        %v673 = vsel %vm667, %v672, %v671
        %vm674 = vcmp.lt.s32.totalorder %v456, 0
        %v675 = vsub.s32 0, %v456
        %v676 = vsel %vm674, %v675, %v456
        %v677 = vshrl.u32 %v676, 4
        %v678 = vand.u32 %v676, 15
        %v679 = vsub.s32 0, %v678
        %v680 = vsel %vm674, %v679, %v678
        %vm681 = vcmp.ne.s32.totalorder %v463, 0
        %vm682 = vcmp.ne.s32.totalorder %v470, 0
        %vm683 = vcmp.ne.s32.totalorder %v477, 0
        %vm684 = vcmp.ne.s32.totalorder %v484, 0
        %vm685 = vcmp.ne.s32.totalorder %v491, 0
        %vm686 = vcmp.ne.s32.totalorder %v498, 0
        %vm687 = vcmp.ne.s32.totalorder %v505, 0
        %vm688 = vcmp.ne.s32.totalorder %v512, 0
        %vm689 = vcmp.ne.s32.totalorder %v519, 0
        %vm690 = vcmp.ne.s32.totalorder %v526, 0
        %vm691 = vcmp.ne.s32.totalorder %v533, 0
        %vm692 = vcmp.ne.s32.totalorder %v540, 0
        %vm693 = vcmp.ne.s32.totalorder %v547, 0
        %vm694 = vcmp.ne.s32.totalorder %v554, 0
        %vm695 = vcmp.ne.s32.totalorder %v561, 0
        %vm696 = vcmp.ne.s32.totalorder %v568, 0
        %vm697 = vcmp.ne.s32.totalorder %v575, 0
        %vm698 = vcmp.ne.s32.totalorder %v582, 0
        %vm699 = vcmp.ne.s32.totalorder %v589, 0
        %vm700 = vcmp.ne.s32.totalorder %v596, 0
        %vm701 = vcmp.ne.s32.totalorder %v603, 0
        %vm702 = vcmp.ne.s32.totalorder %v610, 0
        %vm703 = vcmp.ne.s32.totalorder %v617, 0
        %vm704 = vcmp.ne.s32.totalorder %v624, 0
        %vm705 = vcmp.ne.s32.totalorder %v631, 0
        %vm706 = vcmp.ne.s32.totalorder %v638, 0
        %vm707 = vcmp.ne.s32.totalorder %v645, 0
        %vm708 = vcmp.ne.s32.totalorder %v652, 0
        %vm709 = vcmp.ne.s32.totalorder %v659, 0
        %vm710 = vcmp.ne.s32.totalorder %v666, 0
        %vm711 = vcmp.ne.s32.totalorder %v673, 0
        %vm712 = vcmp.ne.s32.totalorder %v680, 0
        %vm713 = vcmp.lt.s32.totalorder %v463, 0
        %vm714 = vcmp.lt.s32.totalorder %v470, 0
        %vm715 = vcmp.lt.s32.totalorder %v477, 0
        %vm716 = vcmp.lt.s32.totalorder %v484, 0
        %vm717 = vcmp.lt.s32.totalorder %v491, 0
        %vm718 = vcmp.lt.s32.totalorder %v498, 0
        %vm719 = vcmp.lt.s32.totalorder %v505, 0
        %vm720 = vcmp.lt.s32.totalorder %v512, 0
        %vm721 = vcmp.lt.s32.totalorder %v519, 0
        %vm722 = vcmp.lt.s32.totalorder %v526, 0
        %vm723 = vcmp.lt.s32.totalorder %v533, 0
        %vm724 = vcmp.lt.s32.totalorder %v540, 0
        %vm725 = vcmp.lt.s32.totalorder %v547, 0
        %vm726 = vcmp.lt.s32.totalorder %v554, 0
        %vm727 = vcmp.lt.s32.totalorder %v561, 0
        %vm728 = vcmp.lt.s32.totalorder %v568, 0
        %vm729 = vcmp.lt.s32.totalorder %v575, 0
        %vm730 = vcmp.lt.s32.totalorder %v582, 0
        %vm731 = vcmp.lt.s32.totalorder %v589, 0
        %vm732 = vcmp.lt.s32.totalorder %v596, 0
        %vm733 = vcmp.lt.s32.totalorder %v603, 0
        %vm734 = vcmp.lt.s32.totalorder %v610, 0
        %vm735 = vcmp.lt.s32.totalorder %v617, 0
        %vm736 = vcmp.lt.s32.totalorder %v624, 0
        %vm737 = vcmp.lt.s32.totalorder %v631, 0
        %vm738 = vcmp.lt.s32.totalorder %v638, 0
        %vm739 = vcmp.lt.s32.totalorder %v645, 0
        %vm740 = vcmp.lt.s32.totalorder %v652, 0
        %vm741 = vcmp.lt.s32.totalorder %v659, 0
        %vm742 = vcmp.lt.s32.totalorder %v666, 0
        %vm743 = vcmp.lt.s32.totalorder %v673, 0
        %vm744 = vcmp.lt.s32.totalorder %v680, 0
        %vm745 = vmand %vm713, %vm681
        %vm746 = vmand %vm714, %vm682
        %vm747 = vmand %vm715, %vm683
        %vm748 = vmand %vm716, %vm684
        %vm749 = vmand %vm717, %vm685
        %vm750 = vmand %vm718, %vm686
        %vm751 = vmand %vm719, %vm687
        %vm752 = vmand %vm720, %vm688
        %vm753 = vmand %vm721, %vm689
        %vm754 = vmand %vm722, %vm690
        %vm755 = vmand %vm723, %vm691
        %vm756 = vmand %vm724, %vm692
        %vm757 = vmand %vm725, %vm693
        %vm758 = vmand %vm726, %vm694
        %vm759 = vmand %vm727, %vm695
        %vm760 = vmand %vm728, %vm696
        %vm761 = vmand %vm729, %vm697
        %vm762 = vmand %vm730, %vm698
        %vm763 = vmand %vm731, %vm699
        %vm764 = vmand %vm732, %vm700
        %vm765 = vmand %vm733, %vm701
        %vm766 = vmand %vm734, %vm702
        %vm767 = vmand %vm735, %vm703
        %vm768 = vmand %vm736, %vm704
        %vm769 = vmand %vm737, %vm705
        %vm770 = vmand %vm738, %vm706
        %vm771 = vmand %vm739, %vm707
        %vm772 = vmand %vm740, %vm708
        %vm773 = vmand %vm741, %vm709
        %vm774 = vmand %vm742, %vm710
        %vm775 = vmand %vm743, %vm711
        %vm776 = vmand %vm744, %vm712
        %v777 = vadd.s32 %v463, 16
        %v778 = vadd.s32 %v470, 16
        %v779 = vadd.s32 %v477, 16
        %v780 = vadd.s32 %v484, 16
        %v781 = vadd.s32 %v491, 16
        %v782 = vadd.s32 %v498, 16
        %v783 = vadd.s32 %v505, 16
        %v784 = vadd.s32 %v512, 16
        %v785 = vadd.s32 %v519, 16
        %v786 = vadd.s32 %v526, 16
        %v787 = vadd.s32 %v533, 16
        %v788 = vadd.s32 %v540, 16
        %v789 = vadd.s32 %v547, 16
        %v790 = vadd.s32 %v554, 16
        %v791 = vadd.s32 %v561, 16
        %v792 = vadd.s32 %v568, 16
        %v793 = vadd.s32 %v575, 16
        %v794 = vadd.s32 %v582, 16
        %v795 = vadd.s32 %v589, 16
        %v796 = vadd.s32 %v596, 16
        %v797 = vadd.s32 %v603, 16
        %v798 = vadd.s32 %v610, 16
        %v799 = vadd.s32 %v617, 16
        %v800 = vadd.s32 %v624, 16
        %v801 = vadd.s32 %v631, 16
        %v802 = vadd.s32 %v638, 16
        %v803 = vadd.s32 %v645, 16
        %v804 = vadd.s32 %v652, 16
        %v805 = vadd.s32 %v659, 16
        %v806 = vadd.s32 %v666, 16
        %v807 = vadd.s32 %v673, 16
        %v808 = vadd.s32 %v680, 16
        %v809 = vsel %vm745, %v777, %v463
        %v810 = vsel %vm746, %v778, %v470
        %v811 = vsel %vm747, %v779, %v477
        %v812 = vsel %vm748, %v780, %v484
        %v813 = vsel %vm749, %v781, %v491
        %v814 = vsel %vm750, %v782, %v498
        %v815 = vsel %vm751, %v783, %v505
        %v816 = vsel %vm752, %v784, %v512
        %v817 = vsel %vm753, %v785, %v519
        %v818 = vsel %vm754, %v786, %v526
        %v819 = vsel %vm755, %v787, %v533
        %v820 = vsel %vm756, %v788, %v540
        %v821 = vsel %vm757, %v789, %v547
        %v822 = vsel %vm758, %v790, %v554
        %v823 = vsel %vm759, %v791, %v561
        %v824 = vsel %vm760, %v792, %v568
        %v825 = vsel %vm761, %v793, %v575
        %v826 = vsel %vm762, %v794, %v582
        %v827 = vsel %vm763, %v795, %v589
        %v828 = vsel %vm764, %v796, %v596
        %v829 = vsel %vm765, %v797, %v603
        %v830 = vsel %vm766, %v798, %v610
        %v831 = vsel %vm767, %v799, %v617
        %v832 = vsel %vm768, %v800, %v624
        %v833 = vsel %vm769, %v801, %v631
        %v834 = vsel %vm770, %v802, %v638
        %v835 = vsel %vm771, %v803, %v645
        %v836 = vsel %vm772, %v804, %v652
        %v837 = vsel %vm773, %v805, %v659
        %v838 = vsel %vm774, %v806, %v666
        %v839 = vsel %vm775, %v807, %v673
        %v840 = vsel %vm776, %v808, %v680
        %vm841 = vcmp.ne.s32.totalorder %v809, 0
        %vm842 = vcmp.ne.s32.totalorder %v810, 0
        %vm843 = vcmp.ne.s32.totalorder %v811, 0
        %vm844 = vcmp.ne.s32.totalorder %v812, 0
        %vm845 = vcmp.ne.s32.totalorder %v813, 0
        %vm846 = vcmp.ne.s32.totalorder %v814, 0
        %vm847 = vcmp.ne.s32.totalorder %v815, 0
        %vm848 = vcmp.ne.s32.totalorder %v816, 0
        %vm849 = vcmp.ne.s32.totalorder %v817, 0
        %vm850 = vcmp.ne.s32.totalorder %v818, 0
        %vm851 = vcmp.ne.s32.totalorder %v819, 0
        %vm852 = vcmp.ne.s32.totalorder %v820, 0
        %vm853 = vcmp.ne.s32.totalorder %v821, 0
        %vm854 = vcmp.ne.s32.totalorder %v822, 0
        %vm855 = vcmp.ne.s32.totalorder %v823, 0
        %vm856 = vcmp.ne.s32.totalorder %v824, 0
        %vm857 = vcmp.ne.s32.totalorder %v825, 0
        %vm858 = vcmp.ne.s32.totalorder %v826, 0
        %vm859 = vcmp.ne.s32.totalorder %v827, 0
        %vm860 = vcmp.ne.s32.totalorder %v828, 0
        %vm861 = vcmp.ne.s32.totalorder %v829, 0
        %vm862 = vcmp.ne.s32.totalorder %v830, 0
        %vm863 = vcmp.ne.s32.totalorder %v831, 0
        %vm864 = vcmp.ne.s32.totalorder %v832, 0
        %vm865 = vcmp.ne.s32.totalorder %v833, 0
        %vm866 = vcmp.ne.s32.totalorder %v834, 0
        %vm867 = vcmp.ne.s32.totalorder %v835, 0
        %vm868 = vcmp.ne.s32.totalorder %v836, 0
        %vm869 = vcmp.ne.s32.totalorder %v837, 0
        %vm870 = vcmp.ne.s32.totalorder %v838, 0
        %vm871 = vcmp.ne.s32.totalorder %v839, 0
        %vm872 = vcmp.ne.s32.totalorder %v840, 0
        %vm873 = vcmp.ne.s32.totalorder %v809, 15
        %vm874 = vcmp.ne.s32.totalorder %v810, 15
        %vm875 = vcmp.ne.s32.totalorder %v811, 15
        %vm876 = vcmp.ne.s32.totalorder %v812, 15
        %vm877 = vcmp.ne.s32.totalorder %v813, 15
        %vm878 = vcmp.ne.s32.totalorder %v814, 15
        %vm879 = vcmp.ne.s32.totalorder %v815, 15
        %vm880 = vcmp.ne.s32.totalorder %v816, 15
        %vm881 = vcmp.ne.s32.totalorder %v817, 15
        %vm882 = vcmp.ne.s32.totalorder %v818, 15
        %vm883 = vcmp.ne.s32.totalorder %v819, 15
        %vm884 = vcmp.ne.s32.totalorder %v820, 15
        %vm885 = vcmp.ne.s32.totalorder %v821, 15
        %vm886 = vcmp.ne.s32.totalorder %v822, 15
        %vm887 = vcmp.ne.s32.totalorder %v823, 15
        %vm888 = vcmp.ne.s32.totalorder %v824, 15
        %vm889 = vcmp.ne.s32.totalorder %v825, 15
        %vm890 = vcmp.ne.s32.totalorder %v826, 15
        %vm891 = vcmp.ne.s32.totalorder %v827, 15
        %vm892 = vcmp.ne.s32.totalorder %v828, 15
        %vm893 = vcmp.ne.s32.totalorder %v829, 15
        %vm894 = vcmp.ne.s32.totalorder %v830, 15
        %vm895 = vcmp.ne.s32.totalorder %v831, 15
        %vm896 = vcmp.ne.s32.totalorder %v832, 15
        %vm897 = vcmp.ne.s32.totalorder %v833, 15
        %vm898 = vcmp.ne.s32.totalorder %v834, 15
        %vm899 = vcmp.ne.s32.totalorder %v835, 15
        %vm900 = vcmp.ne.s32.totalorder %v836, 15
        %vm901 = vcmp.ne.s32.totalorder %v837, 15
        %vm902 = vcmp.ne.s32.totalorder %v838, 15
        %vm903 = vcmp.ne.s32.totalorder %v839, 15
        %vm904 = vcmp.ne.s32.totalorder %v840, 15
        %v905 = vld [vmem:[%s420] sm:$0xf]
        %v906 = vld [vmem:[%s420 + $0x4] sm:$0xf]
        %v907 = vld [vmem:[%s420 + $0x8] sm:$0xf]
        %v908 = vld [vmem:[%s420 + $0xc] sm:$0xf]
        %v909 = vld [vmem:[%s420 + $0x10] sm:$0xf]
        %v910 = vld [vmem:[%s420 + $0x14] sm:$0xf]
        %v911 = vld [vmem:[%s420 + $0x18] sm:$0xf]
        %v912 = vld [vmem:[%s420 + $0x1c] sm:$0xf]
        %v913 = vld [vmem:[%s420 + $0x20] sm:$0xf]
        %v914 = vld [vmem:[%s420 + $0x24] sm:$0xf]
        %v915 = vld [vmem:[%s420 + $0x28] sm:$0xf]
        %v916 = vld [vmem:[%s420 + $0x2c] sm:$0xf]
        %v917 = vld [vmem:[%s420 + $0x30] sm:$0xf]
        %v918 = vld [vmem:[%s420 + $0x34] sm:$0xf]
        %v919 = vld [vmem:[%s420 + $0x38] sm:$0xf]
        %v920 = vld [vmem:[%s420 + $0x3c] sm:$0xf]
        %v921 = vld [vmem:[%s420 + $0x40] sm:$0xf]
        %v922 = vld [vmem:[%s420 + $0x44] sm:$0xf]
        %v923 = vld [vmem:[%s420 + $0x48] sm:$0xf]
        %v924 = vld [vmem:[%s420 + $0x4c] sm:$0xf]
        %v925 = vld [vmem:[%s420 + $0x50] sm:$0xf]
        %v926 = vld [vmem:[%s420 + $0x54] sm:$0xf]
        %v927 = vld [vmem:[%s420 + $0x58] sm:$0xf]
        %v928 = vld [vmem:[%s420 + $0x5c] sm:$0xf]
        %v929 = vld [vmem:[%s420 + $0x60] sm:$0xf]
        %v930 = vld [vmem:[%s420 + $0x64] sm:$0xf]
        %v931 = vld [vmem:[%s420 + $0x68] sm:$0xf]
        %v932 = vld [vmem:[%s420 + $0x6c] sm:$0xf]
        %v933 = vld [vmem:[%s420 + $0x70] sm:$0xf]
        %v934 = vld [vmem:[%s420 + $0x74] sm:$0xf]
        %v935 = vld [vmem:[%s420 + $0x78] sm:$0xf]
        %v936 = vld [vmem:[%s420 + $0x7c] sm:$0xf]
        %v937 = vsel %vm841, 1, 0
        %v938 = vsel %vm842, 1, 0
        %v939 = vsel %vm843, 1, 0
        %v940 = vsel %vm844, 1, 0
        %v941 = vsel %vm845, 1, 0
        %v942 = vsel %vm846, 1, 0
        %v943 = vsel %vm847, 1, 0
        %v944 = vsel %vm848, 1, 0
        %v945 = vsel %vm849, 1, 0
        %v946 = vsel %vm850, 1, 0
        %v947 = vsel %vm851, 1, 0
        %v948 = vsel %vm852, 1, 0
        %v949 = vsel %vm853, 1, 0
        %v950 = vsel %vm854, 1, 0
        %v951 = vsel %vm855, 1, 0
        %v952 = vsel %vm856, 1, 0
        %v953 = vsel %vm857, 1, 0
        %v954 = vsel %vm858, 1, 0
        %v955 = vsel %vm859, 1, 0
        %v956 = vsel %vm860, 1, 0
        %v957 = vsel %vm861, 1, 0
        %v958 = vsel %vm862, 1, 0
        %v959 = vsel %vm863, 1, 0
        %v960 = vsel %vm864, 1, 0
        %v961 = vsel %vm865, 1, 0
        %v962 = vsel %vm866, 1, 0
        %v963 = vsel %vm867, 1, 0
        %v964 = vsel %vm868, 1, 0
        %v965 = vsel %vm869, 1, 0
        %v966 = vsel %vm870, 1, 0
        %v967 = vsel %vm871, 1, 0
        %v968 = vsel %vm872, 1, 0
        %vm969 = vcmp.eq.s32.totalorder %v937, 1
        %vm970 = vcmp.eq.s32.totalorder %v938, 1
        %vm971 = vcmp.eq.s32.totalorder %v939, 1
        %vm972 = vcmp.eq.s32.totalorder %v940, 1
        %vm973 = vcmp.eq.s32.totalorder %v941, 1
        %vm974 = vcmp.eq.s32.totalorder %v942, 1
        %vm975 = vcmp.eq.s32.totalorder %v943, 1
        %vm976 = vcmp.eq.s32.totalorder %v944, 1
        %vm977 = vcmp.eq.s32.totalorder %v945, 1
        %vm978 = vcmp.eq.s32.totalorder %v946, 1
        %vm979 = vcmp.eq.s32.totalorder %v947, 1
        %vm980 = vcmp.eq.s32.totalorder %v948, 1
        %vm981 = vcmp.eq.s32.totalorder %v949, 1
        %vm982 = vcmp.eq.s32.totalorder %v950, 1
        %vm983 = vcmp.eq.s32.totalorder %v951, 1
        %vm984 = vcmp.eq.s32.totalorder %v952, 1
        %vm985 = vcmp.eq.s32.totalorder %v953, 1
        %vm986 = vcmp.eq.s32.totalorder %v954, 1
        %vm987 = vcmp.eq.s32.totalorder %v955, 1
        %vm988 = vcmp.eq.s32.totalorder %v956, 1
        %vm989 = vcmp.eq.s32.totalorder %v957, 1
        %vm990 = vcmp.eq.s32.totalorder %v958, 1
        %vm991 = vcmp.eq.s32.totalorder %v959, 1
        %vm992 = vcmp.eq.s32.totalorder %v960, 1
        %vm993 = vcmp.eq.s32.totalorder %v961, 1
        %vm994 = vcmp.eq.s32.totalorder %v962, 1
        %vm995 = vcmp.eq.s32.totalorder %v963, 1
        %vm996 = vcmp.eq.s32.totalorder %v964, 1
        %vm997 = vcmp.eq.s32.totalorder %v965, 1
        %vm998 = vcmp.eq.s32.totalorder %v966, 1
        %vm999 = vcmp.eq.s32.totalorder %v967, 1
        %vm1000 = vcmp.eq.s32.totalorder %v968, 1
        %vm1001 = vmpackc.low %vm969, %vm969
        %vm1002 = vmpackc.low %vm970, %vm970
        %vm1003 = vmpackc.low %vm971, %vm971
        %vm1004 = vmpackc.low %vm972, %vm972
        %vm1005 = vmpackc.low %vm973, %vm973
        %vm1006 = vmpackc.low %vm974, %vm974
        %vm1007 = vmpackc.low %vm975, %vm975
        %vm1008 = vmpackc.low %vm976, %vm976
        %vm1009 = vmpackc.low %vm977, %vm977
        %vm1010 = vmpackc.low %vm978, %vm978
        %vm1011 = vmpackc.low %vm979, %vm979
        %vm1012 = vmpackc.low %vm980, %vm980
        %vm1013 = vmpackc.low %vm981, %vm981
        %vm1014 = vmpackc.low %vm982, %vm982
        %vm1015 = vmpackc.low %vm983, %vm983
        %vm1016 = vmpackc.low %vm984, %vm984
        %vm1017 = vmpackc.low %vm985, %vm985
        %vm1018 = vmpackc.low %vm986, %vm986
        %vm1019 = vmpackc.low %vm987, %vm987
        %vm1020 = vmpackc.low %vm988, %vm988
        %vm1021 = vmpackc.low %vm989, %vm989
        %vm1022 = vmpackc.low %vm990, %vm990
        %vm1023 = vmpackc.low %vm991, %vm991
        %vm1024 = vmpackc.low %vm992, %vm992
        %vm1025 = vmpackc.low %vm993, %vm993
        %vm1026 = vmpackc.low %vm994, %vm994
        %vm1027 = vmpackc.low %vm995, %vm995
        %vm1028 = vmpackc.low %vm996, %vm996
        %vm1029 = vmpackc.low %vm997, %vm997
        %vm1030 = vmpackc.low %vm998, %vm998
        %vm1031 = vmpackc.low %vm999, %vm999
        %vm1032 = vmpackc.low %vm1000, %vm1000
        %v1033 = vsel %vm1001, %v905, 0
        %v1034 = vsel %vm1002, %v906, 0
        %v1035 = vsel %vm1003, %v907, 0
        %v1036 = vsel %vm1004, %v908, 0
        %v1037 = vsel %vm1005, %v909, 0
        %v1038 = vsel %vm1006, %v910, 0
        %v1039 = vsel %vm1007, %v911, 0
        %v1040 = vsel %vm1008, %v912, 0
        %v1041 = vsel %vm1009, %v913, 0
        %v1042 = vsel %vm1010, %v914, 0
        %v1043 = vsel %vm1011, %v915, 0
        %v1044 = vsel %vm1012, %v916, 0
        %v1045 = vsel %vm1013, %v917, 0
        %v1046 = vsel %vm1014, %v918, 0
        %v1047 = vsel %vm1015, %v919, 0
        %v1048 = vsel %vm1016, %v920, 0
        %v1049 = vsel %vm1017, %v921, 0
        %v1050 = vsel %vm1018, %v922, 0
        %v1051 = vsel %vm1019, %v923, 0
        %v1052 = vsel %vm1020, %v924, 0
        %v1053 = vsel %vm1021, %v925, 0
        %v1054 = vsel %vm1022, %v926, 0
        %v1055 = vsel %vm1023, %v927, 0
        %v1056 = vsel %vm1024, %v928, 0
        %v1057 = vsel %vm1025, %v929, 0
        %v1058 = vsel %vm1026, %v930, 0
        %v1059 = vsel %vm1027, %v931, 0
        %v1060 = vsel %vm1028, %v932, 0
        %v1061 = vsel %vm1029, %v933, 0
        %v1062 = vsel %vm1030, %v934, 0
        %v1063 = vsel %vm1031, %v935, 0
        %v1064 = vsel %vm1032, %v936, 0
        %v1065 = vld [vmem:[%s1] sm:$0x3]
        %v1066 = vld [vmem:[%s420 + $0x80] sm:$0x1]
        %s1067 = scalar_lea.vmem %s1, 2
        %v1068 = vld [vmem:[%s1067] sm:$0x3]
        %v1102 = vunpack.c.l.b16 %v905
        %v1103 = vunpack.c.l.b16 %v906
        %v1104 = vunpack.c.l.b16 %v907
        %v1105 = vunpack.c.l.b16 %v908
        %v1106 = vunpack.c.l.b16 %v909
        %v1107 = vunpack.c.l.b16 %v910
        %v1108 = vunpack.c.l.b16 %v911
        %v1109 = vunpack.c.l.b16 %v912
        %v1110 = vunpack.c.l.b16 %v913
        %v1111 = vunpack.c.l.b16 %v914
        %v1112 = vunpack.c.l.b16 %v915
        %v1113 = vunpack.c.l.b16 %v916
        %v1114 = vunpack.c.l.b16 %v917
        %v1115 = vunpack.c.l.b16 %v918
        %v1116 = vunpack.c.l.b16 %v919
        %v1117 = vunpack.c.l.b16 %v920
        %v1118 = vunpack.c.l.b16 %v921
        %v1119 = vunpack.c.l.b16 %v922
        %v1120 = vunpack.c.l.b16 %v923
        %v1121 = vunpack.c.l.b16 %v924
        %v1122 = vunpack.c.l.b16 %v925
        %v1123 = vunpack.c.l.b16 %v926
        %v1124 = vunpack.c.l.b16 %v927
        %v1125 = vunpack.c.l.b16 %v928
        %v1126 = vunpack.c.l.b16 %v929
        %v1127 = vunpack.c.l.b16 %v930
        %v1128 = vunpack.c.l.b16 %v931
        %v1129 = vunpack.c.l.b16 %v932
        %v1130 = vunpack.c.l.b16 %v933
        %v1131 = vunpack.c.l.b16 %v934
        %v1132 = vunpack.c.l.b16 %v935
        %v1133 = vunpack.c.l.b16 %v936
        %v1134 = vunpack.c.l.b16 %v1066
        %v1135 = vpack.c.b16 %v1103, %v1102
        %v1136 = vpack.c.b16 %v1105, %v1104
        %v1137 = vpack.c.b16 %v1107, %v1106
        %v1138 = vpack.c.b16 %v1109, %v1108
        %v1139 = vpack.c.b16 %v1111, %v1110
        %v1140 = vpack.c.b16 %v1113, %v1112
        %v1141 = vpack.c.b16 %v1115, %v1114
        %v1142 = vpack.c.b16 %v1117, %v1116
        %v1143 = vpack.c.b16 %v1119, %v1118
        %v1144 = vpack.c.b16 %v1121, %v1120
        %v1145 = vpack.c.b16 %v1123, %v1122
        %v1146 = vpack.c.b16 %v1125, %v1124
        %v1147 = vpack.c.b16 %v1127, %v1126
        %v1148 = vpack.c.b16 %v1129, %v1128
        %v1149 = vpack.c.b16 %v1131, %v1130
        %v1150 = vpack.c.b16 %v1133, %v1132
        %v1151 = vpack.c.b16 %v1134, %v1134
        %vm1152 = vsmask.f32 7424
        %v1154 = vshrl.u32 %v1135, 16
        %v1156 = vshll.u32 %v1135, 16
        %v1158 = vrot.slane %v1156, 1
        %v1159 = vor.u32 %v1154, %v1158
        %v1161 = vshll.u32 %v1136, 16
        %v1163 = vrot.slane %v1161, 1
        %v1164 = vsel %vm1152, %v1159, %v1163
        %v1165 = vshrl.u32 %v1136, 16
        %v1167 = vor.u32 %v1165, %v1163
        %v1169 = vshll.u32 %v1137, 16
        %v1171 = vrot.slane %v1169, 1
        %v1172 = vsel %vm1152, %v1167, %v1171
        %v1173 = vshrl.u32 %v1137, 16
        %v1175 = vor.u32 %v1173, %v1171
        %v1177 = vshll.u32 %v1138, 16
        %v1179 = vrot.slane %v1177, 1
        %v1180 = vsel %vm1152, %v1175, %v1179
        %v1181 = vshrl.u32 %v1138, 16
        %v1183 = vor.u32 %v1181, %v1179
        %v1185 = vshll.u32 %v1139, 16
        %v1187 = vrot.slane %v1185, 1
        %v1188 = vsel %vm1152, %v1183, %v1187
        %v1189 = vshrl.u32 %v1139, 16
        %v1191 = vor.u32 %v1189, %v1187
        %v1193 = vshll.u32 %v1140, 16
        %v1195 = vrot.slane %v1193, 1
        %v1196 = vsel %vm1152, %v1191, %v1195
        %v1197 = vshrl.u32 %v1140, 16
        %v1199 = vor.u32 %v1197, %v1195
        %v1201 = vshll.u32 %v1141, 16
        %v1203 = vrot.slane %v1201, 1
        %v1204 = vsel %vm1152, %v1199, %v1203
        %v1205 = vshrl.u32 %v1141, 16
        %v1207 = vor.u32 %v1205, %v1203
        %v1209 = vshll.u32 %v1142, 16
        %v1211 = vrot.slane %v1209, 1
        %v1212 = vsel %vm1152, %v1207, %v1211
        %v1213 = vshrl.u32 %v1142, 16
        %v1215 = vor.u32 %v1213, %v1211
        %v1217 = vshll.u32 %v1143, 16
        %v1219 = vrot.slane %v1217, 1
        %v1220 = vsel %vm1152, %v1215, %v1219
        %v1221 = vshrl.u32 %v1143, 16
        %v1223 = vor.u32 %v1221, %v1219
        %v1225 = vshll.u32 %v1144, 16
        %v1227 = vrot.slane %v1225, 1
        %v1228 = vsel %vm1152, %v1223, %v1227
        %v1229 = vshrl.u32 %v1144, 16
        %v1231 = vor.u32 %v1229, %v1227
        %v1233 = vshll.u32 %v1145, 16
        %v1235 = vrot.slane %v1233, 1
        %v1236 = vsel %vm1152, %v1231, %v1235
        %v1237 = vshrl.u32 %v1145, 16
        %v1239 = vor.u32 %v1237, %v1235
        %v1241 = vshll.u32 %v1146, 16
        %v1243 = vrot.slane %v1241, 1
        %v1244 = vsel %vm1152, %v1239, %v1243
        %v1245 = vshrl.u32 %v1146, 16
        %v1247 = vor.u32 %v1245, %v1243
        %v1249 = vshll.u32 %v1147, 16
        %v1251 = vrot.slane %v1249, 1
        %v1252 = vsel %vm1152, %v1247, %v1251
        %v1253 = vshrl.u32 %v1147, 16
        %v1255 = vor.u32 %v1253, %v1251
        %v1257 = vshll.u32 %v1148, 16
        %v1259 = vrot.slane %v1257, 1
        %v1260 = vsel %vm1152, %v1255, %v1259
        %v1261 = vshrl.u32 %v1148, 16
        %v1263 = vor.u32 %v1261, %v1259
        %v1265 = vshll.u32 %v1149, 16
        %v1267 = vrot.slane %v1265, 1
        %v1268 = vsel %vm1152, %v1263, %v1267
        %v1269 = vshrl.u32 %v1149, 16
        %v1271 = vor.u32 %v1269, %v1267
        %v1273 = vshll.u32 %v1150, 16
        %v1275 = vrot.slane %v1273, 1
        %v1276 = vsel %vm1152, %v1271, %v1275
        %v1277 = vshrl.u32 %v1150, 16
        %v1279 = vor.u32 %v1277, %v1275
        %v1281 = vshll.u32 %v1151, 16
        %v1283 = vrot.slane %v1281, 1
        %v1284 = vsel %vm1152, %v1279, %v1283
        %vm1285 = vcmask 31744
        %v1287 = vsel %vm1285, %v1164, 0
        %v1290 = vsel %vm1285, %v1172, 0
        %v1293 = vsel %vm1285, %v1180, 0
        %v1296 = vsel %vm1285, %v1188, 0
        %v1299 = vsel %vm1285, %v1196, 0
        %v1302 = vsel %vm1285, %v1204, 0
        %v1305 = vsel %vm1285, %v1212, 0
        %v1308 = vsel %vm1285, %v1220, 0
        %v1311 = vsel %vm1285, %v1228, 0
        %v1314 = vsel %vm1285, %v1236, 0
        %v1317 = vsel %vm1285, %v1244, 0
        %v1320 = vsel %vm1285, %v1252, 0
        %v1323 = vsel %vm1285, %v1260, 0
        %v1326 = vsel %vm1285, %v1268, 0
        %v1329 = vsel %vm1285, %v1276, 0
        %v1332 = vsel %vm1285, %v1284, 0
        %vm1334 = vcmask 1041408
        %v1336 = vsel %vm1334, %v1068, 0
        %1338 = vmatprep.subr.bf16.mxu0 0
        %1339 = vmatpush1.bf16.msra.mxu0 %v1336
        %1340 = vmatprep.subr.bf16.mxu0 0
        %1341 = vmatpush1.bf16.msra.mxu0 0
        %1342 = vmatprep.subr.bf16.mxu0 0
        %1343 = vmatpush1.bf16.msra.mxu0 0
        %1344 = vmatprep.subr.bf16.mxu0 0
        %1345 = vmatpush1.bf16.msra.mxu0 0
        %1346 = vmatprep.subr.bf16.mxu0 0
        %1347 = vmatpush1.bf16.msra.mxu0 0
        %1348 = vmatprep.subr.bf16.mxu0 0
        %1349 = vmatpush1.bf16.msra.mxu0 0
        %1350 = vmatprep.subr.bf16.mxu0 0
        %1351 = vmatpush1.bf16.msra.mxu0 0
        %1352 = vmatprep.subr.bf16.mxu0 0
        %1353 = vmatpush1.bf16.msra.mxu0 0
        %1354 = vmatprep.subr.bf16.mxu0 0
        %1355 = vmatpush1.bf16.msra.mxu0 0
        %1356 = vmatprep.subr.bf16.mxu0 0
        %1357 = vmatpush1.bf16.msra.mxu0 0
        %1358 = vmatprep.subr.bf16.mxu0 0
        %1359 = vmatpush1.bf16.msra.mxu0 0
        %1360 = vmatprep.subr.bf16.mxu0 0
        %1361 = vmatpush1.bf16.msra.mxu0 0
        %1362 = vmatprep.subr.bf16.mxu0 0
        %1363 = vmatpush1.bf16.msra.mxu0 0
        %1364 = vmatprep.subr.bf16.mxu0 0
        %1365 = vmatpush1.bf16.msra.mxu0 0
        %1366 = vmatprep.subr.bf16.mxu0 0
        %1367 = vmatpush1.bf16.msra.mxu0 0
        %1368 = vmatprep.subr.bf16.mxu0 0
        %1369 = vmatpush1.bf16.msra.mxu0 0
        %1370 = vmatprep.mubr.bf16.mxu0 0
        %1371 = vmatmul.mubr.bf16.gmra.mrb[0].mxu0 %v1287
        %v1372 = vpop.f32.mrb[0].mxu0
        %v1373 = vadd.f32 0.0, %v1372
        %v1374 = vpop.f32.mrb[0].mxu0
        %v1375 = vpop.f32.mrb[0].mxu0
        %v1376 = vadd.f32 0.0, %v1375
        %v1377 = vpop.f32.mrb[0].mxu0
        %1378 = vmatprep.mubr.bf16.mxu0 0
        %1379 = vmatmul.mubr.bf16.gmra.mrb[0].mxu0 %v1290
        %v1380 = vpop.f32.mrb[0].mxu0
        %v1381 = vadd.f32 0.0, %v1380
        %v1382 = vpop.f32.mrb[0].mxu0
        %v1383 = vpop.f32.mrb[0].mxu0
        %v1384 = vadd.f32 0.0, %v1383
        %v1385 = vpop.f32.mrb[0].mxu0
        %1386 = vmatprep.mubr.bf16.mxu0 0
        %1387 = vmatmul.mubr.bf16.gmra.mrb[0].mxu0 %v1293
        %v1388 = vpop.f32.mrb[0].mxu0
        %v1389 = vadd.f32 0.0, %v1388
        %v1390 = vpop.f32.mrb[0].mxu0
        %v1391 = vpop.f32.mrb[0].mxu0
        %v1392 = vadd.f32 0.0, %v1391
        %v1393 = vpop.f32.mrb[0].mxu0
        %1394 = vmatprep.mubr.bf16.mxu0 0
        %1395 = vmatmul.mubr.bf16.gmra.mrb[0].mxu0 %v1296
        %v1396 = vpop.f32.mrb[0].mxu0
        %v1397 = vadd.f32 0.0, %v1396
        %v1398 = vpop.f32.mrb[0].mxu0
        %v1399 = vpop.f32.mrb[0].mxu0
        %v1400 = vadd.f32 0.0, %v1399
        %v1401 = vpop.f32.mrb[0].mxu0
        %1402 = vmatprep.mubr.bf16.mxu0 0
        %1403 = vmatmul.mubr.bf16.gmra.mrb[0].mxu0 %v1299
        %v1404 = vpop.f32.mrb[0].mxu0
        %v1405 = vadd.f32 0.0, %v1404
        %v1406 = vpop.f32.mrb[0].mxu0
        %v1407 = vpop.f32.mrb[0].mxu0
        %v1408 = vadd.f32 0.0, %v1407
        %v1409 = vpop.f32.mrb[0].mxu0
        %1410 = vmatprep.mubr.bf16.mxu0 0
        %1411 = vmatmul.mubr.bf16.gmra.mrb[0].mxu0 %v1302
        %v1412 = vpop.f32.mrb[0].mxu0
        %v1413 = vadd.f32 0.0, %v1412
        %v1414 = vpop.f32.mrb[0].mxu0
        %v1415 = vpop.f32.mrb[0].mxu0
        %v1416 = vadd.f32 0.0, %v1415
        %v1417 = vpop.f32.mrb[0].mxu0
        %1418 = vmatprep.mubr.bf16.mxu0 0
        %1419 = vmatmul.mubr.bf16.gmra.mrb[0].mxu0 %v1305
        %v1420 = vpop.f32.mrb[0].mxu0
        %v1421 = vadd.f32 0.0, %v1420
        %v1422 = vpop.f32.mrb[0].mxu0
        %v1423 = vpop.f32.mrb[0].mxu0
        %v1424 = vadd.f32 0.0, %v1423
        %v1425 = vpop.f32.mrb[0].mxu0
        %1426 = vmatprep.mubr.bf16.mxu0 0
        %1427 = vmatmul.mubr.bf16.gmra.mrb[0].mxu0 %v1308
        %v1428 = vpop.f32.mrb[0].mxu0
        %v1429 = vadd.f32 0.0, %v1428
        %v1430 = vpop.f32.mrb[0].mxu0
        %v1431 = vpop.f32.mrb[0].mxu0
        %v1432 = vadd.f32 0.0, %v1431
        %v1433 = vpop.f32.mrb[0].mxu0
        %1434 = vmatprep.mubr.bf16.mxu0 0
        %1435 = vmatmul.mubr.bf16.gmra.mrb[0].mxu0 %v1311
        %v1436 = vpop.f32.mrb[0].mxu0
        %v1437 = vadd.f32 0.0, %v1436
        %v1438 = vpop.f32.mrb[0].mxu0
        %v1439 = vpop.f32.mrb[0].mxu0
        %v1440 = vadd.f32 0.0, %v1439
        %v1441 = vpop.f32.mrb[0].mxu0
        %1442 = vmatprep.mubr.bf16.mxu0 0
        %1443 = vmatmul.mubr.bf16.gmra.mrb[0].mxu0 %v1314
        %v1444 = vpop.f32.mrb[0].mxu0
        %v1445 = vadd.f32 0.0, %v1444
        %v1446 = vpop.f32.mrb[0].mxu0
        %v1447 = vpop.f32.mrb[0].mxu0
        %v1448 = vadd.f32 0.0, %v1447
        %v1449 = vpop.f32.mrb[0].mxu0
        %1450 = vmatprep.mubr.bf16.mxu0 0
        %1451 = vmatmul.mubr.bf16.gmra.mrb[0].mxu0 %v1317
        %v1452 = vpop.f32.mrb[0].mxu0
        %v1453 = vadd.f32 0.0, %v1452
        %v1454 = vpop.f32.mrb[0].mxu0
        %v1455 = vpop.f32.mrb[0].mxu0
        %v1456 = vadd.f32 0.0, %v1455
        %v1457 = vpop.f32.mrb[0].mxu0
        %1458 = vmatprep.mubr.bf16.mxu0 0
        %1459 = vmatmul.mubr.bf16.gmra.mrb[0].mxu0 %v1320
        %v1460 = vpop.f32.mrb[0].mxu0
        %v1461 = vadd.f32 0.0, %v1460
        %v1462 = vpop.f32.mrb[0].mxu0
        %v1463 = vpop.f32.mrb[0].mxu0
        %v1464 = vadd.f32 0.0, %v1463
        %v1465 = vpop.f32.mrb[0].mxu0
        %1466 = vmatprep.mubr.bf16.mxu0 0
        %1467 = vmatmul.mubr.bf16.gmra.mrb[0].mxu0 %v1323
        %v1468 = vpop.f32.mrb[0].mxu0
        %v1469 = vadd.f32 0.0, %v1468
        %v1470 = vpop.f32.mrb[0].mxu0
        %v1471 = vpop.f32.mrb[0].mxu0
        %v1472 = vadd.f32 0.0, %v1471
        %v1473 = vpop.f32.mrb[0].mxu0
        %1474 = vmatprep.mubr.bf16.mxu0 0
        %1475 = vmatmul.mubr.bf16.gmra.mrb[0].mxu0 %v1326
        %v1476 = vpop.f32.mrb[0].mxu0
        %v1477 = vadd.f32 0.0, %v1476
        %v1478 = vpop.f32.mrb[0].mxu0
        %v1479 = vpop.f32.mrb[0].mxu0
        %v1480 = vadd.f32 0.0, %v1479
        %v1481 = vpop.f32.mrb[0].mxu0
        %1482 = vmatprep.mubr.bf16.mxu0 0
        %1483 = vmatmul.mubr.bf16.gmra.mrb[0].mxu0 %v1329
        %v1484 = vpop.f32.mrb[0].mxu0
        %v1485 = vadd.f32 0.0, %v1484
        %v1486 = vpop.f32.mrb[0].mxu0
        %v1487 = vpop.f32.mrb[0].mxu0
        %v1488 = vadd.f32 0.0, %v1487
        %v1489 = vpop.f32.mrb[0].mxu0
        %1490 = vmatprep.mubr.bf16.mxu0 0
        %1491 = vmatmul.mubr.bf16.gmra.mrb[0].mxu0 %v1332
        %v1492 = vpop.f32.mrb[0].mxu0
        %v1493 = vadd.f32 0.0, %v1492
        %v1494 = vpop.f32.mrb[0].mxu0
        %v1495 = vpop.f32.mrb[0].mxu0
        %v1496 = vadd.f32 0.0, %v1495
        %v1497 = vpop.f32.mrb[0].mxu0
        %1498 = vdwg.mxu0
        %v1531 = vunpack.c.l.b16 %v1033
        %v1532 = vunpack.c.l.b16 %v1034
        %v1533 = vunpack.c.l.b16 %v1035
        %v1534 = vunpack.c.l.b16 %v1036
        %v1535 = vunpack.c.l.b16 %v1037
        %v1536 = vunpack.c.l.b16 %v1038
        %v1537 = vunpack.c.l.b16 %v1039
        %v1538 = vunpack.c.l.b16 %v1040
        %v1539 = vunpack.c.l.b16 %v1041
        %v1540 = vunpack.c.l.b16 %v1042
        %v1541 = vunpack.c.l.b16 %v1043
        %v1542 = vunpack.c.l.b16 %v1044
        %v1543 = vunpack.c.l.b16 %v1045
        %v1544 = vunpack.c.l.b16 %v1046
        %v1545 = vunpack.c.l.b16 %v1047
        %v1546 = vunpack.c.l.b16 %v1048
        %v1547 = vunpack.c.l.b16 %v1049
        %v1548 = vunpack.c.l.b16 %v1050
        %v1549 = vunpack.c.l.b16 %v1051
        %v1550 = vunpack.c.l.b16 %v1052
        %v1551 = vunpack.c.l.b16 %v1053
        %v1552 = vunpack.c.l.b16 %v1054
        %v1553 = vunpack.c.l.b16 %v1055
        %v1554 = vunpack.c.l.b16 %v1056
        %v1555 = vunpack.c.l.b16 %v1057
        %v1556 = vunpack.c.l.b16 %v1058
        %v1557 = vunpack.c.l.b16 %v1059
        %v1558 = vunpack.c.l.b16 %v1060
        %v1559 = vunpack.c.l.b16 %v1061
        %v1560 = vunpack.c.l.b16 %v1062
        %v1561 = vunpack.c.l.b16 %v1063
        %v1562 = vunpack.c.l.b16 %v1064
        %v1563 = vpack.c.b16 %v1532, %v1531
        %v1564 = vpack.c.b16 %v1534, %v1533
        %v1565 = vpack.c.b16 %v1536, %v1535
        %v1566 = vpack.c.b16 %v1538, %v1537
        %v1567 = vpack.c.b16 %v1540, %v1539
        %v1568 = vpack.c.b16 %v1542, %v1541
        %v1569 = vpack.c.b16 %v1544, %v1543
        %v1570 = vpack.c.b16 %v1546, %v1545
        %v1571 = vpack.c.b16 %v1548, %v1547
        %v1572 = vpack.c.b16 %v1550, %v1549
        %v1573 = vpack.c.b16 %v1552, %v1551
        %v1574 = vpack.c.b16 %v1554, %v1553
        %v1575 = vpack.c.b16 %v1556, %v1555
        %v1576 = vpack.c.b16 %v1558, %v1557
        %v1577 = vpack.c.b16 %v1560, %v1559
        %v1578 = vpack.c.b16 %v1562, %v1561
        %v1580 = vsel %vm1285, %v1563, 0
        %v1583 = vsel %vm1285, %v1564, 0
        %v1586 = vsel %vm1285, %v1565, 0
        %v1589 = vsel %vm1285, %v1566, 0
        %v1592 = vsel %vm1285, %v1567, 0
        %v1595 = vsel %vm1285, %v1568, 0
        %v1598 = vsel %vm1285, %v1569, 0
        %v1601 = vsel %vm1285, %v1570, 0
        %v1604 = vsel %vm1285, %v1571, 0
        %v1607 = vsel %vm1285, %v1572, 0
        %v1610 = vsel %vm1285, %v1573, 0
        %v1613 = vsel %vm1285, %v1574, 0
        %v1616 = vsel %vm1285, %v1575, 0
        %v1619 = vsel %vm1285, %v1576, 0
        %v1622 = vsel %vm1285, %v1577, 0
        %v1625 = vsel %vm1285, %v1578, 0
        %v1628 = vsel %vm1334, %v1065, 0
        %1630 = vmatprep.subr.bf16.mxu0 0
        %1631 = vmatpush1.bf16.msra.mxu0 %v1628
        %1632 = vmatprep.subr.bf16.mxu0 0
        %1633 = vmatpush1.bf16.msra.mxu0 0
        %1634 = vmatprep.subr.bf16.mxu0 0
        %1635 = vmatpush1.bf16.msra.mxu0 0
        %1636 = vmatprep.subr.bf16.mxu0 0
        %1637 = vmatpush1.bf16.msra.mxu0 0
        %1638 = vmatprep.subr.bf16.mxu0 0
        %1639 = vmatpush1.bf16.msra.mxu0 0
        %1640 = vmatprep.subr.bf16.mxu0 0
        %1641 = vmatpush1.bf16.msra.mxu0 0
        %1642 = vmatprep.subr.bf16.mxu0 0
        %1643 = vmatpush1.bf16.msra.mxu0 0
        %1644 = vmatprep.subr.bf16.mxu0 0
        %1645 = vmatpush1.bf16.msra.mxu0 0
        %1646 = vmatprep.subr.bf16.mxu0 0
        %1647 = vmatpush1.bf16.msra.mxu0 0
        %1648 = vmatprep.subr.bf16.mxu0 0
        %1649 = vmatpush1.bf16.msra.mxu0 0
        %1650 = vmatprep.subr.bf16.mxu0 0
        %1651 = vmatpush1.bf16.msra.mxu0 0
        %1652 = vmatprep.subr.bf16.mxu0 0
        %1653 = vmatpush1.bf16.msra.mxu0 0
        %1654 = vmatprep.subr.bf16.mxu0 0
        %1655 = vmatpush1.bf16.msra.mxu0 0
        %1656 = vmatprep.subr.bf16.mxu0 0
        %1657 = vmatpush1.bf16.msra.mxu0 0
        %1658 = vmatprep.subr.bf16.mxu0 0
        %1659 = vmatpush1.bf16.msra.mxu0 0
        %1660 = vmatprep.subr.bf16.mxu0 0
        %1661 = vmatpush1.bf16.msra.mxu0 0
        %1662 = vmatprep.mubr.bf16.mxu0 0
        %1663 = vmatmul.mubr.bf16.gmra.mrb[0].mxu0 %v1580
        %v1664 = vpop.f32.mrb[0].mxu0
        %v1665 = vadd.f32 %v1373, %v1664
        %v1666 = vpop.f32.mrb[0].mxu0
        %v1667 = vpop.f32.mrb[0].mxu0
        %v1668 = vadd.f32 %v1376, %v1667
        %v1669 = vpop.f32.mrb[0].mxu0
        %1670 = vmatprep.mubr.bf16.mxu0 0
        %1671 = vmatmul.mubr.bf16.gmra.mrb[0].mxu0 %v1583
        %v1672 = vpop.f32.mrb[0].mxu0
        %v1673 = vadd.f32 %v1381, %v1672
        %v1674 = vpop.f32.mrb[0].mxu0
        %v1675 = vpop.f32.mrb[0].mxu0
        %v1676 = vadd.f32 %v1384, %v1675
        %v1677 = vpop.f32.mrb[0].mxu0
        %1678 = vmatprep.mubr.bf16.mxu0 0
        %1679 = vmatmul.mubr.bf16.gmra.mrb[0].mxu0 %v1586
        %v1680 = vpop.f32.mrb[0].mxu0
        %v1681 = vadd.f32 %v1389, %v1680
        %v1682 = vpop.f32.mrb[0].mxu0
        %v1683 = vpop.f32.mrb[0].mxu0
        %v1684 = vadd.f32 %v1392, %v1683
        %v1685 = vpop.f32.mrb[0].mxu0
        %1686 = vmatprep.mubr.bf16.mxu0 0
        %1687 = vmatmul.mubr.bf16.gmra.mrb[0].mxu0 %v1589
        %v1688 = vpop.f32.mrb[0].mxu0
        %v1689 = vadd.f32 %v1397, %v1688
        %v1690 = vpop.f32.mrb[0].mxu0
        %v1691 = vpop.f32.mrb[0].mxu0
        %v1692 = vadd.f32 %v1400, %v1691
        %v1693 = vpop.f32.mrb[0].mxu0
        %1694 = vmatprep.mubr.bf16.mxu0 0
        %1695 = vmatmul.mubr.bf16.gmra.mrb[0].mxu0 %v1592
        %v1696 = vpop.f32.mrb[0].mxu0
        %v1697 = vadd.f32 %v1405, %v1696
        %v1698 = vpop.f32.mrb[0].mxu0
        %v1699 = vpop.f32.mrb[0].mxu0
        %v1700 = vadd.f32 %v1408, %v1699
        %v1701 = vpop.f32.mrb[0].mxu0
        %1702 = vmatprep.mubr.bf16.mxu0 0
        %1703 = vmatmul.mubr.bf16.gmra.mrb[0].mxu0 %v1595
        %v1704 = vpop.f32.mrb[0].mxu0
        %v1705 = vadd.f32 %v1413, %v1704
        %v1706 = vpop.f32.mrb[0].mxu0
        %v1707 = vpop.f32.mrb[0].mxu0
        %v1708 = vadd.f32 %v1416, %v1707
        %v1709 = vpop.f32.mrb[0].mxu0
        %1710 = vmatprep.mubr.bf16.mxu0 0
        %1711 = vmatmul.mubr.bf16.gmra.mrb[0].mxu0 %v1598
        %v1712 = vpop.f32.mrb[0].mxu0
        %v1713 = vadd.f32 %v1421, %v1712
        %v1714 = vpop.f32.mrb[0].mxu0
        %v1715 = vpop.f32.mrb[0].mxu0
        %v1716 = vadd.f32 %v1424, %v1715
        %v1717 = vpop.f32.mrb[0].mxu0
        %1718 = vmatprep.mubr.bf16.mxu0 0
        %1719 = vmatmul.mubr.bf16.gmra.mrb[0].mxu0 %v1601
        %v1720 = vpop.f32.mrb[0].mxu0
        %v1721 = vadd.f32 %v1429, %v1720
        %v1722 = vpop.f32.mrb[0].mxu0
        %v1723 = vpop.f32.mrb[0].mxu0
        %v1724 = vadd.f32 %v1432, %v1723
        %v1725 = vpop.f32.mrb[0].mxu0
        %1726 = vmatprep.mubr.bf16.mxu0 0
        %1727 = vmatmul.mubr.bf16.gmra.mrb[0].mxu0 %v1604
        %v1728 = vpop.f32.mrb[0].mxu0
        %v1729 = vadd.f32 %v1437, %v1728
        %v1730 = vpop.f32.mrb[0].mxu0
        %v1731 = vpop.f32.mrb[0].mxu0
        %v1732 = vadd.f32 %v1440, %v1731
        %v1733 = vpop.f32.mrb[0].mxu0
        %1734 = vmatprep.mubr.bf16.mxu0 0
        %1735 = vmatmul.mubr.bf16.gmra.mrb[0].mxu0 %v1607
        %v1736 = vpop.f32.mrb[0].mxu0
        %v1737 = vadd.f32 %v1445, %v1736
        %v1738 = vpop.f32.mrb[0].mxu0
        %v1739 = vpop.f32.mrb[0].mxu0
        %v1740 = vadd.f32 %v1448, %v1739
        %v1741 = vpop.f32.mrb[0].mxu0
        %1742 = vmatprep.mubr.bf16.mxu0 0
        %1743 = vmatmul.mubr.bf16.gmra.mrb[0].mxu0 %v1610
        %v1744 = vpop.f32.mrb[0].mxu0
        %v1745 = vadd.f32 %v1453, %v1744
        %v1746 = vpop.f32.mrb[0].mxu0
        %v1747 = vpop.f32.mrb[0].mxu0
        %v1748 = vadd.f32 %v1456, %v1747
        %v1749 = vpop.f32.mrb[0].mxu0
        %1750 = vmatprep.mubr.bf16.mxu0 0
        %1751 = vmatmul.mubr.bf16.gmra.mrb[0].mxu0 %v1613
        %v1752 = vpop.f32.mrb[0].mxu0
        %v1753 = vadd.f32 %v1461, %v1752
        %v1754 = vpop.f32.mrb[0].mxu0
        %v1755 = vpop.f32.mrb[0].mxu0
        %v1756 = vadd.f32 %v1464, %v1755
        %v1757 = vpop.f32.mrb[0].mxu0
        %1758 = vmatprep.mubr.bf16.mxu0 0
        %1759 = vmatmul.mubr.bf16.gmra.mrb[0].mxu0 %v1616
        %v1760 = vpop.f32.mrb[0].mxu0
        %v1761 = vadd.f32 %v1469, %v1760
        %v1762 = vpop.f32.mrb[0].mxu0
        %v1763 = vpop.f32.mrb[0].mxu0
        %v1764 = vadd.f32 %v1472, %v1763
        %v1765 = vpop.f32.mrb[0].mxu0
        %1766 = vmatprep.mubr.bf16.mxu0 0
        %1767 = vmatmul.mubr.bf16.gmra.mrb[0].mxu0 %v1619
        %v1768 = vpop.f32.mrb[0].mxu0
        %v1769 = vadd.f32 %v1477, %v1768
        %v1770 = vpop.f32.mrb[0].mxu0
        %v1771 = vpop.f32.mrb[0].mxu0
        %v1772 = vadd.f32 %v1480, %v1771
        %v1773 = vpop.f32.mrb[0].mxu0
        %1774 = vmatprep.mubr.bf16.mxu0 0
        %1775 = vmatmul.mubr.bf16.gmra.mrb[0].mxu0 %v1622
        %v1776 = vpop.f32.mrb[0].mxu0
        %v1777 = vadd.f32 %v1485, %v1776
        %v1778 = vpop.f32.mrb[0].mxu0
        %v1779 = vpop.f32.mrb[0].mxu0
        %v1780 = vadd.f32 %v1488, %v1779
        %v1781 = vpop.f32.mrb[0].mxu0
        %1782 = vmatprep.mubr.bf16.mxu0 0
        %1783 = vmatmul.mubr.bf16.gmra.mrb[0].mxu0 %v1625
        %v1784 = vpop.f32.mrb[0].mxu0
        %v1785 = vadd.f32 %v1493, %v1784
        %v1786 = vpop.f32.mrb[0].mxu0
        %v1787 = vpop.f32.mrb[0].mxu0
        %v1788 = vadd.f32 %v1496, %v1787
        %v1789 = vpop.f32.mrb[0].mxu0
        %1790 = vdwg.mxu0
        %v1791 = vld [vmem:[%s420] sm:$0xe]
        %v1792 = vsel %vm873, 1, 0
        %v1793 = vsel %vm874, 1, 0
        %v1794 = vsel %vm875, 1, 0
        %v1795 = vsel %vm876, 1, 0
        %v1796 = vsel %vm877, 1, 0
        %v1797 = vsel %vm878, 1, 0
        %v1798 = vsel %vm879, 1, 0
        %v1799 = vsel %vm880, 1, 0
        %v1800 = vsel %vm881, 1, 0
        %v1801 = vsel %vm882, 1, 0
        %v1802 = vsel %vm883, 1, 0
        %v1803 = vsel %vm884, 1, 0
        %v1804 = vsel %vm885, 1, 0
        %v1805 = vsel %vm886, 1, 0
        %v1806 = vsel %vm887, 1, 0
        %v1807 = vsel %vm888, 1, 0
        %v1808 = vsel %vm889, 1, 0
        %v1809 = vsel %vm890, 1, 0
        %v1810 = vsel %vm891, 1, 0
        %v1811 = vsel %vm892, 1, 0
        %v1812 = vsel %vm893, 1, 0
        %v1813 = vsel %vm894, 1, 0
        %v1814 = vsel %vm895, 1, 0
        %v1815 = vsel %vm896, 1, 0
        %v1816 = vsel %vm897, 1, 0
        %v1817 = vsel %vm898, 1, 0
        %v1818 = vsel %vm899, 1, 0
        %v1819 = vsel %vm900, 1, 0
        %v1820 = vsel %vm901, 1, 0
        %v1821 = vsel %vm902, 1, 0
        %v1822 = vsel %vm903, 1, 0
        %v1823 = vsel %vm904, 1, 0
        %vm1824 = vcmp.eq.s32.totalorder %v1792, 1
        %vm1825 = vcmp.eq.s32.totalorder %v1793, 1
        %vm1826 = vcmp.eq.s32.totalorder %v1794, 1
        %vm1827 = vcmp.eq.s32.totalorder %v1795, 1
        %vm1828 = vcmp.eq.s32.totalorder %v1796, 1
        %vm1829 = vcmp.eq.s32.totalorder %v1797, 1
        %vm1830 = vcmp.eq.s32.totalorder %v1798, 1
        %vm1831 = vcmp.eq.s32.totalorder %v1799, 1
        %vm1832 = vcmp.eq.s32.totalorder %v1800, 1
        %vm1833 = vcmp.eq.s32.totalorder %v1801, 1
        %vm1834 = vcmp.eq.s32.totalorder %v1802, 1
        %vm1835 = vcmp.eq.s32.totalorder %v1803, 1
        %vm1836 = vcmp.eq.s32.totalorder %v1804, 1
        %vm1837 = vcmp.eq.s32.totalorder %v1805, 1
        %vm1838 = vcmp.eq.s32.totalorder %v1806, 1
        %vm1839 = vcmp.eq.s32.totalorder %v1807, 1
        %vm1840 = vcmp.eq.s32.totalorder %v1808, 1
        %vm1841 = vcmp.eq.s32.totalorder %v1809, 1
        %vm1842 = vcmp.eq.s32.totalorder %v1810, 1
        %vm1843 = vcmp.eq.s32.totalorder %v1811, 1
        %vm1844 = vcmp.eq.s32.totalorder %v1812, 1
        %vm1845 = vcmp.eq.s32.totalorder %v1813, 1
        %vm1846 = vcmp.eq.s32.totalorder %v1814, 1
        %vm1847 = vcmp.eq.s32.totalorder %v1815, 1
        %vm1848 = vcmp.eq.s32.totalorder %v1816, 1
        %vm1849 = vcmp.eq.s32.totalorder %v1817, 1
        %vm1850 = vcmp.eq.s32.totalorder %v1818, 1
        %vm1851 = vcmp.eq.s32.totalorder %v1819, 1
        %vm1852 = vcmp.eq.s32.totalorder %v1820, 1
        %vm1853 = vcmp.eq.s32.totalorder %v1821, 1
        %vm1854 = vcmp.eq.s32.totalorder %v1822, 1
        %vm1855 = vcmp.eq.s32.totalorder %v1823, 1
        %vm1856 = vmpackc.low %vm1824, %vm1824
        %vm1857 = vmpackc.low %vm1825, %vm1825
        %vm1858 = vmpackc.low %vm1826, %vm1826
        %vm1859 = vmpackc.low %vm1827, %vm1827
        %vm1860 = vmpackc.low %vm1828, %vm1828
        %vm1861 = vmpackc.low %vm1829, %vm1829
        %vm1862 = vmpackc.low %vm1830, %vm1830
        %vm1863 = vmpackc.low %vm1831, %vm1831
        %vm1864 = vmpackc.low %vm1832, %vm1832
        %vm1865 = vmpackc.low %vm1833, %vm1833
        %vm1866 = vmpackc.low %vm1834, %vm1834
        %vm1867 = vmpackc.low %vm1835, %vm1835
        %vm1868 = vmpackc.low %vm1836, %vm1836
        %vm1869 = vmpackc.low %vm1837, %vm1837
        %vm1870 = vmpackc.low %vm1838, %vm1838
        %vm1871 = vmpackc.low %vm1839, %vm1839
        %vm1872 = vmpackc.low %vm1840, %vm1840
        %vm1873 = vmpackc.low %vm1841, %vm1841
        %vm1874 = vmpackc.low %vm1842, %vm1842
        %vm1875 = vmpackc.low %vm1843, %vm1843
        %vm1876 = vmpackc.low %vm1844, %vm1844
        %vm1877 = vmpackc.low %vm1845, %vm1845
        %vm1878 = vmpackc.low %vm1846, %vm1846
        %vm1879 = vmpackc.low %vm1847, %vm1847
        %vm1880 = vmpackc.low %vm1848, %vm1848
        %vm1881 = vmpackc.low %vm1849, %vm1849
        %vm1882 = vmpackc.low %vm1850, %vm1850
        %vm1883 = vmpackc.low %vm1851, %vm1851
        %vm1884 = vmpackc.low %vm1852, %vm1852
        %vm1885 = vmpackc.low %vm1853, %vm1853
        %vm1886 = vmpackc.low %vm1854, %vm1854
        %vm1887 = vmpackc.low %vm1855, %vm1855
        %v1888 = vsel %vm1856, 65537, 0
        %v1889 = vsel %vm1857, 65537, 0
        %v1890 = vsel %vm1858, 65537, 0
        %v1891 = vsel %vm1859, 65537, 0
        %v1892 = vsel %vm1860, 65537, 0
        %v1893 = vsel %vm1861, 65537, 0
        %v1894 = vsel %vm1862, 65537, 0
        %v1895 = vsel %vm1863, 65537, 0
        %v1896 = vsel %vm1864, 65537, 0
        %v1897 = vsel %vm1865, 65537, 0
        %v1898 = vsel %vm1866, 65537, 0
        %v1899 = vsel %vm1867, 65537, 0
        %v1900 = vsel %vm1868, 65537, 0
        %v1901 = vsel %vm1869, 65537, 0
        %v1902 = vsel %vm1870, 65537, 0
        %v1903 = vsel %vm1871, 65537, 0
        %v1904 = vsel %vm1872, 65537, 0
        %v1905 = vsel %vm1873, 65537, 0
        %v1906 = vsel %vm1874, 65537, 0
        %v1907 = vsel %vm1875, 65537, 0
        %v1908 = vsel %vm1876, 65537, 0
        %v1909 = vsel %vm1877, 65537, 0
        %v1910 = vsel %vm1878, 65537, 0
        %v1911 = vsel %vm1879, 65537, 0
        %v1912 = vsel %vm1880, 65537, 0
        %v1913 = vsel %vm1881, 65537, 0
        %v1914 = vsel %vm1882, 65537, 0
        %v1915 = vsel %vm1883, 65537, 0
        %v1916 = vsel %vm1884, 65537, 0
        %v1917 = vsel %vm1885, 65537, 0
        %v1918 = vsel %vm1886, 65537, 0
        %v1919 = vsel %vm1887, 65537, 0
        %vm1920 = vcmask 1040384
        %vm1921 = vcmask 1044484
        %vm1922 = vmor %vm1920, %vm1921
        %v1923 = vrot.slane %v1888, 7
        %v1924 = vrot.slane %v1923, 4
        %v1925 = vrot.slane %v1889, 7
        %v1926 = vsel %vm1922, %v1924, %v1925
        %v1927 = vrot.slane %v1925, 4
        %v1928 = vrot.slane %v1890, 7
        %v1929 = vsel %vm1922, %v1927, %v1928
        %v1930 = vrot.slane %v1928, 4
        %v1931 = vrot.slane %v1891, 7
        %v1932 = vsel %vm1922, %v1930, %v1931
        %v1933 = vrot.slane %v1931, 4
        %v1934 = vrot.slane %v1892, 7
        %v1935 = vsel %vm1922, %v1933, %v1934
        %v1936 = vrot.slane %v1934, 4
        %v1937 = vrot.slane %v1893, 7
        %v1938 = vsel %vm1922, %v1936, %v1937
        %v1939 = vrot.slane %v1937, 4
        %v1940 = vrot.slane %v1894, 7
        %v1941 = vsel %vm1922, %v1939, %v1940
        %v1942 = vrot.slane %v1940, 4
        %v1943 = vrot.slane %v1895, 7
        %v1944 = vsel %vm1922, %v1942, %v1943
        %v1945 = vrot.slane %v1943, 4
        %v1946 = vrot.slane %v1896, 7
        %v1947 = vsel %vm1922, %v1945, %v1946
        %v1948 = vrot.slane %v1946, 4
        %v1949 = vrot.slane %v1897, 7
        %v1950 = vsel %vm1922, %v1948, %v1949
        %v1951 = vrot.slane %v1949, 4
        %v1952 = vrot.slane %v1898, 7
        %v1953 = vsel %vm1922, %v1951, %v1952
        %v1954 = vrot.slane %v1952, 4
        %v1955 = vrot.slane %v1899, 7
        %v1956 = vsel %vm1922, %v1954, %v1955
        %v1957 = vrot.slane %v1955, 4
        %v1958 = vrot.slane %v1900, 7
        %v1959 = vsel %vm1922, %v1957, %v1958
        %v1960 = vrot.slane %v1958, 4
        %v1961 = vrot.slane %v1901, 7
        %v1962 = vsel %vm1922, %v1960, %v1961
        %v1963 = vrot.slane %v1961, 4
        %v1964 = vrot.slane %v1902, 7
        %v1965 = vsel %vm1922, %v1963, %v1964
        %v1966 = vrot.slane %v1964, 4
        %v1967 = vrot.slane %v1903, 7
        %v1968 = vsel %vm1922, %v1966, %v1967
        %v1969 = vrot.slane %v1967, 4
        %v1970 = vrot.slane %v1904, 7
        %v1971 = vsel %vm1922, %v1969, %v1970
        %v1972 = vrot.slane %v1970, 4
        %v1973 = vrot.slane %v1905, 7
        %v1974 = vsel %vm1922, %v1972, %v1973
        %v1975 = vrot.slane %v1973, 4
        %v1976 = vrot.slane %v1906, 7
        %v1977 = vsel %vm1922, %v1975, %v1976
        %v1978 = vrot.slane %v1976, 4
        %v1979 = vrot.slane %v1907, 7
        %v1980 = vsel %vm1922, %v1978, %v1979
        %v1981 = vrot.slane %v1979, 4
        %v1982 = vrot.slane %v1908, 7
        %v1983 = vsel %vm1922, %v1981, %v1982
        %v1984 = vrot.slane %v1982, 4
        %v1985 = vrot.slane %v1909, 7
        %v1986 = vsel %vm1922, %v1984, %v1985
        %v1987 = vrot.slane %v1985, 4
        %v1988 = vrot.slane %v1910, 7
        %v1989 = vsel %vm1922, %v1987, %v1988
        %v1990 = vrot.slane %v1988, 4
        %v1991 = vrot.slane %v1911, 7
        %v1992 = vsel %vm1922, %v1990, %v1991
        %v1993 = vrot.slane %v1991, 4
        %v1994 = vrot.slane %v1912, 7
        %v1995 = vsel %vm1922, %v1993, %v1994
        %v1996 = vrot.slane %v1994, 4
        %v1997 = vrot.slane %v1913, 7
        %v1998 = vsel %vm1922, %v1996, %v1997
        %v1999 = vrot.slane %v1997, 4
        %v2000 = vrot.slane %v1914, 7
        %v2001 = vsel %vm1922, %v1999, %v2000
        %v2002 = vrot.slane %v2000, 4
        %v2003 = vrot.slane %v1915, 7
        %v2004 = vsel %vm1922, %v2002, %v2003
        %v2005 = vrot.slane %v2003, 4
        %v2006 = vrot.slane %v1916, 7
        %v2007 = vsel %vm1922, %v2005, %v2006
        %v2008 = vrot.slane %v2006, 4
        %v2009 = vrot.slane %v1917, 7
        %v2010 = vsel %vm1922, %v2008, %v2009
        %v2011 = vrot.slane %v2009, 4
        %v2012 = vrot.slane %v1918, 7
        %v2013 = vsel %vm1922, %v2011, %v2012
        %v2014 = vrot.slane %v2012, 4
        %v2015 = vrot.slane %v1919, 7
        %v2016 = vsel %vm1922, %v2014, %v2015
        %v2017 = vrot.slane %v2015, 4
        %vm2018 = vcmp.ne.s16.totalorder %v1923, 0
        %vm2019 = vcmp.ne.s16.totalorder %v1926, 0
        %vm2020 = vcmp.ne.s16.totalorder %v1929, 0
        %vm2021 = vcmp.ne.s16.totalorder %v1932, 0
        %vm2022 = vcmp.ne.s16.totalorder %v1935, 0
        %vm2023 = vcmp.ne.s16.totalorder %v1938, 0
        %vm2024 = vcmp.ne.s16.totalorder %v1941, 0
        %vm2025 = vcmp.ne.s16.totalorder %v1944, 0
        %vm2026 = vcmp.ne.s16.totalorder %v1947, 0
        %vm2027 = vcmp.ne.s16.totalorder %v1950, 0
        %vm2028 = vcmp.ne.s16.totalorder %v1953, 0
        %vm2029 = vcmp.ne.s16.totalorder %v1956, 0
        %vm2030 = vcmp.ne.s16.totalorder %v1959, 0
        %vm2031 = vcmp.ne.s16.totalorder %v1962, 0
        %vm2032 = vcmp.ne.s16.totalorder %v1965, 0
        %vm2033 = vcmp.ne.s16.totalorder %v1968, 0
        %vm2034 = vcmp.ne.s16.totalorder %v1971, 0
        %vm2035 = vcmp.ne.s16.totalorder %v1974, 0
        %vm2036 = vcmp.ne.s16.totalorder %v1977, 0
        %vm2037 = vcmp.ne.s16.totalorder %v1980, 0
        %vm2038 = vcmp.ne.s16.totalorder %v1983, 0
        %vm2039 = vcmp.ne.s16.totalorder %v1986, 0
        %vm2040 = vcmp.ne.s16.totalorder %v1989, 0
        %vm2041 = vcmp.ne.s16.totalorder %v1992, 0
        %vm2042 = vcmp.ne.s16.totalorder %v1995, 0
        %vm2043 = vcmp.ne.s16.totalorder %v1998, 0
        %vm2044 = vcmp.ne.s16.totalorder %v2001, 0
        %vm2045 = vcmp.ne.s16.totalorder %v2004, 0
        %vm2046 = vcmp.ne.s16.totalorder %v2007, 0
        %vm2047 = vcmp.ne.s16.totalorder %v2010, 0
        %vm2048 = vcmp.ne.s16.totalorder %v2013, 0
        %vm2049 = vcmp.ne.s16.totalorder %v2016, 0
        %vm2050 = vcmp.ne.s16.totalorder %v2017, 0
        %v2051 = vsel %vm2018, %v1791, 0
        %v2052 = vsel %vm2019, %v906, 0
        %v2053 = vsel %vm2020, %v907, 0
        %v2054 = vsel %vm2021, %v908, 0
        %v2055 = vsel %vm2022, %v909, 0
        %v2056 = vsel %vm2023, %v910, 0
        %v2057 = vsel %vm2024, %v911, 0
        %v2058 = vsel %vm2025, %v912, 0
        %v2059 = vsel %vm2026, %v913, 0
        %v2060 = vsel %vm2027, %v914, 0
        %v2061 = vsel %vm2028, %v915, 0
        %v2062 = vsel %vm2029, %v916, 0
        %v2063 = vsel %vm2030, %v917, 0
        %v2064 = vsel %vm2031, %v918, 0
        %v2065 = vsel %vm2032, %v919, 0
        %v2066 = vsel %vm2033, %v920, 0
        %v2067 = vsel %vm2034, %v921, 0
        %v2068 = vsel %vm2035, %v922, 0
        %v2069 = vsel %vm2036, %v923, 0
        %v2070 = vsel %vm2037, %v924, 0
        %v2071 = vsel %vm2038, %v925, 0
        %v2072 = vsel %vm2039, %v926, 0
        %v2073 = vsel %vm2040, %v927, 0
        %v2074 = vsel %vm2041, %v928, 0
        %v2075 = vsel %vm2042, %v929, 0
        %v2076 = vsel %vm2043, %v930, 0
        %v2077 = vsel %vm2044, %v931, 0
        %v2078 = vsel %vm2045, %v932, 0
        %v2079 = vsel %vm2046, %v933, 0
        %v2080 = vsel %vm2047, %v934, 0
        %v2081 = vsel %vm2048, %v935, 0
        %v2082 = vsel %vm2049, %v936, 0
        %v2083 = vsel %vm2050, %v1066, 0
        %s2084 = scalar_lea.vmem %s1, 4
        %v2085 = vld [vmem:[%s2084] sm:$0x3]
        %v2119 = vunpack.c.l.b16 %v2051
        %v2120 = vunpack.c.l.b16 %v2052
        %v2121 = vunpack.c.l.b16 %v2053
        %v2122 = vunpack.c.l.b16 %v2054
        %v2123 = vunpack.c.l.b16 %v2055
        %v2124 = vunpack.c.l.b16 %v2056
        %v2125 = vunpack.c.l.b16 %v2057
        %v2126 = vunpack.c.l.b16 %v2058
        %v2127 = vunpack.c.l.b16 %v2059
        %v2128 = vunpack.c.l.b16 %v2060
        %v2129 = vunpack.c.l.b16 %v2061
        %v2130 = vunpack.c.l.b16 %v2062
        %v2131 = vunpack.c.l.b16 %v2063
        %v2132 = vunpack.c.l.b16 %v2064
        %v2133 = vunpack.c.l.b16 %v2065
        %v2134 = vunpack.c.l.b16 %v2066
        %v2135 = vunpack.c.l.b16 %v2067
        %v2136 = vunpack.c.l.b16 %v2068
        %v2137 = vunpack.c.l.b16 %v2069
        %v2138 = vunpack.c.l.b16 %v2070
        %v2139 = vunpack.c.l.b16 %v2071
        %v2140 = vunpack.c.l.b16 %v2072
        %v2141 = vunpack.c.l.b16 %v2073
        %v2142 = vunpack.c.l.b16 %v2074
        %v2143 = vunpack.c.l.b16 %v2075
        %v2144 = vunpack.c.l.b16 %v2076
        %v2145 = vunpack.c.l.b16 %v2077
        %v2146 = vunpack.c.l.b16 %v2078
        %v2147 = vunpack.c.l.b16 %v2079
        %v2148 = vunpack.c.l.b16 %v2080
        %v2149 = vunpack.c.l.b16 %v2081
        %v2150 = vunpack.c.l.b16 %v2082
        %v2151 = vunpack.c.l.b16 %v2083
        %v2152 = vpack.c.b16 %v2120, %v2119
        %v2153 = vpack.c.b16 %v2122, %v2121
        %v2154 = vpack.c.b16 %v2124, %v2123
        %v2155 = vpack.c.b16 %v2126, %v2125
        %v2156 = vpack.c.b16 %v2128, %v2127
        %v2157 = vpack.c.b16 %v2130, %v2129
        %v2158 = vpack.c.b16 %v2132, %v2131
        %v2159 = vpack.c.b16 %v2134, %v2133
        %v2160 = vpack.c.b16 %v2136, %v2135
        %v2161 = vpack.c.b16 %v2138, %v2137
        %v2162 = vpack.c.b16 %v2140, %v2139
        %v2163 = vpack.c.b16 %v2142, %v2141
        %v2164 = vpack.c.b16 %v2144, %v2143
        %v2165 = vpack.c.b16 %v2146, %v2145
        %v2166 = vpack.c.b16 %v2148, %v2147
        %v2167 = vpack.c.b16 %v2150, %v2149
        %v2168 = vpack.c.b16 %v2151, %v2151
        %vm2169 = vcmask 1046528
        %v2170 = vrot.slane %v2152, 1
        %v2171 = vrot.slane %v2153, 1
        %v2172 = vsel %vm2169, %v2170, %v2171
        %v2173 = vrot.slane %v2154, 1
        %v2174 = vsel %vm2169, %v2171, %v2173
        %v2175 = vrot.slane %v2155, 1
        %v2176 = vsel %vm2169, %v2173, %v2175
        %v2177 = vrot.slane %v2156, 1
        %v2178 = vsel %vm2169, %v2175, %v2177
        %v2179 = vrot.slane %v2157, 1
        %v2180 = vsel %vm2169, %v2177, %v2179
        %v2181 = vrot.slane %v2158, 1
        %v2182 = vsel %vm2169, %v2179, %v2181
        %v2183 = vrot.slane %v2159, 1
        %v2184 = vsel %vm2169, %v2181, %v2183
        %v2185 = vrot.slane %v2160, 1
        %v2186 = vsel %vm2169, %v2183, %v2185
        %v2187 = vrot.slane %v2161, 1
        %v2188 = vsel %vm2169, %v2185, %v2187
        %v2189 = vrot.slane %v2162, 1
        %v2190 = vsel %vm2169, %v2187, %v2189
        %v2191 = vrot.slane %v2163, 1
        %v2192 = vsel %vm2169, %v2189, %v2191
        %v2193 = vrot.slane %v2164, 1
        %v2194 = vsel %vm2169, %v2191, %v2193
        %v2195 = vrot.slane %v2165, 1
        %v2196 = vsel %vm2169, %v2193, %v2195
        %v2197 = vrot.slane %v2166, 1
        %v2198 = vsel %vm2169, %v2195, %v2197
        %v2199 = vrot.slane %v2167, 1
        %v2200 = vsel %vm2169, %v2197, %v2199
        %v2201 = vrot.slane %v2168, 1
        %v2202 = vsel %vm2169, %v2199, %v2201
        %v2204 = vsel %vm1285, %v2172, 0
        %v2207 = vsel %vm1285, %v2174, 0
        %v2210 = vsel %vm1285, %v2176, 0
        %v2213 = vsel %vm1285, %v2178, 0
        %v2216 = vsel %vm1285, %v2180, 0
        %v2219 = vsel %vm1285, %v2182, 0
        %v2222 = vsel %vm1285, %v2184, 0
        %v2225 = vsel %vm1285, %v2186, 0
        %v2228 = vsel %vm1285, %v2188, 0
        %v2231 = vsel %vm1285, %v2190, 0
        %v2234 = vsel %vm1285, %v2192, 0
        %v2237 = vsel %vm1285, %v2194, 0
        %v2240 = vsel %vm1285, %v2196, 0
        %v2243 = vsel %vm1285, %v2198, 0
        %v2246 = vsel %vm1285, %v2200, 0
        %v2249 = vsel %vm1285, %v2202, 0
        %v2252 = vsel %vm1334, %v2085, 0
        %2254 = vmatprep.subr.bf16.mxu0 0
        %2255 = vmatpush1.bf16.msra.mxu0 %v2252
        %2256 = vmatprep.subr.bf16.mxu0 0
        %2257 = vmatpush1.bf16.msra.mxu0 0
        %2258 = vmatprep.subr.bf16.mxu0 0
        %2259 = vmatpush1.bf16.msra.mxu0 0
        %2260 = vmatprep.subr.bf16.mxu0 0
        %2261 = vmatpush1.bf16.msra.mxu0 0
        %2262 = vmatprep.subr.bf16.mxu0 0
        %2263 = vmatpush1.bf16.msra.mxu0 0
        %2264 = vmatprep.subr.bf16.mxu0 0
        %2265 = vmatpush1.bf16.msra.mxu0 0
        %2266 = vmatprep.subr.bf16.mxu0 0
        %2267 = vmatpush1.bf16.msra.mxu0 0
        %2268 = vmatprep.subr.bf16.mxu0 0
        %2269 = vmatpush1.bf16.msra.mxu0 0
        %2270 = vmatprep.subr.bf16.mxu0 0
        %2271 = vmatpush1.bf16.msra.mxu0 0
        %2272 = vmatprep.subr.bf16.mxu0 0
        %2273 = vmatpush1.bf16.msra.mxu0 0
        %2274 = vmatprep.subr.bf16.mxu0 0
        %2275 = vmatpush1.bf16.msra.mxu0 0
        %2276 = vmatprep.subr.bf16.mxu0 0
        %2277 = vmatpush1.bf16.msra.mxu0 0
        %2278 = vmatprep.subr.bf16.mxu0 0
        %2279 = vmatpush1.bf16.msra.mxu0 0
        %2280 = vmatprep.subr.bf16.mxu0 0
        %2281 = vmatpush1.bf16.msra.mxu0 0
        %2282 = vmatprep.subr.bf16.mxu0 0
        %2283 = vmatpush1.bf16.msra.mxu0 0
        %2284 = vmatprep.subr.bf16.mxu0 0
        %2285 = vmatpush1.bf16.msra.mxu0 0
        %2286 = vmatprep.mubr.bf16.mxu0 0
        %2287 = vmatmul.mubr.bf16.gmra.mrb[0].mxu0 %v2204
        %v2288 = vpop.f32.mrb[0].mxu0
        %v2289 = vadd.f32 0.0, %v2288
        %v2290 = vpop.f32.mrb[0].mxu0
        %v2291 = vpop.f32.mrb[0].mxu0
        %v2292 = vadd.f32 0.0, %v2291
        %v2293 = vpop.f32.mrb[0].mxu0
        %2294 = vmatprep.mubr.bf16.mxu0 0
        %2295 = vmatmul.mubr.bf16.gmra.mrb[0].mxu0 %v2207
        %v2296 = vpop.f32.mrb[0].mxu0
        %v2297 = vadd.f32 0.0, %v2296
        %v2298 = vpop.f32.mrb[0].mxu0
        %v2299 = vpop.f32.mrb[0].mxu0
        %v2300 = vadd.f32 0.0, %v2299
        %v2301 = vpop.f32.mrb[0].mxu0
        %2302 = vmatprep.mubr.bf16.mxu0 0
        %2303 = vmatmul.mubr.bf16.gmra.mrb[0].mxu0 %v2210
        %v2304 = vpop.f32.mrb[0].mxu0
        %v2305 = vadd.f32 0.0, %v2304
        %v2306 = vpop.f32.mrb[0].mxu0
        %v2307 = vpop.f32.mrb[0].mxu0
        %v2308 = vadd.f32 0.0, %v2307
        %v2309 = vpop.f32.mrb[0].mxu0
        %2310 = vmatprep.mubr.bf16.mxu0 0
        %2311 = vmatmul.mubr.bf16.gmra.mrb[0].mxu0 %v2213
        %v2312 = vpop.f32.mrb[0].mxu0
        %v2313 = vadd.f32 0.0, %v2312
        %v2314 = vpop.f32.mrb[0].mxu0
        %v2315 = vpop.f32.mrb[0].mxu0
        %v2316 = vadd.f32 0.0, %v2315
        %v2317 = vpop.f32.mrb[0].mxu0
        %2318 = vmatprep.mubr.bf16.mxu0 0
        %2319 = vmatmul.mubr.bf16.gmra.mrb[0].mxu0 %v2216
        %v2320 = vpop.f32.mrb[0].mxu0
        %v2321 = vadd.f32 0.0, %v2320
        %v2322 = vpop.f32.mrb[0].mxu0
        %v2323 = vpop.f32.mrb[0].mxu0
        %v2324 = vadd.f32 0.0, %v2323
        %v2325 = vpop.f32.mrb[0].mxu0
        %2326 = vmatprep.mubr.bf16.mxu0 0
        %2327 = vmatmul.mubr.bf16.gmra.mrb[0].mxu0 %v2219
        %v2328 = vpop.f32.mrb[0].mxu0
        %v2329 = vadd.f32 0.0, %v2328
        %v2330 = vpop.f32.mrb[0].mxu0
        %v2331 = vpop.f32.mrb[0].mxu0
        %v2332 = vadd.f32 0.0, %v2331
        %v2333 = vpop.f32.mrb[0].mxu0
        %2334 = vmatprep.mubr.bf16.mxu0 0
        %2335 = vmatmul.mubr.bf16.gmra.mrb[0].mxu0 %v2222
        %v2336 = vpop.f32.mrb[0].mxu0
        %v2337 = vadd.f32 0.0, %v2336
        %v2338 = vpop.f32.mrb[0].mxu0
        %v2339 = vpop.f32.mrb[0].mxu0
        %v2340 = vadd.f32 0.0, %v2339
        %v2341 = vpop.f32.mrb[0].mxu0
        %2342 = vmatprep.mubr.bf16.mxu0 0
        %2343 = vmatmul.mubr.bf16.gmra.mrb[0].mxu0 %v2225
        %v2344 = vpop.f32.mrb[0].mxu0
        %v2345 = vadd.f32 0.0, %v2344
        %v2346 = vpop.f32.mrb[0].mxu0
        %v2347 = vpop.f32.mrb[0].mxu0
        %v2348 = vadd.f32 0.0, %v2347
        %v2349 = vpop.f32.mrb[0].mxu0
        %2350 = vmatprep.mubr.bf16.mxu0 0
        %2351 = vmatmul.mubr.bf16.gmra.mrb[0].mxu0 %v2228
        %v2352 = vpop.f32.mrb[0].mxu0
        %v2353 = vadd.f32 0.0, %v2352
        %v2354 = vpop.f32.mrb[0].mxu0
        %v2355 = vpop.f32.mrb[0].mxu0
        %v2356 = vadd.f32 0.0, %v2355
        %v2357 = vpop.f32.mrb[0].mxu0
        %2358 = vmatprep.mubr.bf16.mxu0 0
        %2359 = vmatmul.mubr.bf16.gmra.mrb[0].mxu0 %v2231
        %v2360 = vpop.f32.mrb[0].mxu0
        %v2361 = vadd.f32 0.0, %v2360
        %v2362 = vpop.f32.mrb[0].mxu0
        %v2363 = vpop.f32.mrb[0].mxu0
        %v2364 = vadd.f32 0.0, %v2363
        %v2365 = vpop.f32.mrb[0].mxu0
        %2366 = vmatprep.mubr.bf16.mxu0 0
        %2367 = vmatmul.mubr.bf16.gmra.mrb[0].mxu0 %v2234
        %v2368 = vpop.f32.mrb[0].mxu0
        %v2369 = vadd.f32 0.0, %v2368
        %v2370 = vpop.f32.mrb[0].mxu0
        %v2371 = vpop.f32.mrb[0].mxu0
        %v2372 = vadd.f32 0.0, %v2371
        %v2373 = vpop.f32.mrb[0].mxu0
        %2374 = vmatprep.mubr.bf16.mxu0 0
        %2375 = vmatmul.mubr.bf16.gmra.mrb[0].mxu0 %v2237
        %v2376 = vpop.f32.mrb[0].mxu0
        %v2377 = vadd.f32 0.0, %v2376
        %v2378 = vpop.f32.mrb[0].mxu0
        %v2379 = vpop.f32.mrb[0].mxu0
        %v2380 = vadd.f32 0.0, %v2379
        %v2381 = vpop.f32.mrb[0].mxu0
        %2382 = vmatprep.mubr.bf16.mxu0 0
        %2383 = vmatmul.mubr.bf16.gmra.mrb[0].mxu0 %v2240
        %v2384 = vpop.f32.mrb[0].mxu0
        %v2385 = vadd.f32 0.0, %v2384
        %v2386 = vpop.f32.mrb[0].mxu0
        %v2387 = vpop.f32.mrb[0].mxu0
        %v2388 = vadd.f32 0.0, %v2387
        %v2389 = vpop.f32.mrb[0].mxu0
        %2390 = vmatprep.mubr.bf16.mxu0 0
        %2391 = vmatmul.mubr.bf16.gmra.mrb[0].mxu0 %v2243
        %v2392 = vpop.f32.mrb[0].mxu0
        %v2393 = vadd.f32 0.0, %v2392
        %v2394 = vpop.f32.mrb[0].mxu0
        %v2395 = vpop.f32.mrb[0].mxu0
        %v2396 = vadd.f32 0.0, %v2395
        %v2397 = vpop.f32.mrb[0].mxu0
        %2398 = vmatprep.mubr.bf16.mxu0 0
        %2399 = vmatmul.mubr.bf16.gmra.mrb[0].mxu0 %v2246
        %v2400 = vpop.f32.mrb[0].mxu0
        %v2401 = vadd.f32 0.0, %v2400
        %v2402 = vpop.f32.mrb[0].mxu0
        %v2403 = vpop.f32.mrb[0].mxu0
        %v2404 = vadd.f32 0.0, %v2403
        %v2405 = vpop.f32.mrb[0].mxu0
        %2406 = vmatprep.mubr.bf16.mxu0 0
        %2407 = vmatmul.mubr.bf16.gmra.mrb[0].mxu0 %v2249
        %v2408 = vpop.f32.mrb[0].mxu0
        %v2409 = vadd.f32 0.0, %v2408
        %v2410 = vpop.f32.mrb[0].mxu0
        %v2411 = vpop.f32.mrb[0].mxu0
        %v2412 = vadd.f32 0.0, %v2411
        %v2413 = vpop.f32.mrb[0].mxu0
        %2414 = vdwg.mxu0
        %v2415 = vadd.f32 %v1665, %v2289
        %v2416 = vadd.f32 %v1668, %v2292
        %v2417 = vadd.f32 %v1673, %v2297
        %v2418 = vadd.f32 %v1676, %v2300
        %v2419 = vadd.f32 %v1681, %v2305
        %v2420 = vadd.f32 %v1684, %v2308
        %v2421 = vadd.f32 %v1689, %v2313
        %v2422 = vadd.f32 %v1692, %v2316
        %v2423 = vadd.f32 %v1697, %v2321
        %v2424 = vadd.f32 %v1700, %v2324
        %v2425 = vadd.f32 %v1705, %v2329
        %v2426 = vadd.f32 %v1708, %v2332
        %v2427 = vadd.f32 %v1713, %v2337
        %v2428 = vadd.f32 %v1716, %v2340
        %v2429 = vadd.f32 %v1721, %v2345
        %v2430 = vadd.f32 %v1724, %v2348
        %v2431 = vadd.f32 %v1729, %v2353
        %v2432 = vadd.f32 %v1732, %v2356
        %v2433 = vadd.f32 %v1737, %v2361
        %v2434 = vadd.f32 %v1740, %v2364
        %v2435 = vadd.f32 %v1745, %v2369
        %v2436 = vadd.f32 %v1748, %v2372
        %v2437 = vadd.f32 %v1753, %v2377
        %v2438 = vadd.f32 %v1756, %v2380
        %v2439 = vadd.f32 %v1761, %v2385
        %v2440 = vadd.f32 %v1764, %v2388
        %v2441 = vadd.f32 %v1769, %v2393
        %v2442 = vadd.f32 %v1772, %v2396
        %v2443 = vadd.f32 %v1777, %v2401
        %v2444 = vadd.f32 %v1780, %v2404
        %v2445 = vadd.f32 %v1785, %v2409
        %v2446 = vadd.f32 %v1788, %v2412
        %v2447 = vld [vmem:[%s420 + $0x8] sm:$0xf]
        %v2448 = vld [vmem:[%s420 + $0xc] sm:$0xf]
        %v2449 = vld [vmem:[%s420 + $0x10] sm:$0xf]
        %v2450 = vld [vmem:[%s420 + $0x14] sm:$0xf]
        %v2451 = vld [vmem:[%s420 + $0x18] sm:$0xf]
        %v2452 = vld [vmem:[%s420 + $0x1c] sm:$0xf]
        %v2453 = vld [vmem:[%s420 + $0x20] sm:$0xf]
        %v2454 = vld [vmem:[%s420 + $0x24] sm:$0xf]
        %v2455 = vld [vmem:[%s420 + $0x28] sm:$0xf]
        %v2456 = vld [vmem:[%s420 + $0x2c] sm:$0xf]
        %v2457 = vld [vmem:[%s420 + $0x30] sm:$0xf]
        %v2458 = vld [vmem:[%s420 + $0x34] sm:$0xf]
        %v2459 = vld [vmem:[%s420 + $0x38] sm:$0xf]
        %v2460 = vld [vmem:[%s420 + $0x3c] sm:$0xf]
        %v2461 = vld [vmem:[%s420 + $0x40] sm:$0xf]
        %v2462 = vld [vmem:[%s420 + $0x44] sm:$0xf]
        %v2463 = vld [vmem:[%s420 + $0x48] sm:$0xf]
        %v2464 = vld [vmem:[%s420 + $0x4c] sm:$0xf]
        %v2465 = vld [vmem:[%s420 + $0x50] sm:$0xf]
        %v2466 = vld [vmem:[%s420 + $0x54] sm:$0xf]
        %v2467 = vld [vmem:[%s420 + $0x58] sm:$0xf]
        %v2468 = vld [vmem:[%s420 + $0x5c] sm:$0xf]
        %v2469 = vld [vmem:[%s420 + $0x60] sm:$0xf]
        %v2470 = vld [vmem:[%s420 + $0x64] sm:$0xf]
        %v2471 = vld [vmem:[%s420 + $0x68] sm:$0xf]
        %v2472 = vld [vmem:[%s420 + $0x6c] sm:$0xf]
        %v2473 = vld [vmem:[%s420 + $0x70] sm:$0xf]
        %v2474 = vld [vmem:[%s420 + $0x74] sm:$0xf]
        %v2475 = vld [vmem:[%s420 + $0x78] sm:$0xf]
        %v2476 = vld [vmem:[%s420 + $0x7c] sm:$0xf]
        %v2477 = vld [vmem:[%s420 + $0x80] sm:$0xf]
        %v2478 = vld [vmem:[%s420 + $0x84] sm:$0xf]
        %v2479 = vsel %vm1001, %v2447, 0
        %v2480 = vsel %vm1002, %v2448, 0
        %v2481 = vsel %vm1003, %v2449, 0
        %v2482 = vsel %vm1004, %v2450, 0
        %v2483 = vsel %vm1005, %v2451, 0
        %v2484 = vsel %vm1006, %v2452, 0
        %v2485 = vsel %vm1007, %v2453, 0
        %v2486 = vsel %vm1008, %v2454, 0
        %v2487 = vsel %vm1009, %v2455, 0
        %v2488 = vsel %vm1010, %v2456, 0
        %v2489 = vsel %vm1011, %v2457, 0
        %v2490 = vsel %vm1012, %v2458, 0
        %v2491 = vsel %vm1013, %v2459, 0
        %v2492 = vsel %vm1014, %v2460, 0
        %v2493 = vsel %vm1015, %v2461, 0
        %v2494 = vsel %vm1016, %v2462, 0
        %v2495 = vsel %vm1017, %v2463, 0
        %v2496 = vsel %vm1018, %v2464, 0
        %v2497 = vsel %vm1019, %v2465, 0
        %v2498 = vsel %vm1020, %v2466, 0
        %v2499 = vsel %vm1021, %v2467, 0
        %v2500 = vsel %vm1022, %v2468, 0
        %v2501 = vsel %vm1023, %v2469, 0
        %v2502 = vsel %vm1024, %v2470, 0
        %v2503 = vsel %vm1025, %v2471, 0
        %v2504 = vsel %vm1026, %v2472, 0
        %v2505 = vsel %vm1027, %v2473, 0
        %v2506 = vsel %vm1028, %v2474, 0
        %v2507 = vsel %vm1029, %v2475, 0
        %v2508 = vsel %vm1030, %v2476, 0
        %v2509 = vsel %vm1031, %v2477, 0
        %v2510 = vsel %vm1032, %v2478, 0
        %s2511 = scalar_lea.vmem %s1, 6
        %v2512 = vld [vmem:[%s2511] sm:$0x3]
        %v2545 = vunpack.c.l.b16 %v2479
        %v2546 = vunpack.c.l.b16 %v2480
        %v2547 = vunpack.c.l.b16 %v2481
        %v2548 = vunpack.c.l.b16 %v2482
        %v2549 = vunpack.c.l.b16 %v2483
        %v2550 = vunpack.c.l.b16 %v2484
        %v2551 = vunpack.c.l.b16 %v2485
        %v2552 = vunpack.c.l.b16 %v2486
        %v2553 = vunpack.c.l.b16 %v2487
        %v2554 = vunpack.c.l.b16 %v2488
        %v2555 = vunpack.c.l.b16 %v2489
        %v2556 = vunpack.c.l.b16 %v2490
        %v2557 = vunpack.c.l.b16 %v2491
        %v2558 = vunpack.c.l.b16 %v2492
        %v2559 = vunpack.c.l.b16 %v2493
        %v2560 = vunpack.c.l.b16 %v2494
        %v2561 = vunpack.c.l.b16 %v2495
        %v2562 = vunpack.c.l.b16 %v2496
        %v2563 = vunpack.c.l.b16 %v2497
        %v2564 = vunpack.c.l.b16 %v2498
        %v2565 = vunpack.c.l.b16 %v2499
        %v2566 = vunpack.c.l.b16 %v2500
        %v2567 = vunpack.c.l.b16 %v2501
        %v2568 = vunpack.c.l.b16 %v2502
        %v2569 = vunpack.c.l.b16 %v2503
        %v2570 = vunpack.c.l.b16 %v2504
        %v2571 = vunpack.c.l.b16 %v2505
        %v2572 = vunpack.c.l.b16 %v2506
        %v2573 = vunpack.c.l.b16 %v2507
        %v2574 = vunpack.c.l.b16 %v2508
        %v2575 = vunpack.c.l.b16 %v2509
        %v2576 = vunpack.c.l.b16 %v2510
        %v2577 = vpack.c.b16 %v2546, %v2545
        %v2578 = vpack.c.b16 %v2548, %v2547
        %v2579 = vpack.c.b16 %v2550, %v2549
        %v2580 = vpack.c.b16 %v2552, %v2551
        %v2581 = vpack.c.b16 %v2554, %v2553
        %v2582 = vpack.c.b16 %v2556, %v2555
        %v2583 = vpack.c.b16 %v2558, %v2557
        %v2584 = vpack.c.b16 %v2560, %v2559
        %v2585 = vpack.c.b16 %v2562, %v2561
        %v2586 = vpack.c.b16 %v2564, %v2563
        %v2587 = vpack.c.b16 %v2566, %v2565
        %v2588 = vpack.c.b16 %v2568, %v2567
        %v2589 = vpack.c.b16 %v2570, %v2569
        %v2590 = vpack.c.b16 %v2572, %v2571
        %v2591 = vpack.c.b16 %v2574, %v2573
        %v2592 = vpack.c.b16 %v2576, %v2575
        %v2594 = vsel %vm1285, %v2577, 0
        %v2597 = vsel %vm1285, %v2578, 0
        %v2600 = vsel %vm1285, %v2579, 0
        %v2603 = vsel %vm1285, %v2580, 0
        %v2606 = vsel %vm1285, %v2581, 0
        %v2609 = vsel %vm1285, %v2582, 0
        %v2612 = vsel %vm1285, %v2583, 0
        %v2615 = vsel %vm1285, %v2584, 0
        %v2618 = vsel %vm1285, %v2585, 0
        %v2621 = vsel %vm1285, %v2586, 0
        %v2624 = vsel %vm1285, %v2587, 0
        %v2627 = vsel %vm1285, %v2588, 0
        %v2630 = vsel %vm1285, %v2589, 0
        %v2633 = vsel %vm1285, %v2590, 0
        %v2636 = vsel %vm1285, %v2591, 0
        %v2639 = vsel %vm1285, %v2592, 0
        %v2642 = vsel %vm1334, %v2512, 0
        %2644 = vmatprep.subr.bf16.mxu0 0
        %2645 = vmatpush1.bf16.msra.mxu0 %v2642
        %2646 = vmatprep.subr.bf16.mxu0 0
        %2647 = vmatpush1.bf16.msra.mxu0 0
        %2648 = vmatprep.subr.bf16.mxu0 0
        %2649 = vmatpush1.bf16.msra.mxu0 0
        %2650 = vmatprep.subr.bf16.mxu0 0
        %2651 = vmatpush1.bf16.msra.mxu0 0
        %2652 = vmatprep.subr.bf16.mxu0 0
        %2653 = vmatpush1.bf16.msra.mxu0 0
        %2654 = vmatprep.subr.bf16.mxu0 0
        %2655 = vmatpush1.bf16.msra.mxu0 0
        %2656 = vmatprep.subr.bf16.mxu0 0
        %2657 = vmatpush1.bf16.msra.mxu0 0
        %2658 = vmatprep.subr.bf16.mxu0 0
        %2659 = vmatpush1.bf16.msra.mxu0 0
        %2660 = vmatprep.subr.bf16.mxu0 0
        %2661 = vmatpush1.bf16.msra.mxu0 0
        %2662 = vmatprep.subr.bf16.mxu0 0
        %2663 = vmatpush1.bf16.msra.mxu0 0
        %2664 = vmatprep.subr.bf16.mxu0 0
        %2665 = vmatpush1.bf16.msra.mxu0 0
        %2666 = vmatprep.subr.bf16.mxu0 0
        %2667 = vmatpush1.bf16.msra.mxu0 0
        %2668 = vmatprep.subr.bf16.mxu0 0
        %2669 = vmatpush1.bf16.msra.mxu0 0
        %2670 = vmatprep.subr.bf16.mxu0 0
        %2671 = vmatpush1.bf16.msra.mxu0 0
        %2672 = vmatprep.subr.bf16.mxu0 0
        %2673 = vmatpush1.bf16.msra.mxu0 0
        %2674 = vmatprep.subr.bf16.mxu0 0
        %2675 = vmatpush1.bf16.msra.mxu0 0
        %2676 = vmatprep.mubr.bf16.mxu0 0
        %2677 = vmatmul.mubr.bf16.gmra.mrb[0].mxu0 %v2594
        %v2678 = vpop.f32.mrb[0].mxu0
        %v2679 = vadd.f32 0.0, %v2678
        %v2680 = vpop.f32.mrb[0].mxu0
        %v2681 = vpop.f32.mrb[0].mxu0
        %v2682 = vadd.f32 0.0, %v2681
        %v2683 = vpop.f32.mrb[0].mxu0
        %2684 = vmatprep.mubr.bf16.mxu0 0
        %2685 = vmatmul.mubr.bf16.gmra.mrb[0].mxu0 %v2597
        %v2686 = vpop.f32.mrb[0].mxu0
        %v2687 = vadd.f32 0.0, %v2686
        %v2688 = vpop.f32.mrb[0].mxu0
        %v2689 = vpop.f32.mrb[0].mxu0
        %v2690 = vadd.f32 0.0, %v2689
        %v2691 = vpop.f32.mrb[0].mxu0
        %2692 = vmatprep.mubr.bf16.mxu0 0
        %2693 = vmatmul.mubr.bf16.gmra.mrb[0].mxu0 %v2600
        %v2694 = vpop.f32.mrb[0].mxu0
        %v2695 = vadd.f32 0.0, %v2694
        %v2696 = vpop.f32.mrb[0].mxu0
        %v2697 = vpop.f32.mrb[0].mxu0
        %v2698 = vadd.f32 0.0, %v2697
        %v2699 = vpop.f32.mrb[0].mxu0
        %2700 = vmatprep.mubr.bf16.mxu0 0
        %2701 = vmatmul.mubr.bf16.gmra.mrb[0].mxu0 %v2603
        %v2702 = vpop.f32.mrb[0].mxu0
        %v2703 = vadd.f32 0.0, %v2702
        %v2704 = vpop.f32.mrb[0].mxu0
        %v2705 = vpop.f32.mrb[0].mxu0
        %v2706 = vadd.f32 0.0, %v2705
        %v2707 = vpop.f32.mrb[0].mxu0
        %2708 = vmatprep.mubr.bf16.mxu0 0
        %2709 = vmatmul.mubr.bf16.gmra.mrb[0].mxu0 %v2606
        %v2710 = vpop.f32.mrb[0].mxu0
        %v2711 = vadd.f32 0.0, %v2710
        %v2712 = vpop.f32.mrb[0].mxu0
        %v2713 = vpop.f32.mrb[0].mxu0
        %v2714 = vadd.f32 0.0, %v2713
        %v2715 = vpop.f32.mrb[0].mxu0
        %2716 = vmatprep.mubr.bf16.mxu0 0
        %2717 = vmatmul.mubr.bf16.gmra.mrb[0].mxu0 %v2609
        %v2718 = vpop.f32.mrb[0].mxu0
        %v2719 = vadd.f32 0.0, %v2718
        %v2720 = vpop.f32.mrb[0].mxu0
        %v2721 = vpop.f32.mrb[0].mxu0
        %v2722 = vadd.f32 0.0, %v2721
        %v2723 = vpop.f32.mrb[0].mxu0
        %2724 = vmatprep.mubr.bf16.mxu0 0
        %2725 = vmatmul.mubr.bf16.gmra.mrb[0].mxu0 %v2612
        %v2726 = vpop.f32.mrb[0].mxu0
        %v2727 = vadd.f32 0.0, %v2726
        %v2728 = vpop.f32.mrb[0].mxu0
        %v2729 = vpop.f32.mrb[0].mxu0
        %v2730 = vadd.f32 0.0, %v2729
        %v2731 = vpop.f32.mrb[0].mxu0
        %2732 = vmatprep.mubr.bf16.mxu0 0
        %2733 = vmatmul.mubr.bf16.gmra.mrb[0].mxu0 %v2615
        %v2734 = vpop.f32.mrb[0].mxu0
        %v2735 = vadd.f32 0.0, %v2734
        %v2736 = vpop.f32.mrb[0].mxu0
        %v2737 = vpop.f32.mrb[0].mxu0
        %v2738 = vadd.f32 0.0, %v2737
        %v2739 = vpop.f32.mrb[0].mxu0
        %2740 = vmatprep.mubr.bf16.mxu0 0
        %2741 = vmatmul.mubr.bf16.gmra.mrb[0].mxu0 %v2618
        %v2742 = vpop.f32.mrb[0].mxu0
        %v2743 = vadd.f32 0.0, %v2742
        %v2744 = vpop.f32.mrb[0].mxu0
        %v2745 = vpop.f32.mrb[0].mxu0
        %v2746 = vadd.f32 0.0, %v2745
        %v2747 = vpop.f32.mrb[0].mxu0
        %2748 = vmatprep.mubr.bf16.mxu0 0
        %2749 = vmatmul.mubr.bf16.gmra.mrb[0].mxu0 %v2621
        %v2750 = vpop.f32.mrb[0].mxu0
        %v2751 = vadd.f32 0.0, %v2750
        %v2752 = vpop.f32.mrb[0].mxu0
        %v2753 = vpop.f32.mrb[0].mxu0
        %v2754 = vadd.f32 0.0, %v2753
        %v2755 = vpop.f32.mrb[0].mxu0
        %2756 = vmatprep.mubr.bf16.mxu0 0
        %2757 = vmatmul.mubr.bf16.gmra.mrb[0].mxu0 %v2624
        %v2758 = vpop.f32.mrb[0].mxu0
        %v2759 = vadd.f32 0.0, %v2758
        %v2760 = vpop.f32.mrb[0].mxu0
        %v2761 = vpop.f32.mrb[0].mxu0
        %v2762 = vadd.f32 0.0, %v2761
        %v2763 = vpop.f32.mrb[0].mxu0
        %2764 = vmatprep.mubr.bf16.mxu0 0
        %2765 = vmatmul.mubr.bf16.gmra.mrb[0].mxu0 %v2627
        %v2766 = vpop.f32.mrb[0].mxu0
        %v2767 = vadd.f32 0.0, %v2766
        %v2768 = vpop.f32.mrb[0].mxu0
        %v2769 = vpop.f32.mrb[0].mxu0
        %v2770 = vadd.f32 0.0, %v2769
        %v2771 = vpop.f32.mrb[0].mxu0
        %2772 = vmatprep.mubr.bf16.mxu0 0
        %2773 = vmatmul.mubr.bf16.gmra.mrb[0].mxu0 %v2630
        %v2774 = vpop.f32.mrb[0].mxu0
        %v2775 = vadd.f32 0.0, %v2774
        %v2776 = vpop.f32.mrb[0].mxu0
        %v2777 = vpop.f32.mrb[0].mxu0
        %v2778 = vadd.f32 0.0, %v2777
        %v2779 = vpop.f32.mrb[0].mxu0
        %2780 = vmatprep.mubr.bf16.mxu0 0
        %2781 = vmatmul.mubr.bf16.gmra.mrb[0].mxu0 %v2633
        %v2782 = vpop.f32.mrb[0].mxu0
        %v2783 = vadd.f32 0.0, %v2782
        %v2784 = vpop.f32.mrb[0].mxu0
        %v2785 = vpop.f32.mrb[0].mxu0
        %v2786 = vadd.f32 0.0, %v2785
        %v2787 = vpop.f32.mrb[0].mxu0
        %2788 = vmatprep.mubr.bf16.mxu0 0
        %2789 = vmatmul.mubr.bf16.gmra.mrb[0].mxu0 %v2636
        %v2790 = vpop.f32.mrb[0].mxu0
        %v2791 = vadd.f32 0.0, %v2790
        %v2792 = vpop.f32.mrb[0].mxu0
        %v2793 = vpop.f32.mrb[0].mxu0
        %v2794 = vadd.f32 0.0, %v2793
        %v2795 = vpop.f32.mrb[0].mxu0
        %2796 = vmatprep.mubr.bf16.mxu0 0
        %2797 = vmatmul.mubr.bf16.gmra.mrb[0].mxu0 %v2639
        %v2798 = vpop.f32.mrb[0].mxu0
        %v2799 = vadd.f32 0.0, %v2798
        %v2800 = vpop.f32.mrb[0].mxu0
        %v2801 = vpop.f32.mrb[0].mxu0
        %v2802 = vadd.f32 0.0, %v2801
        %v2803 = vpop.f32.mrb[0].mxu0
        %2804 = vdwg.mxu0
        %v2805 = vadd.f32 %v2415, %v2679
        %v2806 = vadd.f32 %v2416, %v2682
        %v2807 = vadd.f32 %v2417, %v2687
        %v2808 = vadd.f32 %v2418, %v2690
        %v2809 = vadd.f32 %v2419, %v2695
        %v2810 = vadd.f32 %v2420, %v2698
        %v2811 = vadd.f32 %v2421, %v2703
        %v2812 = vadd.f32 %v2422, %v2706
        %v2813 = vadd.f32 %v2423, %v2711
        %v2814 = vadd.f32 %v2424, %v2714
        %v2815 = vadd.f32 %v2425, %v2719
        %v2816 = vadd.f32 %v2426, %v2722
        %v2817 = vadd.f32 %v2427, %v2727
        %v2818 = vadd.f32 %v2428, %v2730
        %v2819 = vadd.f32 %v2429, %v2735
        %v2820 = vadd.f32 %v2430, %v2738
        %v2821 = vadd.f32 %v2431, %v2743
        %v2822 = vadd.f32 %v2432, %v2746
        %v2823 = vadd.f32 %v2433, %v2751
        %v2824 = vadd.f32 %v2434, %v2754
        %v2825 = vadd.f32 %v2435, %v2759
        %v2826 = vadd.f32 %v2436, %v2762
        %v2827 = vadd.f32 %v2437, %v2767
        %v2828 = vadd.f32 %v2438, %v2770
        %v2829 = vadd.f32 %v2439, %v2775
        %v2830 = vadd.f32 %v2440, %v2778
        %v2831 = vadd.f32 %v2441, %v2783
        %v2832 = vadd.f32 %v2442, %v2786
        %v2833 = vadd.f32 %v2443, %v2791
        %v2834 = vadd.f32 %v2444, %v2794
        %v2835 = vadd.f32 %v2445, %v2799
        %v2836 = vadd.f32 %v2446, %v2802
        %v2837 = vld [vmem:[%s420 + $0x8] sm:$0xf]
        %v2838 = vld [vmem:[%s420 + $0xc] sm:$0xf]
        %v2839 = vld [vmem:[%s420 + $0x10] sm:$0xf]
        %v2840 = vld [vmem:[%s420 + $0x14] sm:$0xf]
        %v2841 = vld [vmem:[%s420 + $0x18] sm:$0xf]
        %v2842 = vld [vmem:[%s420 + $0x1c] sm:$0xf]
        %v2843 = vld [vmem:[%s420 + $0x20] sm:$0xf]
        %v2844 = vld [vmem:[%s420 + $0x24] sm:$0xf]
        %v2845 = vld [vmem:[%s420 + $0x28] sm:$0xf]
        %v2846 = vld [vmem:[%s420 + $0x2c] sm:$0xf]
        %v2847 = vld [vmem:[%s420 + $0x30] sm:$0xf]
        %v2848 = vld [vmem:[%s420 + $0x34] sm:$0xf]
        %v2849 = vld [vmem:[%s420 + $0x38] sm:$0xf]
        %v2850 = vld [vmem:[%s420 + $0x3c] sm:$0xf]
        %v2851 = vld [vmem:[%s420 + $0x40] sm:$0xf]
        %v2852 = vld [vmem:[%s420 + $0x44] sm:$0xf]
        %v2853 = vld [vmem:[%s420 + $0x48] sm:$0xf]
        %v2854 = vld [vmem:[%s420 + $0x4c] sm:$0xf]
        %v2855 = vld [vmem:[%s420 + $0x50] sm:$0xf]
        %v2856 = vld [vmem:[%s420 + $0x54] sm:$0xf]
        %v2857 = vld [vmem:[%s420 + $0x58] sm:$0xf]
        %v2858 = vld [vmem:[%s420 + $0x5c] sm:$0xf]
        %v2859 = vld [vmem:[%s420 + $0x60] sm:$0xf]
        %v2860 = vld [vmem:[%s420 + $0x64] sm:$0xf]
        %v2861 = vld [vmem:[%s420 + $0x68] sm:$0xf]
        %v2862 = vld [vmem:[%s420 + $0x6c] sm:$0xf]
        %v2863 = vld [vmem:[%s420 + $0x70] sm:$0xf]
        %v2864 = vld [vmem:[%s420 + $0x74] sm:$0xf]
        %v2865 = vld [vmem:[%s420 + $0x78] sm:$0xf]
        %v2866 = vld [vmem:[%s420 + $0x7c] sm:$0xf]
        %v2867 = vld [vmem:[%s420 + $0x80] sm:$0xf]
        %v2868 = vld [vmem:[%s420 + $0x84] sm:$0xf]
        %v2869 = vld [vmem:[%s420 + $0x88] sm:$0x1]
        %s2870 = scalar_lea.vmem %s1, 8
        %v2871 = vld [vmem:[%s2870] sm:$0x3]
        %v2905 = vunpack.c.l.b16 %v2837
        %v2906 = vunpack.c.l.b16 %v2838
        %v2907 = vunpack.c.l.b16 %v2839
        %v2908 = vunpack.c.l.b16 %v2840
        %v2909 = vunpack.c.l.b16 %v2841
        %v2910 = vunpack.c.l.b16 %v2842
        %v2911 = vunpack.c.l.b16 %v2843
        %v2912 = vunpack.c.l.b16 %v2844
        %v2913 = vunpack.c.l.b16 %v2845
        %v2914 = vunpack.c.l.b16 %v2846
        %v2915 = vunpack.c.l.b16 %v2847
        %v2916 = vunpack.c.l.b16 %v2848
        %v2917 = vunpack.c.l.b16 %v2849
        %v2918 = vunpack.c.l.b16 %v2850
        %v2919 = vunpack.c.l.b16 %v2851
        %v2920 = vunpack.c.l.b16 %v2852
        %v2921 = vunpack.c.l.b16 %v2853
        %v2922 = vunpack.c.l.b16 %v2854
        %v2923 = vunpack.c.l.b16 %v2855
        %v2924 = vunpack.c.l.b16 %v2856
        %v2925 = vunpack.c.l.b16 %v2857
        %v2926 = vunpack.c.l.b16 %v2858
        %v2927 = vunpack.c.l.b16 %v2859
        %v2928 = vunpack.c.l.b16 %v2860
        %v2929 = vunpack.c.l.b16 %v2861
        %v2930 = vunpack.c.l.b16 %v2862
        %v2931 = vunpack.c.l.b16 %v2863
        %v2932 = vunpack.c.l.b16 %v2864
        %v2933 = vunpack.c.l.b16 %v2865
        %v2934 = vunpack.c.l.b16 %v2866
        %v2935 = vunpack.c.l.b16 %v2867
        %v2936 = vunpack.c.l.b16 %v2868
        %v2937 = vunpack.c.l.b16 %v2869
        %v2938 = vpack.c.b16 %v2906, %v2905
        %v2939 = vpack.c.b16 %v2908, %v2907
        %v2940 = vpack.c.b16 %v2910, %v2909
        %v2941 = vpack.c.b16 %v2912, %v2911
        %v2942 = vpack.c.b16 %v2914, %v2913
        %v2943 = vpack.c.b16 %v2916, %v2915
        %v2944 = vpack.c.b16 %v2918, %v2917
        %v2945 = vpack.c.b16 %v2920, %v2919
        %v2946 = vpack.c.b16 %v2922, %v2921
        %v2947 = vpack.c.b16 %v2924, %v2923
        %v2948 = vpack.c.b16 %v2926, %v2925
        %v2949 = vpack.c.b16 %v2928, %v2927
        %v2950 = vpack.c.b16 %v2930, %v2929
        %v2951 = vpack.c.b16 %v2932, %v2931
        %v2952 = vpack.c.b16 %v2934, %v2933
        %v2953 = vpack.c.b16 %v2936, %v2935
        %v2954 = vpack.c.b16 %v2937, %v2937
        %v2956 = vshrl.u32 %v2938, 16
        %v2958 = vshll.u32 %v2938, 16
        %v2960 = vrot.slane %v2958, 1
        %v2961 = vor.u32 %v2956, %v2960
        %v2963 = vshll.u32 %v2939, 16
        %v2965 = vrot.slane %v2963, 1
        %v2966 = vsel %vm1152, %v2961, %v2965
        %v2967 = vshrl.u32 %v2939, 16
        %v2969 = vor.u32 %v2967, %v2965
        %v2971 = vshll.u32 %v2940, 16
        %v2973 = vrot.slane %v2971, 1
        %v2974 = vsel %vm1152, %v2969, %v2973
        %v2975 = vshrl.u32 %v2940, 16
        %v2977 = vor.u32 %v2975, %v2973
        %v2979 = vshll.u32 %v2941, 16
        %v2981 = vrot.slane %v2979, 1
        %v2982 = vsel %vm1152, %v2977, %v2981
        %v2983 = vshrl.u32 %v2941, 16
        %v2985 = vor.u32 %v2983, %v2981
        %v2987 = vshll.u32 %v2942, 16
        %v2989 = vrot.slane %v2987, 1
        %v2990 = vsel %vm1152, %v2985, %v2989
        %v2991 = vshrl.u32 %v2942, 16
        %v2993 = vor.u32 %v2991, %v2989
        %v2995 = vshll.u32 %v2943, 16
        %v2997 = vrot.slane %v2995, 1
        %v2998 = vsel %vm1152, %v2993, %v2997
        %v2999 = vshrl.u32 %v2943, 16
        %v3001 = vor.u32 %v2999, %v2997
        %v3003 = vshll.u32 %v2944, 16
        %v3005 = vrot.slane %v3003, 1
        %v3006 = vsel %vm1152, %v3001, %v3005
        %v3007 = vshrl.u32 %v2944, 16
        %v3009 = vor.u32 %v3007, %v3005
        %v3011 = vshll.u32 %v2945, 16
        %v3013 = vrot.slane %v3011, 1
        %v3014 = vsel %vm1152, %v3009, %v3013
        %v3015 = vshrl.u32 %v2945, 16
        %v3017 = vor.u32 %v3015, %v3013
        %v3019 = vshll.u32 %v2946, 16
        %v3021 = vrot.slane %v3019, 1
        %v3022 = vsel %vm1152, %v3017, %v3021
        %v3023 = vshrl.u32 %v2946, 16
        %v3025 = vor.u32 %v3023, %v3021
        %v3027 = vshll.u32 %v2947, 16
        %v3029 = vrot.slane %v3027, 1
        %v3030 = vsel %vm1152, %v3025, %v3029
        %v3031 = vshrl.u32 %v2947, 16
        %v3033 = vor.u32 %v3031, %v3029
        %v3035 = vshll.u32 %v2948, 16
        %v3037 = vrot.slane %v3035, 1
        %v3038 = vsel %vm1152, %v3033, %v3037
        %v3039 = vshrl.u32 %v2948, 16
        %v3041 = vor.u32 %v3039, %v3037
        %v3043 = vshll.u32 %v2949, 16
        %v3045 = vrot.slane %v3043, 1
        %v3046 = vsel %vm1152, %v3041, %v3045
        %v3047 = vshrl.u32 %v2949, 16
        %v3049 = vor.u32 %v3047, %v3045
        %v3051 = vshll.u32 %v2950, 16
        %v3053 = vrot.slane %v3051, 1
        %v3054 = vsel %vm1152, %v3049, %v3053
        %v3055 = vshrl.u32 %v2950, 16
        %v3057 = vor.u32 %v3055, %v3053
        %v3059 = vshll.u32 %v2951, 16
        %v3061 = vrot.slane %v3059, 1
        %v3062 = vsel %vm1152, %v3057, %v3061
        %v3063 = vshrl.u32 %v2951, 16
        %v3065 = vor.u32 %v3063, %v3061
        %v3067 = vshll.u32 %v2952, 16
        %v3069 = vrot.slane %v3067, 1
        %v3070 = vsel %vm1152, %v3065, %v3069
        %v3071 = vshrl.u32 %v2952, 16
        %v3073 = vor.u32 %v3071, %v3069
        %v3075 = vshll.u32 %v2953, 16
        %v3077 = vrot.slane %v3075, 1
        %v3078 = vsel %vm1152, %v3073, %v3077
        %v3079 = vshrl.u32 %v2953, 16
        %v3081 = vor.u32 %v3079, %v3077
        %v3083 = vshll.u32 %v2954, 16
        %v3085 = vrot.slane %v3083, 1
        %v3086 = vsel %vm1152, %v3081, %v3085
        %v3088 = vsel %vm1285, %v2966, 0
        %v3091 = vsel %vm1285, %v2974, 0
        %v3094 = vsel %vm1285, %v2982, 0
        %v3097 = vsel %vm1285, %v2990, 0
        %v3100 = vsel %vm1285, %v2998, 0
        %v3103 = vsel %vm1285, %v3006, 0
        %v3106 = vsel %vm1285, %v3014, 0
        %v3109 = vsel %vm1285, %v3022, 0
        %v3112 = vsel %vm1285, %v3030, 0
        %v3115 = vsel %vm1285, %v3038, 0
        %v3118 = vsel %vm1285, %v3046, 0
        %v3121 = vsel %vm1285, %v3054, 0
        %v3124 = vsel %vm1285, %v3062, 0
        %v3127 = vsel %vm1285, %v3070, 0
        %v3130 = vsel %vm1285, %v3078, 0
        %v3133 = vsel %vm1285, %v3086, 0
        %v3136 = vsel %vm1334, %v2871, 0
        %3138 = vmatprep.subr.bf16.mxu0 0
        %3139 = vmatpush1.bf16.msra.mxu0 %v3136
        %3140 = vmatprep.subr.bf16.mxu0 0
        %3141 = vmatpush1.bf16.msra.mxu0 0
        %3142 = vmatprep.subr.bf16.mxu0 0
        %3143 = vmatpush1.bf16.msra.mxu0 0
        %3144 = vmatprep.subr.bf16.mxu0 0
        %3145 = vmatpush1.bf16.msra.mxu0 0
        %3146 = vmatprep.subr.bf16.mxu0 0
        %3147 = vmatpush1.bf16.msra.mxu0 0
        %3148 = vmatprep.subr.bf16.mxu0 0
        %3149 = vmatpush1.bf16.msra.mxu0 0
        %3150 = vmatprep.subr.bf16.mxu0 0
        %3151 = vmatpush1.bf16.msra.mxu0 0
        %3152 = vmatprep.subr.bf16.mxu0 0
        %3153 = vmatpush1.bf16.msra.mxu0 0
        %3154 = vmatprep.subr.bf16.mxu0 0
        %3155 = vmatpush1.bf16.msra.mxu0 0
        %3156 = vmatprep.subr.bf16.mxu0 0
        %3157 = vmatpush1.bf16.msra.mxu0 0
        %3158 = vmatprep.subr.bf16.mxu0 0
        %3159 = vmatpush1.bf16.msra.mxu0 0
        %3160 = vmatprep.subr.bf16.mxu0 0
        %3161 = vmatpush1.bf16.msra.mxu0 0
        %3162 = vmatprep.subr.bf16.mxu0 0
        %3163 = vmatpush1.bf16.msra.mxu0 0
        %3164 = vmatprep.subr.bf16.mxu0 0
        %3165 = vmatpush1.bf16.msra.mxu0 0
        %3166 = vmatprep.subr.bf16.mxu0 0
        %3167 = vmatpush1.bf16.msra.mxu0 0
        %3168 = vmatprep.subr.bf16.mxu0 0
        %3169 = vmatpush1.bf16.msra.mxu0 0
        %3170 = vmatprep.mubr.bf16.mxu0 0
        %3171 = vmatmul.mubr.bf16.gmra.mrb[0].mxu0 %v3088
        %v3172 = vpop.f32.mrb[0].mxu0
        %v3173 = vadd.f32 0.0, %v3172
        %v3174 = vpop.f32.mrb[0].mxu0
        %v3175 = vpop.f32.mrb[0].mxu0
        %v3176 = vadd.f32 0.0, %v3175
        %v3177 = vpop.f32.mrb[0].mxu0
        %3178 = vmatprep.mubr.bf16.mxu0 0
        %3179 = vmatmul.mubr.bf16.gmra.mrb[0].mxu0 %v3091
        %v3180 = vpop.f32.mrb[0].mxu0
        %v3181 = vadd.f32 0.0, %v3180
        %v3182 = vpop.f32.mrb[0].mxu0
        %v3183 = vpop.f32.mrb[0].mxu0
        %v3184 = vadd.f32 0.0, %v3183
        %v3185 = vpop.f32.mrb[0].mxu0
        %3186 = vmatprep.mubr.bf16.mxu0 0
        %3187 = vmatmul.mubr.bf16.gmra.mrb[0].mxu0 %v3094
        %v3188 = vpop.f32.mrb[0].mxu0
        %v3189 = vadd.f32 0.0, %v3188
        %v3190 = vpop.f32.mrb[0].mxu0
        %v3191 = vpop.f32.mrb[0].mxu0
        %v3192 = vadd.f32 0.0, %v3191
        %v3193 = vpop.f32.mrb[0].mxu0
        %3194 = vmatprep.mubr.bf16.mxu0 0
        %3195 = vmatmul.mubr.bf16.gmra.mrb[0].mxu0 %v3097
        %v3196 = vpop.f32.mrb[0].mxu0
        %v3197 = vadd.f32 0.0, %v3196
        %v3198 = vpop.f32.mrb[0].mxu0
        %v3199 = vpop.f32.mrb[0].mxu0
        %v3200 = vadd.f32 0.0, %v3199
        %v3201 = vpop.f32.mrb[0].mxu0
        %3202 = vmatprep.mubr.bf16.mxu0 0
        %3203 = vmatmul.mubr.bf16.gmra.mrb[0].mxu0 %v3100
        %v3204 = vpop.f32.mrb[0].mxu0
        %v3205 = vadd.f32 0.0, %v3204
        %v3206 = vpop.f32.mrb[0].mxu0
        %v3207 = vpop.f32.mrb[0].mxu0
        %v3208 = vadd.f32 0.0, %v3207
        %v3209 = vpop.f32.mrb[0].mxu0
        %3210 = vmatprep.mubr.bf16.mxu0 0
        %3211 = vmatmul.mubr.bf16.gmra.mrb[0].mxu0 %v3103
        %v3212 = vpop.f32.mrb[0].mxu0
        %v3213 = vadd.f32 0.0, %v3212
        %v3214 = vpop.f32.mrb[0].mxu0
        %v3215 = vpop.f32.mrb[0].mxu0
        %v3216 = vadd.f32 0.0, %v3215
        %v3217 = vpop.f32.mrb[0].mxu0
        %3218 = vmatprep.mubr.bf16.mxu0 0
        %3219 = vmatmul.mubr.bf16.gmra.mrb[0].mxu0 %v3106
        %v3220 = vpop.f32.mrb[0].mxu0
        %v3221 = vadd.f32 0.0, %v3220
        %v3222 = vpop.f32.mrb[0].mxu0
        %v3223 = vpop.f32.mrb[0].mxu0
        %v3224 = vadd.f32 0.0, %v3223
        %v3225 = vpop.f32.mrb[0].mxu0
        %3226 = vmatprep.mubr.bf16.mxu0 0
        %3227 = vmatmul.mubr.bf16.gmra.mrb[0].mxu0 %v3109
        %v3228 = vpop.f32.mrb[0].mxu0
        %v3229 = vadd.f32 0.0, %v3228
        %v3230 = vpop.f32.mrb[0].mxu0
        %v3231 = vpop.f32.mrb[0].mxu0
        %v3232 = vadd.f32 0.0, %v3231
        %v3233 = vpop.f32.mrb[0].mxu0
        %3234 = vmatprep.mubr.bf16.mxu0 0
        %3235 = vmatmul.mubr.bf16.gmra.mrb[0].mxu0 %v3112
        %v3236 = vpop.f32.mrb[0].mxu0
        %v3237 = vadd.f32 0.0, %v3236
        %v3238 = vpop.f32.mrb[0].mxu0
        %v3239 = vpop.f32.mrb[0].mxu0
        %v3240 = vadd.f32 0.0, %v3239
        %v3241 = vpop.f32.mrb[0].mxu0
        %3242 = vmatprep.mubr.bf16.mxu0 0
        %3243 = vmatmul.mubr.bf16.gmra.mrb[0].mxu0 %v3115
        %v3244 = vpop.f32.mrb[0].mxu0
        %v3245 = vadd.f32 0.0, %v3244
        %v3246 = vpop.f32.mrb[0].mxu0
        %v3247 = vpop.f32.mrb[0].mxu0
        %v3248 = vadd.f32 0.0, %v3247
        %v3249 = vpop.f32.mrb[0].mxu0
        %3250 = vmatprep.mubr.bf16.mxu0 0
        %3251 = vmatmul.mubr.bf16.gmra.mrb[0].mxu0 %v3118
        %v3252 = vpop.f32.mrb[0].mxu0
        %v3253 = vadd.f32 0.0, %v3252
        %v3254 = vpop.f32.mrb[0].mxu0
        %v3255 = vpop.f32.mrb[0].mxu0
        %v3256 = vadd.f32 0.0, %v3255
        %v3257 = vpop.f32.mrb[0].mxu0
        %3258 = vmatprep.mubr.bf16.mxu0 0
        %3259 = vmatmul.mubr.bf16.gmra.mrb[0].mxu0 %v3121
        %v3260 = vpop.f32.mrb[0].mxu0
        %v3261 = vadd.f32 0.0, %v3260
        %v3262 = vpop.f32.mrb[0].mxu0
        %v3263 = vpop.f32.mrb[0].mxu0
        %v3264 = vadd.f32 0.0, %v3263
        %v3265 = vpop.f32.mrb[0].mxu0
        %3266 = vmatprep.mubr.bf16.mxu0 0
        %3267 = vmatmul.mubr.bf16.gmra.mrb[0].mxu0 %v3124
        %v3268 = vpop.f32.mrb[0].mxu0
        %v3269 = vadd.f32 0.0, %v3268
        %v3270 = vpop.f32.mrb[0].mxu0
        %v3271 = vpop.f32.mrb[0].mxu0
        %v3272 = vadd.f32 0.0, %v3271
        %v3273 = vpop.f32.mrb[0].mxu0
        %3274 = vmatprep.mubr.bf16.mxu0 0
        %3275 = vmatmul.mubr.bf16.gmra.mrb[0].mxu0 %v3127
        %v3276 = vpop.f32.mrb[0].mxu0
        %v3277 = vadd.f32 0.0, %v3276
        %v3278 = vpop.f32.mrb[0].mxu0
        %v3279 = vpop.f32.mrb[0].mxu0
        %v3280 = vadd.f32 0.0, %v3279
        %v3281 = vpop.f32.mrb[0].mxu0
        %3282 = vmatprep.mubr.bf16.mxu0 0
        %3283 = vmatmul.mubr.bf16.gmra.mrb[0].mxu0 %v3130
        %v3284 = vpop.f32.mrb[0].mxu0
        %v3285 = vadd.f32 0.0, %v3284
        %v3286 = vpop.f32.mrb[0].mxu0
        %v3287 = vpop.f32.mrb[0].mxu0
        %v3288 = vadd.f32 0.0, %v3287
        %v3289 = vpop.f32.mrb[0].mxu0
        %3290 = vmatprep.mubr.bf16.mxu0 0
        %3291 = vmatmul.mubr.bf16.gmra.mrb[0].mxu0 %v3133
        %v3292 = vpop.f32.mrb[0].mxu0
        %v3293 = vadd.f32 0.0, %v3292
        %v3294 = vpop.f32.mrb[0].mxu0
        %v3295 = vpop.f32.mrb[0].mxu0
        %v3296 = vadd.f32 0.0, %v3295
        %v3297 = vpop.f32.mrb[0].mxu0
        %3298 = vdwg.mxu0
        %v3299 = vadd.f32 %v2805, %v3173
        %v3300 = vadd.f32 %v2806, %v3176
        %v3301 = vadd.f32 %v2807, %v3181
        %v3302 = vadd.f32 %v2808, %v3184
        %v3303 = vadd.f32 %v2809, %v3189
        %v3304 = vadd.f32 %v2810, %v3192
        %v3305 = vadd.f32 %v2811, %v3197
        %v3306 = vadd.f32 %v2812, %v3200
        %v3307 = vadd.f32 %v2813, %v3205
        %v3308 = vadd.f32 %v2814, %v3208
        %v3309 = vadd.f32 %v2815, %v3213
        %v3310 = vadd.f32 %v2816, %v3216
        %v3311 = vadd.f32 %v2817, %v3221
        %v3312 = vadd.f32 %v2818, %v3224
        %v3313 = vadd.f32 %v2819, %v3229
        %v3314 = vadd.f32 %v2820, %v3232
        %v3315 = vadd.f32 %v2821, %v3237
        %v3316 = vadd.f32 %v2822, %v3240
        %v3317 = vadd.f32 %v2823, %v3245
        %v3318 = vadd.f32 %v2824, %v3248
        %v3319 = vadd.f32 %v2825, %v3253
        %v3320 = vadd.f32 %v2826, %v3256
        %v3321 = vadd.f32 %v2827, %v3261
        %v3322 = vadd.f32 %v2828, %v3264
        %v3323 = vadd.f32 %v2829, %v3269
        %v3324 = vadd.f32 %v2830, %v3272
        %v3325 = vadd.f32 %v2831, %v3277
        %v3326 = vadd.f32 %v2832, %v3280
        %v3327 = vadd.f32 %v2833, %v3285
        %v3328 = vadd.f32 %v2834, %v3288
        %v3329 = vadd.f32 %v2835, %v3293
        %v3330 = vadd.f32 %v2836, %v3296
        %v3331 = vld [vmem:[%s420 + $0x8] sm:$0xe]
        %v3332 = vsel %vm2018, %v3331, 0
        %v3333 = vsel %vm2019, %v2838, 0
        %v3334 = vsel %vm2020, %v2839, 0
        %v3335 = vsel %vm2021, %v2840, 0
        %v3336 = vsel %vm2022, %v2841, 0
        %v3337 = vsel %vm2023, %v2842, 0
        %v3338 = vsel %vm2024, %v2843, 0
        %v3339 = vsel %vm2025, %v2844, 0
        %v3340 = vsel %vm2026, %v2845, 0
        %v3341 = vsel %vm2027, %v2846, 0
        %v3342 = vsel %vm2028, %v2847, 0
        %v3343 = vsel %vm2029, %v2848, 0
        %v3344 = vsel %vm2030, %v2849, 0
        %v3345 = vsel %vm2031, %v2850, 0
        %v3346 = vsel %vm2032, %v2851, 0
        %v3347 = vsel %vm2033, %v2852, 0
        %v3348 = vsel %vm2034, %v2853, 0
        %v3349 = vsel %vm2035, %v2854, 0
        %v3350 = vsel %vm2036, %v2855, 0
        %v3351 = vsel %vm2037, %v2856, 0
        %v3352 = vsel %vm2038, %v2857, 0
        %v3353 = vsel %vm2039, %v2858, 0
        %v3354 = vsel %vm2040, %v2859, 0
        %v3355 = vsel %vm2041, %v2860, 0
        %v3356 = vsel %vm2042, %v2861, 0
        %v3357 = vsel %vm2043, %v2862, 0
        %v3358 = vsel %vm2044, %v2863, 0
        %v3359 = vsel %vm2045, %v2864, 0
        %v3360 = vsel %vm2046, %v2865, 0
        %v3361 = vsel %vm2047, %v2866, 0
        %v3362 = vsel %vm2048, %v2867, 0
        %v3363 = vsel %vm2049, %v2868, 0
        %v3364 = vsel %vm2050, %v2869, 0
        %s3365 = scalar_lea.vmem %s1, 10
        %v3366 = vld [vmem:[%s3365] sm:$0x3]
        %v3400 = vunpack.c.l.b16 %v3332
        %v3401 = vunpack.c.l.b16 %v3333
        %v3402 = vunpack.c.l.b16 %v3334
        %v3403 = vunpack.c.l.b16 %v3335
        %v3404 = vunpack.c.l.b16 %v3336
        %v3405 = vunpack.c.l.b16 %v3337
        %v3406 = vunpack.c.l.b16 %v3338
        %v3407 = vunpack.c.l.b16 %v3339
        %v3408 = vunpack.c.l.b16 %v3340
        %v3409 = vunpack.c.l.b16 %v3341
        %v3410 = vunpack.c.l.b16 %v3342
        %v3411 = vunpack.c.l.b16 %v3343
        %v3412 = vunpack.c.l.b16 %v3344
        %v3413 = vunpack.c.l.b16 %v3345
        %v3414 = vunpack.c.l.b16 %v3346
        %v3415 = vunpack.c.l.b16 %v3347
        %v3416 = vunpack.c.l.b16 %v3348
        %v3417 = vunpack.c.l.b16 %v3349
        %v3418 = vunpack.c.l.b16 %v3350
        %v3419 = vunpack.c.l.b16 %v3351
        %v3420 = vunpack.c.l.b16 %v3352
        %v3421 = vunpack.c.l.b16 %v3353
        %v3422 = vunpack.c.l.b16 %v3354
        %v3423 = vunpack.c.l.b16 %v3355
        %v3424 = vunpack.c.l.b16 %v3356
        %v3425 = vunpack.c.l.b16 %v3357
        %v3426 = vunpack.c.l.b16 %v3358
        %v3427 = vunpack.c.l.b16 %v3359
        %v3428 = vunpack.c.l.b16 %v3360
        %v3429 = vunpack.c.l.b16 %v3361
        %v3430 = vunpack.c.l.b16 %v3362
        %v3431 = vunpack.c.l.b16 %v3363
        %v3432 = vunpack.c.l.b16 %v3364
        %v3433 = vpack.c.b16 %v3401, %v3400
        %v3434 = vpack.c.b16 %v3403, %v3402
        %v3435 = vpack.c.b16 %v3405, %v3404
        %v3436 = vpack.c.b16 %v3407, %v3406
        %v3437 = vpack.c.b16 %v3409, %v3408
        %v3438 = vpack.c.b16 %v3411, %v3410
        %v3439 = vpack.c.b16 %v3413, %v3412
        %v3440 = vpack.c.b16 %v3415, %v3414
        %v3441 = vpack.c.b16 %v3417, %v3416
        %v3442 = vpack.c.b16 %v3419, %v3418
        %v3443 = vpack.c.b16 %v3421, %v3420
        %v3444 = vpack.c.b16 %v3423, %v3422
        %v3445 = vpack.c.b16 %v3425, %v3424
        %v3446 = vpack.c.b16 %v3427, %v3426
        %v3447 = vpack.c.b16 %v3429, %v3428
        %v3448 = vpack.c.b16 %v3431, %v3430
        %v3449 = vpack.c.b16 %v3432, %v3432
        %v3450 = vrot.slane %v3433, 1
        %v3451 = vrot.slane %v3434, 1
        %v3452 = vsel %vm2169, %v3450, %v3451
        %v3453 = vrot.slane %v3435, 1
        %v3454 = vsel %vm2169, %v3451, %v3453
        %v3455 = vrot.slane %v3436, 1
        %v3456 = vsel %vm2169, %v3453, %v3455
        %v3457 = vrot.slane %v3437, 1
        %v3458 = vsel %vm2169, %v3455, %v3457
        %v3459 = vrot.slane %v3438, 1
        %v3460 = vsel %vm2169, %v3457, %v3459
        %v3461 = vrot.slane %v3439, 1
        %v3462 = vsel %vm2169, %v3459, %v3461
        %v3463 = vrot.slane %v3440, 1
        %v3464 = vsel %vm2169, %v3461, %v3463
        %v3465 = vrot.slane %v3441, 1
        %v3466 = vsel %vm2169, %v3463, %v3465
        %v3467 = vrot.slane %v3442, 1
        %v3468 = vsel %vm2169, %v3465, %v3467
        %v3469 = vrot.slane %v3443, 1
        %v3470 = vsel %vm2169, %v3467, %v3469
        %v3471 = vrot.slane %v3444, 1
        %v3472 = vsel %vm2169, %v3469, %v3471
        %v3473 = vrot.slane %v3445, 1
        %v3474 = vsel %vm2169, %v3471, %v3473
        %v3475 = vrot.slane %v3446, 1
        %v3476 = vsel %vm2169, %v3473, %v3475
        %v3477 = vrot.slane %v3447, 1
        %v3478 = vsel %vm2169, %v3475, %v3477
        %v3479 = vrot.slane %v3448, 1
        %v3480 = vsel %vm2169, %v3477, %v3479
        %v3481 = vrot.slane %v3449, 1
        %v3482 = vsel %vm2169, %v3479, %v3481
        %v3484 = vsel %vm1285, %v3452, 0
        %v3487 = vsel %vm1285, %v3454, 0
        %v3490 = vsel %vm1285, %v3456, 0
        %v3493 = vsel %vm1285, %v3458, 0
        %v3496 = vsel %vm1285, %v3460, 0
        %v3499 = vsel %vm1285, %v3462, 0
        %v3502 = vsel %vm1285, %v3464, 0
        %v3505 = vsel %vm1285, %v3466, 0
        %v3508 = vsel %vm1285, %v3468, 0
        %v3511 = vsel %vm1285, %v3470, 0
        %v3514 = vsel %vm1285, %v3472, 0
        %v3517 = vsel %vm1285, %v3474, 0
        %v3520 = vsel %vm1285, %v3476, 0
        %v3523 = vsel %vm1285, %v3478, 0
        %v3526 = vsel %vm1285, %v3480, 0
        %v3529 = vsel %vm1285, %v3482, 0
        %v3532 = vsel %vm1334, %v3366, 0
        %3534 = vmatprep.subr.bf16.mxu0 0
        %3535 = vmatpush1.bf16.msra.mxu0 %v3532
        %3536 = vmatprep.subr.bf16.mxu0 0
        %3537 = vmatpush1.bf16.msra.mxu0 0
        %3538 = vmatprep.subr.bf16.mxu0 0
        %3539 = vmatpush1.bf16.msra.mxu0 0
        %3540 = vmatprep.subr.bf16.mxu0 0
        %3541 = vmatpush1.bf16.msra.mxu0 0
        %3542 = vmatprep.subr.bf16.mxu0 0
        %3543 = vmatpush1.bf16.msra.mxu0 0
        %3544 = vmatprep.subr.bf16.mxu0 0
        %3545 = vmatpush1.bf16.msra.mxu0 0
        %3546 = vmatprep.subr.bf16.mxu0 0
        %3547 = vmatpush1.bf16.msra.mxu0 0
        %3548 = vmatprep.subr.bf16.mxu0 0
        %3549 = vmatpush1.bf16.msra.mxu0 0
        %3550 = vmatprep.subr.bf16.mxu0 0
        %3551 = vmatpush1.bf16.msra.mxu0 0
        %3552 = vmatprep.subr.bf16.mxu0 0
        %3553 = vmatpush1.bf16.msra.mxu0 0
        %3554 = vmatprep.subr.bf16.mxu0 0
        %3555 = vmatpush1.bf16.msra.mxu0 0
        %3556 = vmatprep.subr.bf16.mxu0 0
        %3557 = vmatpush1.bf16.msra.mxu0 0
        %3558 = vmatprep.subr.bf16.mxu0 0
        %3559 = vmatpush1.bf16.msra.mxu0 0
        %3560 = vmatprep.subr.bf16.mxu0 0
        %3561 = vmatpush1.bf16.msra.mxu0 0
        %3562 = vmatprep.subr.bf16.mxu0 0
        %3563 = vmatpush1.bf16.msra.mxu0 0
        %3564 = vmatprep.subr.bf16.mxu0 0
        %3565 = vmatpush1.bf16.msra.mxu0 0
        %3566 = vmatprep.mubr.bf16.mxu0 0
        %3567 = vmatmul.mubr.bf16.gmra.mrb[0].mxu0 %v3484
        %v3568 = vpop.f32.mrb[0].mxu0
        %v3569 = vadd.f32 0.0, %v3568
        %v3570 = vpop.f32.mrb[0].mxu0
        %v3571 = vpop.f32.mrb[0].mxu0
        %v3572 = vadd.f32 0.0, %v3571
        %v3573 = vpop.f32.mrb[0].mxu0
        %3574 = vmatprep.mubr.bf16.mxu0 0
        %3575 = vmatmul.mubr.bf16.gmra.mrb[0].mxu0 %v3487
        %v3576 = vpop.f32.mrb[0].mxu0
        %v3577 = vadd.f32 0.0, %v3576
        %v3578 = vpop.f32.mrb[0].mxu0
        %v3579 = vpop.f32.mrb[0].mxu0
        %v3580 = vadd.f32 0.0, %v3579
        %v3581 = vpop.f32.mrb[0].mxu0
        %3582 = vmatprep.mubr.bf16.mxu0 0
        %3583 = vmatmul.mubr.bf16.gmra.mrb[0].mxu0 %v3490
        %v3584 = vpop.f32.mrb[0].mxu0
        %v3585 = vadd.f32 0.0, %v3584
        %v3586 = vpop.f32.mrb[0].mxu0
        %v3587 = vpop.f32.mrb[0].mxu0
        %v3588 = vadd.f32 0.0, %v3587
        %v3589 = vpop.f32.mrb[0].mxu0
        %3590 = vmatprep.mubr.bf16.mxu0 0
        %3591 = vmatmul.mubr.bf16.gmra.mrb[0].mxu0 %v3493
        %v3592 = vpop.f32.mrb[0].mxu0
        %v3593 = vadd.f32 0.0, %v3592
        %v3594 = vpop.f32.mrb[0].mxu0
        %v3595 = vpop.f32.mrb[0].mxu0
        %v3596 = vadd.f32 0.0, %v3595
        %v3597 = vpop.f32.mrb[0].mxu0
        %3598 = vmatprep.mubr.bf16.mxu0 0
        %3599 = vmatmul.mubr.bf16.gmra.mrb[0].mxu0 %v3496
        %v3600 = vpop.f32.mrb[0].mxu0
        %v3601 = vadd.f32 0.0, %v3600
        %v3602 = vpop.f32.mrb[0].mxu0
        %v3603 = vpop.f32.mrb[0].mxu0
        %v3604 = vadd.f32 0.0, %v3603
        %v3605 = vpop.f32.mrb[0].mxu0
        %3606 = vmatprep.mubr.bf16.mxu0 0
        %3607 = vmatmul.mubr.bf16.gmra.mrb[0].mxu0 %v3499
        %v3608 = vpop.f32.mrb[0].mxu0
        %v3609 = vadd.f32 0.0, %v3608
        %v3610 = vpop.f32.mrb[0].mxu0
        %v3611 = vpop.f32.mrb[0].mxu0
        %v3612 = vadd.f32 0.0, %v3611
        %v3613 = vpop.f32.mrb[0].mxu0
        %3614 = vmatprep.mubr.bf16.mxu0 0
        %3615 = vmatmul.mubr.bf16.gmra.mrb[0].mxu0 %v3502
        %v3616 = vpop.f32.mrb[0].mxu0
        %v3617 = vadd.f32 0.0, %v3616
        %v3618 = vpop.f32.mrb[0].mxu0
        %v3619 = vpop.f32.mrb[0].mxu0
        %v3620 = vadd.f32 0.0, %v3619
        %v3621 = vpop.f32.mrb[0].mxu0
        %3622 = vmatprep.mubr.bf16.mxu0 0
        %3623 = vmatmul.mubr.bf16.gmra.mrb[0].mxu0 %v3505
        %v3624 = vpop.f32.mrb[0].mxu0
        %v3625 = vadd.f32 0.0, %v3624
        %v3626 = vpop.f32.mrb[0].mxu0
        %v3627 = vpop.f32.mrb[0].mxu0
        %v3628 = vadd.f32 0.0, %v3627
        %v3629 = vpop.f32.mrb[0].mxu0
        %3630 = vmatprep.mubr.bf16.mxu0 0
        %3631 = vmatmul.mubr.bf16.gmra.mrb[0].mxu0 %v3508
        %v3632 = vpop.f32.mrb[0].mxu0
        %v3633 = vadd.f32 0.0, %v3632
        %v3634 = vpop.f32.mrb[0].mxu0
        %v3635 = vpop.f32.mrb[0].mxu0
        %v3636 = vadd.f32 0.0, %v3635
        %v3637 = vpop.f32.mrb[0].mxu0
        %3638 = vmatprep.mubr.bf16.mxu0 0
        %3639 = vmatmul.mubr.bf16.gmra.mrb[0].mxu0 %v3511
        %v3640 = vpop.f32.mrb[0].mxu0
        %v3641 = vadd.f32 0.0, %v3640
        %v3642 = vpop.f32.mrb[0].mxu0
        %v3643 = vpop.f32.mrb[0].mxu0
        %v3644 = vadd.f32 0.0, %v3643
        %v3645 = vpop.f32.mrb[0].mxu0
        %3646 = vmatprep.mubr.bf16.mxu0 0
        %3647 = vmatmul.mubr.bf16.gmra.mrb[0].mxu0 %v3514
        %v3648 = vpop.f32.mrb[0].mxu0
        %v3649 = vadd.f32 0.0, %v3648
        %v3650 = vpop.f32.mrb[0].mxu0
        %v3651 = vpop.f32.mrb[0].mxu0
        %v3652 = vadd.f32 0.0, %v3651
        %v3653 = vpop.f32.mrb[0].mxu0
        %3654 = vmatprep.mubr.bf16.mxu0 0
        %3655 = vmatmul.mubr.bf16.gmra.mrb[0].mxu0 %v3517
        %v3656 = vpop.f32.mrb[0].mxu0
        %v3657 = vadd.f32 0.0, %v3656
        %v3658 = vpop.f32.mrb[0].mxu0
        %v3659 = vpop.f32.mrb[0].mxu0
        %v3660 = vadd.f32 0.0, %v3659
        %v3661 = vpop.f32.mrb[0].mxu0
        %3662 = vmatprep.mubr.bf16.mxu0 0
        %3663 = vmatmul.mubr.bf16.gmra.mrb[0].mxu0 %v3520
        %v3664 = vpop.f32.mrb[0].mxu0
        %v3665 = vadd.f32 0.0, %v3664
        %v3666 = vpop.f32.mrb[0].mxu0
        %v3667 = vpop.f32.mrb[0].mxu0
        %v3668 = vadd.f32 0.0, %v3667
        %v3669 = vpop.f32.mrb[0].mxu0
        %3670 = vmatprep.mubr.bf16.mxu0 0
        %3671 = vmatmul.mubr.bf16.gmra.mrb[0].mxu0 %v3523
        %v3672 = vpop.f32.mrb[0].mxu0
        %v3673 = vadd.f32 0.0, %v3672
        %v3674 = vpop.f32.mrb[0].mxu0
        %v3675 = vpop.f32.mrb[0].mxu0
        %v3676 = vadd.f32 0.0, %v3675
        %v3677 = vpop.f32.mrb[0].mxu0
        %3678 = vmatprep.mubr.bf16.mxu0 0
        %3679 = vmatmul.mubr.bf16.gmra.mrb[0].mxu0 %v3526
        %v3680 = vpop.f32.mrb[0].mxu0
        %v3681 = vadd.f32 0.0, %v3680
        %v3682 = vpop.f32.mrb[0].mxu0
        %v3683 = vpop.f32.mrb[0].mxu0
        %v3684 = vadd.f32 0.0, %v3683
        %v3685 = vpop.f32.mrb[0].mxu0
        %3686 = vmatprep.mubr.bf16.mxu0 0
        %3687 = vmatmul.mubr.bf16.gmra.mrb[0].mxu0 %v3529
        %v3688 = vpop.f32.mrb[0].mxu0
        %v3689 = vadd.f32 0.0, %v3688
        %v3690 = vpop.f32.mrb[0].mxu0
        %v3691 = vpop.f32.mrb[0].mxu0
        %v3692 = vadd.f32 0.0, %v3691
        %v3693 = vpop.f32.mrb[0].mxu0
        %3694 = vdwg.mxu0
        %v3695 = vadd.f32 %v3299, %v3569
        %v3696 = vadd.f32 %v3300, %v3572
        %v3697 = vadd.f32 %v3301, %v3577
        %v3698 = vadd.f32 %v3302, %v3580
        %v3699 = vadd.f32 %v3303, %v3585
        %v3700 = vadd.f32 %v3304, %v3588
        %v3701 = vadd.f32 %v3305, %v3593
        %v3702 = vadd.f32 %v3306, %v3596
        %v3703 = vadd.f32 %v3307, %v3601
        %v3704 = vadd.f32 %v3308, %v3604
        %v3705 = vadd.f32 %v3309, %v3609
        %v3706 = vadd.f32 %v3310, %v3612
        %v3707 = vadd.f32 %v3311, %v3617
        %v3708 = vadd.f32 %v3312, %v3620
        %v3709 = vadd.f32 %v3313, %v3625
        %v3710 = vadd.f32 %v3314, %v3628
        %v3711 = vadd.f32 %v3315, %v3633
        %v3712 = vadd.f32 %v3316, %v3636
        %v3713 = vadd.f32 %v3317, %v3641
        %v3714 = vadd.f32 %v3318, %v3644
        %v3715 = vadd.f32 %v3319, %v3649
        %v3716 = vadd.f32 %v3320, %v3652
        %v3717 = vadd.f32 %v3321, %v3657
        %v3718 = vadd.f32 %v3322, %v3660
        %v3719 = vadd.f32 %v3323, %v3665
        %v3720 = vadd.f32 %v3324, %v3668
        %v3721 = vadd.f32 %v3325, %v3673
        %v3722 = vadd.f32 %v3326, %v3676
        %v3723 = vadd.f32 %v3327, %v3681
        %v3724 = vadd.f32 %v3328, %v3684
        %v3725 = vadd.f32 %v3329, %v3689
        %v3726 = vadd.f32 %v3330, %v3692
        %v3727 = vld [vmem:[%s420 + $0x10] sm:$0xf]
        %v3728 = vld [vmem:[%s420 + $0x14] sm:$0xf]
        %v3729 = vld [vmem:[%s420 + $0x18] sm:$0xf]
        %v3730 = vld [vmem:[%s420 + $0x1c] sm:$0xf]
        %v3731 = vld [vmem:[%s420 + $0x20] sm:$0xf]
        %v3732 = vld [vmem:[%s420 + $0x24] sm:$0xf]
        %v3733 = vld [vmem:[%s420 + $0x28] sm:$0xf]
        %v3734 = vld [vmem:[%s420 + $0x2c] sm:$0xf]
        %v3735 = vld [vmem:[%s420 + $0x30] sm:$0xf]
        %v3736 = vld [vmem:[%s420 + $0x34] sm:$0xf]
        %v3737 = vld [vmem:[%s420 + $0x38] sm:$0xf]
        %v3738 = vld [vmem:[%s420 + $0x3c] sm:$0xf]
        %v3739 = vld [vmem:[%s420 + $0x40] sm:$0xf]
        %v3740 = vld [vmem:[%s420 + $0x44] sm:$0xf]
        %v3741 = vld [vmem:[%s420 + $0x48] sm:$0xf]
        %v3742 = vld [vmem:[%s420 + $0x4c] sm:$0xf]
        %v3743 = vld [vmem:[%s420 + $0x50] sm:$0xf]
        %v3744 = vld [vmem:[%s420 + $0x54] sm:$0xf]
        %v3745 = vld [vmem:[%s420 + $0x58] sm:$0xf]
        %v3746 = vld [vmem:[%s420 + $0x5c] sm:$0xf]
        %v3747 = vld [vmem:[%s420 + $0x60] sm:$0xf]
        %v3748 = vld [vmem:[%s420 + $0x64] sm:$0xf]
        %v3749 = vld [vmem:[%s420 + $0x68] sm:$0xf]
        %v3750 = vld [vmem:[%s420 + $0x6c] sm:$0xf]
        %v3751 = vld [vmem:[%s420 + $0x70] sm:$0xf]
        %v3752 = vld [vmem:[%s420 + $0x74] sm:$0xf]
        %v3753 = vld [vmem:[%s420 + $0x78] sm:$0xf]
        %v3754 = vld [vmem:[%s420 + $0x7c] sm:$0xf]
        %v3755 = vld [vmem:[%s420 + $0x80] sm:$0xf]
        %v3756 = vld [vmem:[%s420 + $0x84] sm:$0xf]
        %v3757 = vld [vmem:[%s420 + $0x88] sm:$0xf]
        %v3758 = vld [vmem:[%s420 + $0x8c] sm:$0xf]
        %v3759 = vsel %vm1001, %v3727, 0
        %v3760 = vsel %vm1002, %v3728, 0
        %v3761 = vsel %vm1003, %v3729, 0
        %v3762 = vsel %vm1004, %v3730, 0
        %v3763 = vsel %vm1005, %v3731, 0
        %v3764 = vsel %vm1006, %v3732, 0
        %v3765 = vsel %vm1007, %v3733, 0
        %v3766 = vsel %vm1008, %v3734, 0
        %v3767 = vsel %vm1009, %v3735, 0
        %v3768 = vsel %vm1010, %v3736, 0
        %v3769 = vsel %vm1011, %v3737, 0
        %v3770 = vsel %vm1012, %v3738, 0
        %v3771 = vsel %vm1013, %v3739, 0
        %v3772 = vsel %vm1014, %v3740, 0
        %v3773 = vsel %vm1015, %v3741, 0
        %v3774 = vsel %vm1016, %v3742, 0
        %v3775 = vsel %vm1017, %v3743, 0
        %v3776 = vsel %vm1018, %v3744, 0
        %v3777 = vsel %vm1019, %v3745, 0
        %v3778 = vsel %vm1020, %v3746, 0
        %v3779 = vsel %vm1021, %v3747, 0
        %v3780 = vsel %vm1022, %v3748, 0
        %v3781 = vsel %vm1023, %v3749, 0
        %v3782 = vsel %vm1024, %v3750, 0
        %v3783 = vsel %vm1025, %v3751, 0
        %v3784 = vsel %vm1026, %v3752, 0
        %v3785 = vsel %vm1027, %v3753, 0
        %v3786 = vsel %vm1028, %v3754, 0
        %v3787 = vsel %vm1029, %v3755, 0
        %v3788 = vsel %vm1030, %v3756, 0
        %v3789 = vsel %vm1031, %v3757, 0
        %v3790 = vsel %vm1032, %v3758, 0
        %s3791 = scalar_lea.vmem %s1, 12
        %v3792 = vld [vmem:[%s3791] sm:$0x3]
        %v3825 = vunpack.c.l.b16 %v3759
        %v3826 = vunpack.c.l.b16 %v3760
        %v3827 = vunpack.c.l.b16 %v3761
        %v3828 = vunpack.c.l.b16 %v3762
        %v3829 = vunpack.c.l.b16 %v3763
        %v3830 = vunpack.c.l.b16 %v3764
        %v3831 = vunpack.c.l.b16 %v3765
        %v3832 = vunpack.c.l.b16 %v3766
        %v3833 = vunpack.c.l.b16 %v3767
        %v3834 = vunpack.c.l.b16 %v3768
        %v3835 = vunpack.c.l.b16 %v3769
        %v3836 = vunpack.c.l.b16 %v3770
        %v3837 = vunpack.c.l.b16 %v3771
        %v3838 = vunpack.c.l.b16 %v3772
        %v3839 = vunpack.c.l.b16 %v3773
        %v3840 = vunpack.c.l.b16 %v3774
        %v3841 = vunpack.c.l.b16 %v3775
        %v3842 = vunpack.c.l.b16 %v3776
        %v3843 = vunpack.c.l.b16 %v3777
        %v3844 = vunpack.c.l.b16 %v3778
        %v3845 = vunpack.c.l.b16 %v3779
        %v3846 = vunpack.c.l.b16 %v3780
        %v3847 = vunpack.c.l.b16 %v3781
        %v3848 = vunpack.c.l.b16 %v3782
        %v3849 = vunpack.c.l.b16 %v3783
        %v3850 = vunpack.c.l.b16 %v3784
        %v3851 = vunpack.c.l.b16 %v3785
        %v3852 = vunpack.c.l.b16 %v3786
        %v3853 = vunpack.c.l.b16 %v3787
        %v3854 = vunpack.c.l.b16 %v3788
        %v3855 = vunpack.c.l.b16 %v3789
        %v3856 = vunpack.c.l.b16 %v3790
        %v3857 = vpack.c.b16 %v3826, %v3825
        %v3858 = vpack.c.b16 %v3828, %v3827
        %v3859 = vpack.c.b16 %v3830, %v3829
        %v3860 = vpack.c.b16 %v3832, %v3831
        %v3861 = vpack.c.b16 %v3834, %v3833
        %v3862 = vpack.c.b16 %v3836, %v3835
        %v3863 = vpack.c.b16 %v3838, %v3837
        %v3864 = vpack.c.b16 %v3840, %v3839
        %v3865 = vpack.c.b16 %v3842, %v3841
        %v3866 = vpack.c.b16 %v3844, %v3843
        %v3867 = vpack.c.b16 %v3846, %v3845
        %v3868 = vpack.c.b16 %v3848, %v3847
        %v3869 = vpack.c.b16 %v3850, %v3849
        %v3870 = vpack.c.b16 %v3852, %v3851
        %v3871 = vpack.c.b16 %v3854, %v3853
        %v3872 = vpack.c.b16 %v3856, %v3855
        %v3874 = vsel %vm1285, %v3857, 0
        %v3877 = vsel %vm1285, %v3858, 0
        %v3880 = vsel %vm1285, %v3859, 0
        %v3883 = vsel %vm1285, %v3860, 0
        %v3886 = vsel %vm1285, %v3861, 0
        %v3889 = vsel %vm1285, %v3862, 0
        %v3892 = vsel %vm1285, %v3863, 0
        %v3895 = vsel %vm1285, %v3864, 0
        %v3898 = vsel %vm1285, %v3865, 0
        %v3901 = vsel %vm1285, %v3866, 0
        %v3904 = vsel %vm1285, %v3867, 0
        %v3907 = vsel %vm1285, %v3868, 0
        %v3910 = vsel %vm1285, %v3869, 0
        %v3913 = vsel %vm1285, %v3870, 0
        %v3916 = vsel %vm1285, %v3871, 0
        %v3919 = vsel %vm1285, %v3872, 0
        %v3922 = vsel %vm1334, %v3792, 0
        %3924 = vmatprep.subr.bf16.mxu0 0
        %3925 = vmatpush1.bf16.msra.mxu0 %v3922
        %3926 = vmatprep.subr.bf16.mxu0 0
        %3927 = vmatpush1.bf16.msra.mxu0 0
        %3928 = vmatprep.subr.bf16.mxu0 0
        %3929 = vmatpush1.bf16.msra.mxu0 0
        %3930 = vmatprep.subr.bf16.mxu0 0
        %3931 = vmatpush1.bf16.msra.mxu0 0
        %3932 = vmatprep.subr.bf16.mxu0 0
        %3933 = vmatpush1.bf16.msra.mxu0 0
        %3934 = vmatprep.subr.bf16.mxu0 0
        %3935 = vmatpush1.bf16.msra.mxu0 0
        %3936 = vmatprep.subr.bf16.mxu0 0
        %3937 = vmatpush1.bf16.msra.mxu0 0
        %3938 = vmatprep.subr.bf16.mxu0 0
        %3939 = vmatpush1.bf16.msra.mxu0 0
        %3940 = vmatprep.subr.bf16.mxu0 0
        %3941 = vmatpush1.bf16.msra.mxu0 0
        %3942 = vmatprep.subr.bf16.mxu0 0
        %3943 = vmatpush1.bf16.msra.mxu0 0
        %3944 = vmatprep.subr.bf16.mxu0 0
        %3945 = vmatpush1.bf16.msra.mxu0 0
        %3946 = vmatprep.subr.bf16.mxu0 0
        %3947 = vmatpush1.bf16.msra.mxu0 0
        %3948 = vmatprep.subr.bf16.mxu0 0
        %3949 = vmatpush1.bf16.msra.mxu0 0
        %3950 = vmatprep.subr.bf16.mxu0 0
        %3951 = vmatpush1.bf16.msra.mxu0 0
        %3952 = vmatprep.subr.bf16.mxu0 0
        %3953 = vmatpush1.bf16.msra.mxu0 0
        %3954 = vmatprep.subr.bf16.mxu0 0
        %3955 = vmatpush1.bf16.msra.mxu0 0
        %3956 = vmatprep.mubr.bf16.mxu0 0
        %3957 = vmatmul.mubr.bf16.gmra.mrb[0].mxu0 %v3874
        %v3958 = vpop.f32.mrb[0].mxu0
        %v3959 = vadd.f32 0.0, %v3958
        %v3960 = vpop.f32.mrb[0].mxu0
        %v3961 = vpop.f32.mrb[0].mxu0
        %v3962 = vadd.f32 0.0, %v3961
        %v3963 = vpop.f32.mrb[0].mxu0
        %3964 = vmatprep.mubr.bf16.mxu0 0
        %3965 = vmatmul.mubr.bf16.gmra.mrb[0].mxu0 %v3877
        %v3966 = vpop.f32.mrb[0].mxu0
        %v3967 = vadd.f32 0.0, %v3966
        %v3968 = vpop.f32.mrb[0].mxu0
        %v3969 = vpop.f32.mrb[0].mxu0
        %v3970 = vadd.f32 0.0, %v3969
        %v3971 = vpop.f32.mrb[0].mxu0
        %3972 = vmatprep.mubr.bf16.mxu0 0
        %3973 = vmatmul.mubr.bf16.gmra.mrb[0].mxu0 %v3880
        %v3974 = vpop.f32.mrb[0].mxu0
        %v3975 = vadd.f32 0.0, %v3974
        %v3976 = vpop.f32.mrb[0].mxu0
        %v3977 = vpop.f32.mrb[0].mxu0
        %v3978 = vadd.f32 0.0, %v3977
        %v3979 = vpop.f32.mrb[0].mxu0
        %3980 = vmatprep.mubr.bf16.mxu0 0
        %3981 = vmatmul.mubr.bf16.gmra.mrb[0].mxu0 %v3883
        %v3982 = vpop.f32.mrb[0].mxu0
        %v3983 = vadd.f32 0.0, %v3982
        %v3984 = vpop.f32.mrb[0].mxu0
        %v3985 = vpop.f32.mrb[0].mxu0
        %v3986 = vadd.f32 0.0, %v3985
        %v3987 = vpop.f32.mrb[0].mxu0
        %3988 = vmatprep.mubr.bf16.mxu0 0
        %3989 = vmatmul.mubr.bf16.gmra.mrb[0].mxu0 %v3886
        %v3990 = vpop.f32.mrb[0].mxu0
        %v3991 = vadd.f32 0.0, %v3990
        %v3992 = vpop.f32.mrb[0].mxu0
        %v3993 = vpop.f32.mrb[0].mxu0
        %v3994 = vadd.f32 0.0, %v3993
        %v3995 = vpop.f32.mrb[0].mxu0
        %3996 = vmatprep.mubr.bf16.mxu0 0
        %3997 = vmatmul.mubr.bf16.gmra.mrb[0].mxu0 %v3889
        %v3998 = vpop.f32.mrb[0].mxu0
        %v3999 = vadd.f32 0.0, %v3998
        %v4000 = vpop.f32.mrb[0].mxu0
        %v4001 = vpop.f32.mrb[0].mxu0
        %v4002 = vadd.f32 0.0, %v4001
        %v4003 = vpop.f32.mrb[0].mxu0
        %4004 = vmatprep.mubr.bf16.mxu0 0
        %4005 = vmatmul.mubr.bf16.gmra.mrb[0].mxu0 %v3892
        %v4006 = vpop.f32.mrb[0].mxu0
        %v4007 = vadd.f32 0.0, %v4006
        %v4008 = vpop.f32.mrb[0].mxu0
        %v4009 = vpop.f32.mrb[0].mxu0
        %v4010 = vadd.f32 0.0, %v4009
        %v4011 = vpop.f32.mrb[0].mxu0
        %4012 = vmatprep.mubr.bf16.mxu0 0
        %4013 = vmatmul.mubr.bf16.gmra.mrb[0].mxu0 %v3895
        %v4014 = vpop.f32.mrb[0].mxu0
        %v4015 = vadd.f32 0.0, %v4014
        %v4016 = vpop.f32.mrb[0].mxu0
        %v4017 = vpop.f32.mrb[0].mxu0
        %v4018 = vadd.f32 0.0, %v4017
        %v4019 = vpop.f32.mrb[0].mxu0
        %4020 = vmatprep.mubr.bf16.mxu0 0
        %4021 = vmatmul.mubr.bf16.gmra.mrb[0].mxu0 %v3898
        %v4022 = vpop.f32.mrb[0].mxu0
        %v4023 = vadd.f32 0.0, %v4022
        %v4024 = vpop.f32.mrb[0].mxu0
        %v4025 = vpop.f32.mrb[0].mxu0
        %v4026 = vadd.f32 0.0, %v4025
        %v4027 = vpop.f32.mrb[0].mxu0
        %4028 = vmatprep.mubr.bf16.mxu0 0
        %4029 = vmatmul.mubr.bf16.gmra.mrb[0].mxu0 %v3901
        %v4030 = vpop.f32.mrb[0].mxu0
        %v4031 = vadd.f32 0.0, %v4030
        %v4032 = vpop.f32.mrb[0].mxu0
        %v4033 = vpop.f32.mrb[0].mxu0
        %v4034 = vadd.f32 0.0, %v4033
        %v4035 = vpop.f32.mrb[0].mxu0
        %4036 = vmatprep.mubr.bf16.mxu0 0
        %4037 = vmatmul.mubr.bf16.gmra.mrb[0].mxu0 %v3904
        %v4038 = vpop.f32.mrb[0].mxu0
        %v4039 = vadd.f32 0.0, %v4038
        %v4040 = vpop.f32.mrb[0].mxu0
        %v4041 = vpop.f32.mrb[0].mxu0
        %v4042 = vadd.f32 0.0, %v4041
        %v4043 = vpop.f32.mrb[0].mxu0
        %4044 = vmatprep.mubr.bf16.mxu0 0
        %4045 = vmatmul.mubr.bf16.gmra.mrb[0].mxu0 %v3907
        %v4046 = vpop.f32.mrb[0].mxu0
        %v4047 = vadd.f32 0.0, %v4046
        %v4048 = vpop.f32.mrb[0].mxu0
        %v4049 = vpop.f32.mrb[0].mxu0
        %v4050 = vadd.f32 0.0, %v4049
        %v4051 = vpop.f32.mrb[0].mxu0
        %4052 = vmatprep.mubr.bf16.mxu0 0
        %4053 = vmatmul.mubr.bf16.gmra.mrb[0].mxu0 %v3910
        %v4054 = vpop.f32.mrb[0].mxu0
        %v4055 = vadd.f32 0.0, %v4054
        %v4056 = vpop.f32.mrb[0].mxu0
        %v4057 = vpop.f32.mrb[0].mxu0
        %v4058 = vadd.f32 0.0, %v4057
        %v4059 = vpop.f32.mrb[0].mxu0
        %4060 = vmatprep.mubr.bf16.mxu0 0
        %4061 = vmatmul.mubr.bf16.gmra.mrb[0].mxu0 %v3913
        %v4062 = vpop.f32.mrb[0].mxu0
        %v4063 = vadd.f32 0.0, %v4062
        %v4064 = vpop.f32.mrb[0].mxu0
        %v4065 = vpop.f32.mrb[0].mxu0
        %v4066 = vadd.f32 0.0, %v4065
        %v4067 = vpop.f32.mrb[0].mxu0
        %4068 = vmatprep.mubr.bf16.mxu0 0
        %4069 = vmatmul.mubr.bf16.gmra.mrb[0].mxu0 %v3916
        %v4070 = vpop.f32.mrb[0].mxu0
        %v4071 = vadd.f32 0.0, %v4070
        %v4072 = vpop.f32.mrb[0].mxu0
        %v4073 = vpop.f32.mrb[0].mxu0
        %v4074 = vadd.f32 0.0, %v4073
        %v4075 = vpop.f32.mrb[0].mxu0
        %4076 = vmatprep.mubr.bf16.mxu0 0
        %4077 = vmatmul.mubr.bf16.gmra.mrb[0].mxu0 %v3919
        %v4078 = vpop.f32.mrb[0].mxu0
        %v4079 = vadd.f32 0.0, %v4078
        %v4080 = vpop.f32.mrb[0].mxu0
        %v4081 = vpop.f32.mrb[0].mxu0
        %v4082 = vadd.f32 0.0, %v4081
        %v4083 = vpop.f32.mrb[0].mxu0
        %4084 = vdwg.mxu0
        %v4085 = vadd.f32 %v3695, %v3959
        %v4086 = vadd.f32 %v3696, %v3962
        %v4087 = vadd.f32 %v3697, %v3967
        %v4088 = vadd.f32 %v3698, %v3970
        %v4089 = vadd.f32 %v3699, %v3975
        %v4090 = vadd.f32 %v3700, %v3978
        %v4091 = vadd.f32 %v3701, %v3983
        %v4092 = vadd.f32 %v3702, %v3986
        %v4093 = vadd.f32 %v3703, %v3991
        %v4094 = vadd.f32 %v3704, %v3994
        %v4095 = vadd.f32 %v3705, %v3999
        %v4096 = vadd.f32 %v3706, %v4002
        %v4097 = vadd.f32 %v3707, %v4007
        %v4098 = vadd.f32 %v3708, %v4010
        %v4099 = vadd.f32 %v3709, %v4015
        %v4100 = vadd.f32 %v3710, %v4018
        %v4101 = vadd.f32 %v3711, %v4023
        %v4102 = vadd.f32 %v3712, %v4026
        %v4103 = vadd.f32 %v3713, %v4031
        %v4104 = vadd.f32 %v3714, %v4034
        %v4105 = vadd.f32 %v3715, %v4039
        %v4106 = vadd.f32 %v3716, %v4042
        %v4107 = vadd.f32 %v3717, %v4047
        %v4108 = vadd.f32 %v3718, %v4050
        %v4109 = vadd.f32 %v3719, %v4055
        %v4110 = vadd.f32 %v3720, %v4058
        %v4111 = vadd.f32 %v3721, %v4063
        %v4112 = vadd.f32 %v3722, %v4066
        %v4113 = vadd.f32 %v3723, %v4071
        %v4114 = vadd.f32 %v3724, %v4074
        %v4115 = vadd.f32 %v3725, %v4079
        %v4116 = vadd.f32 %v3726, %v4082
        %v4117 = vld [vmem:[%s420 + $0x10] sm:$0xf]
        %v4118 = vld [vmem:[%s420 + $0x14] sm:$0xf]
        %v4119 = vld [vmem:[%s420 + $0x18] sm:$0xf]
        %v4120 = vld [vmem:[%s420 + $0x1c] sm:$0xf]
        %v4121 = vld [vmem:[%s420 + $0x20] sm:$0xf]
        %v4122 = vld [vmem:[%s420 + $0x24] sm:$0xf]
        %v4123 = vld [vmem:[%s420 + $0x28] sm:$0xf]
        %v4124 = vld [vmem:[%s420 + $0x2c] sm:$0xf]
        %v4125 = vld [vmem:[%s420 + $0x30] sm:$0xf]
        %v4126 = vld [vmem:[%s420 + $0x34] sm:$0xf]
        %v4127 = vld [vmem:[%s420 + $0x38] sm:$0xf]
        %v4128 = vld [vmem:[%s420 + $0x3c] sm:$0xf]
        %v4129 = vld [vmem:[%s420 + $0x40] sm:$0xf]
        %v4130 = vld [vmem:[%s420 + $0x44] sm:$0xf]
        %v4131 = vld [vmem:[%s420 + $0x48] sm:$0xf]
        %v4132 = vld [vmem:[%s420 + $0x4c] sm:$0xf]
        %v4133 = vld [vmem:[%s420 + $0x50] sm:$0xf]
        %v4134 = vld [vmem:[%s420 + $0x54] sm:$0xf]
        %v4135 = vld [vmem:[%s420 + $0x58] sm:$0xf]
        %v4136 = vld [vmem:[%s420 + $0x5c] sm:$0xf]
        %v4137 = vld [vmem:[%s420 + $0x60] sm:$0xf]
        %v4138 = vld [vmem:[%s420 + $0x64] sm:$0xf]
        %v4139 = vld [vmem:[%s420 + $0x68] sm:$0xf]
        %v4140 = vld [vmem:[%s420 + $0x6c] sm:$0xf]
        %v4141 = vld [vmem:[%s420 + $0x70] sm:$0xf]
        %v4142 = vld [vmem:[%s420 + $0x74] sm:$0xf]
        %v4143 = vld [vmem:[%s420 + $0x78] sm:$0xf]
        %v4144 = vld [vmem:[%s420 + $0x7c] sm:$0xf]
        %v4145 = vld [vmem:[%s420 + $0x80] sm:$0xf]
        %v4146 = vld [vmem:[%s420 + $0x84] sm:$0xf]
        %v4147 = vld [vmem:[%s420 + $0x88] sm:$0xf]
        %v4148 = vld [vmem:[%s420 + $0x8c] sm:$0xf]
        %v4149 = vld [vmem:[%s420 + $0x90] sm:$0x1]
        %s4150 = scalar_lea.vmem %s1, 14
        %v4151 = vld [vmem:[%s4150] sm:$0x3]
        %v4185 = vunpack.c.l.b16 %v4117
        %v4186 = vunpack.c.l.b16 %v4118
        %v4187 = vunpack.c.l.b16 %v4119
        %v4188 = vunpack.c.l.b16 %v4120
        %v4189 = vunpack.c.l.b16 %v4121
        %v4190 = vunpack.c.l.b16 %v4122
        %v4191 = vunpack.c.l.b16 %v4123
        %v4192 = vunpack.c.l.b16 %v4124
        %v4193 = vunpack.c.l.b16 %v4125
        %v4194 = vunpack.c.l.b16 %v4126
        %v4195 = vunpack.c.l.b16 %v4127
        %v4196 = vunpack.c.l.b16 %v4128
        %v4197 = vunpack.c.l.b16 %v4129
        %v4198 = vunpack.c.l.b16 %v4130
        %v4199 = vunpack.c.l.b16 %v4131
        %v4200 = vunpack.c.l.b16 %v4132
        %v4201 = vunpack.c.l.b16 %v4133
        %v4202 = vunpack.c.l.b16 %v4134
        %v4203 = vunpack.c.l.b16 %v4135
        %v4204 = vunpack.c.l.b16 %v4136
        %v4205 = vunpack.c.l.b16 %v4137
        %v4206 = vunpack.c.l.b16 %v4138
        %v4207 = vunpack.c.l.b16 %v4139
        %v4208 = vunpack.c.l.b16 %v4140
        %v4209 = vunpack.c.l.b16 %v4141
        %v4210 = vunpack.c.l.b16 %v4142
        %v4211 = vunpack.c.l.b16 %v4143
        %v4212 = vunpack.c.l.b16 %v4144
        %v4213 = vunpack.c.l.b16 %v4145
        %v4214 = vunpack.c.l.b16 %v4146
        %v4215 = vunpack.c.l.b16 %v4147
        %v4216 = vunpack.c.l.b16 %v4148
        %v4217 = vunpack.c.l.b16 %v4149
        %v4218 = vpack.c.b16 %v4186, %v4185
        %v4219 = vpack.c.b16 %v4188, %v4187
        %v4220 = vpack.c.b16 %v4190, %v4189
        %v4221 = vpack.c.b16 %v4192, %v4191
        %v4222 = vpack.c.b16 %v4194, %v4193
        %v4223 = vpack.c.b16 %v4196, %v4195
        %v4224 = vpack.c.b16 %v4198, %v4197
        %v4225 = vpack.c.b16 %v4200, %v4199
        %v4226 = vpack.c.b16 %v4202, %v4201
        %v4227 = vpack.c.b16 %v4204, %v4203
        %v4228 = vpack.c.b16 %v4206, %v4205
        %v4229 = vpack.c.b16 %v4208, %v4207
        %v4230 = vpack.c.b16 %v4210, %v4209
        %v4231 = vpack.c.b16 %v4212, %v4211
        %v4232 = vpack.c.b16 %v4214, %v4213
        %v4233 = vpack.c.b16 %v4216, %v4215
        %v4234 = vpack.c.b16 %v4217, %v4217
        %v4236 = vshrl.u32 %v4218, 16
        %v4238 = vshll.u32 %v4218, 16
        %v4240 = vrot.slane %v4238, 1
        %v4241 = vor.u32 %v4236, %v4240
        %v4243 = vshll.u32 %v4219, 16
        %v4245 = vrot.slane %v4243, 1
        %v4246 = vsel %vm1152, %v4241, %v4245
        %v4247 = vshrl.u32 %v4219, 16
        %v4249 = vor.u32 %v4247, %v4245
        %v4251 = vshll.u32 %v4220, 16
        %v4253 = vrot.slane %v4251, 1
        %v4254 = vsel %vm1152, %v4249, %v4253
        %v4255 = vshrl.u32 %v4220, 16
        %v4257 = vor.u32 %v4255, %v4253
        %v4259 = vshll.u32 %v4221, 16
        %v4261 = vrot.slane %v4259, 1
        %v4262 = vsel %vm1152, %v4257, %v4261
        %v4263 = vshrl.u32 %v4221, 16
        %v4265 = vor.u32 %v4263, %v4261
        %v4267 = vshll.u32 %v4222, 16
        %v4269 = vrot.slane %v4267, 1
        %v4270 = vsel %vm1152, %v4265, %v4269
        %v4271 = vshrl.u32 %v4222, 16
        %v4273 = vor.u32 %v4271, %v4269
        %v4275 = vshll.u32 %v4223, 16
        %v4277 = vrot.slane %v4275, 1
        %v4278 = vsel %vm1152, %v4273, %v4277
        %v4279 = vshrl.u32 %v4223, 16
        %v4281 = vor.u32 %v4279, %v4277
        %v4283 = vshll.u32 %v4224, 16
        %v4285 = vrot.slane %v4283, 1
        %v4286 = vsel %vm1152, %v4281, %v4285
        %v4287 = vshrl.u32 %v4224, 16
        %v4289 = vor.u32 %v4287, %v4285
        %v4291 = vshll.u32 %v4225, 16
        %v4293 = vrot.slane %v4291, 1
        %v4294 = vsel %vm1152, %v4289, %v4293
        %v4295 = vshrl.u32 %v4225, 16
        %v4297 = vor.u32 %v4295, %v4293
        %v4299 = vshll.u32 %v4226, 16
        %v4301 = vrot.slane %v4299, 1
        %v4302 = vsel %vm1152, %v4297, %v4301
        %v4303 = vshrl.u32 %v4226, 16
        %v4305 = vor.u32 %v4303, %v4301
        %v4307 = vshll.u32 %v4227, 16
        %v4309 = vrot.slane %v4307, 1
        %v4310 = vsel %vm1152, %v4305, %v4309
        %v4311 = vshrl.u32 %v4227, 16
        %v4313 = vor.u32 %v4311, %v4309
        %v4315 = vshll.u32 %v4228, 16
        %v4317 = vrot.slane %v4315, 1
        %v4318 = vsel %vm1152, %v4313, %v4317
        %v4319 = vshrl.u32 %v4228, 16
        %v4321 = vor.u32 %v4319, %v4317
        %v4323 = vshll.u32 %v4229, 16
        %v4325 = vrot.slane %v4323, 1
        %v4326 = vsel %vm1152, %v4321, %v4325
        %v4327 = vshrl.u32 %v4229, 16
        %v4329 = vor.u32 %v4327, %v4325
        %v4331 = vshll.u32 %v4230, 16
        %v4333 = vrot.slane %v4331, 1
        %v4334 = vsel %vm1152, %v4329, %v4333
        %v4335 = vshrl.u32 %v4230, 16
        %v4337 = vor.u32 %v4335, %v4333
        %v4339 = vshll.u32 %v4231, 16
        %v4341 = vrot.slane %v4339, 1
        %v4342 = vsel %vm1152, %v4337, %v4341
        %v4343 = vshrl.u32 %v4231, 16
        %v4345 = vor.u32 %v4343, %v4341
        %v4347 = vshll.u32 %v4232, 16
        %v4349 = vrot.slane %v4347, 1
        %v4350 = vsel %vm1152, %v4345, %v4349
        %v4351 = vshrl.u32 %v4232, 16
        %v4353 = vor.u32 %v4351, %v4349
        %v4355 = vshll.u32 %v4233, 16
        %v4357 = vrot.slane %v4355, 1
        %v4358 = vsel %vm1152, %v4353, %v4357
        %v4359 = vshrl.u32 %v4233, 16
        %v4361 = vor.u32 %v4359, %v4357
        %v4363 = vshll.u32 %v4234, 16
        %v4365 = vrot.slane %v4363, 1
        %v4366 = vsel %vm1152, %v4361, %v4365
        %v4368 = vsel %vm1285, %v4246, 0
        %v4371 = vsel %vm1285, %v4254, 0
        %v4374 = vsel %vm1285, %v4262, 0
        %v4377 = vsel %vm1285, %v4270, 0
        %v4380 = vsel %vm1285, %v4278, 0
        %v4383 = vsel %vm1285, %v4286, 0
        %v4386 = vsel %vm1285, %v4294, 0
        %v4389 = vsel %vm1285, %v4302, 0
        %v4392 = vsel %vm1285, %v4310, 0
        %v4395 = vsel %vm1285, %v4318, 0
        %v4398 = vsel %vm1285, %v4326, 0
        %v4401 = vsel %vm1285, %v4334, 0
        %v4404 = vsel %vm1285, %v4342, 0
        %v4407 = vsel %vm1285, %v4350, 0
        %v4410 = vsel %vm1285, %v4358, 0
        %v4413 = vsel %vm1285, %v4366, 0
        %v4416 = vsel %vm1334, %v4151, 0
        %4418 = vmatprep.subr.bf16.mxu0 0
        %4419 = vmatpush1.bf16.msra.mxu0 %v4416
        %4420 = vmatprep.subr.bf16.mxu0 0
        %4421 = vmatpush1.bf16.msra.mxu0 0
        %4422 = vmatprep.subr.bf16.mxu0 0
        %4423 = vmatpush1.bf16.msra.mxu0 0
        %4424 = vmatprep.subr.bf16.mxu0 0
        %4425 = vmatpush1.bf16.msra.mxu0 0
        %4426 = vmatprep.subr.bf16.mxu0 0
        %4427 = vmatpush1.bf16.msra.mxu0 0
        %4428 = vmatprep.subr.bf16.mxu0 0
        %4429 = vmatpush1.bf16.msra.mxu0 0
        %4430 = vmatprep.subr.bf16.mxu0 0
        %4431 = vmatpush1.bf16.msra.mxu0 0
        %4432 = vmatprep.subr.bf16.mxu0 0
        %4433 = vmatpush1.bf16.msra.mxu0 0
        %4434 = vmatprep.subr.bf16.mxu0 0
        %4435 = vmatpush1.bf16.msra.mxu0 0
        %4436 = vmatprep.subr.bf16.mxu0 0
        %4437 = vmatpush1.bf16.msra.mxu0 0
        %4438 = vmatprep.subr.bf16.mxu0 0
        %4439 = vmatpush1.bf16.msra.mxu0 0
        %4440 = vmatprep.subr.bf16.mxu0 0
        %4441 = vmatpush1.bf16.msra.mxu0 0
        %4442 = vmatprep.subr.bf16.mxu0 0
        %4443 = vmatpush1.bf16.msra.mxu0 0
        %4444 = vmatprep.subr.bf16.mxu0 0
        %4445 = vmatpush1.bf16.msra.mxu0 0
        %4446 = vmatprep.subr.bf16.mxu0 0
        %4447 = vmatpush1.bf16.msra.mxu0 0
        %4448 = vmatprep.subr.bf16.mxu0 0
        %4449 = vmatpush1.bf16.msra.mxu0 0
        %4450 = vmatprep.mubr.bf16.mxu0 0
        %4451 = vmatmul.mubr.bf16.gmra.mrb[0].mxu0 %v4368
        %v4452 = vpop.f32.mrb[0].mxu0
        %v4453 = vadd.f32 0.0, %v4452
        %v4454 = vpop.f32.mrb[0].mxu0
        %v4455 = vpop.f32.mrb[0].mxu0
        %v4456 = vadd.f32 0.0, %v4455
        %v4457 = vpop.f32.mrb[0].mxu0
        %4458 = vmatprep.mubr.bf16.mxu0 0
        %4459 = vmatmul.mubr.bf16.gmra.mrb[0].mxu0 %v4371
        %v4460 = vpop.f32.mrb[0].mxu0
        %v4461 = vadd.f32 0.0, %v4460
        %v4462 = vpop.f32.mrb[0].mxu0
        %v4463 = vpop.f32.mrb[0].mxu0
        %v4464 = vadd.f32 0.0, %v4463
        %v4465 = vpop.f32.mrb[0].mxu0
        %4466 = vmatprep.mubr.bf16.mxu0 0
        %4467 = vmatmul.mubr.bf16.gmra.mrb[0].mxu0 %v4374
        %v4468 = vpop.f32.mrb[0].mxu0
        %v4469 = vadd.f32 0.0, %v4468
        %v4470 = vpop.f32.mrb[0].mxu0
        %v4471 = vpop.f32.mrb[0].mxu0
        %v4472 = vadd.f32 0.0, %v4471
        %v4473 = vpop.f32.mrb[0].mxu0
        %4474 = vmatprep.mubr.bf16.mxu0 0
        %4475 = vmatmul.mubr.bf16.gmra.mrb[0].mxu0 %v4377
        %v4476 = vpop.f32.mrb[0].mxu0
        %v4477 = vadd.f32 0.0, %v4476
        %v4478 = vpop.f32.mrb[0].mxu0
        %v4479 = vpop.f32.mrb[0].mxu0
        %v4480 = vadd.f32 0.0, %v4479
        %v4481 = vpop.f32.mrb[0].mxu0
        %4482 = vmatprep.mubr.bf16.mxu0 0
        %4483 = vmatmul.mubr.bf16.gmra.mrb[0].mxu0 %v4380
        %v4484 = vpop.f32.mrb[0].mxu0
        %v4485 = vadd.f32 0.0, %v4484
        %v4486 = vpop.f32.mrb[0].mxu0
        %v4487 = vpop.f32.mrb[0].mxu0
        %v4488 = vadd.f32 0.0, %v4487
        %v4489 = vpop.f32.mrb[0].mxu0
        %4490 = vmatprep.mubr.bf16.mxu0 0
        %4491 = vmatmul.mubr.bf16.gmra.mrb[0].mxu0 %v4383
        %v4492 = vpop.f32.mrb[0].mxu0
        %v4493 = vadd.f32 0.0, %v4492
        %v4494 = vpop.f32.mrb[0].mxu0
        %v4495 = vpop.f32.mrb[0].mxu0
        %v4496 = vadd.f32 0.0, %v4495
        %v4497 = vpop.f32.mrb[0].mxu0
        %4498 = vmatprep.mubr.bf16.mxu0 0
        %4499 = vmatmul.mubr.bf16.gmra.mrb[0].mxu0 %v4386
        %v4500 = vpop.f32.mrb[0].mxu0
        %v4501 = vadd.f32 0.0, %v4500
        %v4502 = vpop.f32.mrb[0].mxu0
        %v4503 = vpop.f32.mrb[0].mxu0
        %v4504 = vadd.f32 0.0, %v4503
        %v4505 = vpop.f32.mrb[0].mxu0
        %4506 = vmatprep.mubr.bf16.mxu0 0
        %4507 = vmatmul.mubr.bf16.gmra.mrb[0].mxu0 %v4389
        %v4508 = vpop.f32.mrb[0].mxu0
        %v4509 = vadd.f32 0.0, %v4508
        %v4510 = vpop.f32.mrb[0].mxu0
        %v4511 = vpop.f32.mrb[0].mxu0
        %v4512 = vadd.f32 0.0, %v4511
        %v4513 = vpop.f32.mrb[0].mxu0
        %4514 = vmatprep.mubr.bf16.mxu0 0
        %4515 = vmatmul.mubr.bf16.gmra.mrb[0].mxu0 %v4392
        %v4516 = vpop.f32.mrb[0].mxu0
        %v4517 = vadd.f32 0.0, %v4516
        %v4518 = vpop.f32.mrb[0].mxu0
        %v4519 = vpop.f32.mrb[0].mxu0
        %v4520 = vadd.f32 0.0, %v4519
        %v4521 = vpop.f32.mrb[0].mxu0
        %4522 = vmatprep.mubr.bf16.mxu0 0
        %4523 = vmatmul.mubr.bf16.gmra.mrb[0].mxu0 %v4395
        %v4524 = vpop.f32.mrb[0].mxu0
        %v4525 = vadd.f32 0.0, %v4524
        %v4526 = vpop.f32.mrb[0].mxu0
        %v4527 = vpop.f32.mrb[0].mxu0
        %v4528 = vadd.f32 0.0, %v4527
        %v4529 = vpop.f32.mrb[0].mxu0
        %4530 = vmatprep.mubr.bf16.mxu0 0
        %4531 = vmatmul.mubr.bf16.gmra.mrb[0].mxu0 %v4398
        %v4532 = vpop.f32.mrb[0].mxu0
        %v4533 = vadd.f32 0.0, %v4532
        %v4534 = vpop.f32.mrb[0].mxu0
        %v4535 = vpop.f32.mrb[0].mxu0
        %v4536 = vadd.f32 0.0, %v4535
        %v4537 = vpop.f32.mrb[0].mxu0
        %4538 = vmatprep.mubr.bf16.mxu0 0
        %4539 = vmatmul.mubr.bf16.gmra.mrb[0].mxu0 %v4401
        %v4540 = vpop.f32.mrb[0].mxu0
        %v4541 = vadd.f32 0.0, %v4540
        %v4542 = vpop.f32.mrb[0].mxu0
        %v4543 = vpop.f32.mrb[0].mxu0
        %v4544 = vadd.f32 0.0, %v4543
        %v4545 = vpop.f32.mrb[0].mxu0
        %4546 = vmatprep.mubr.bf16.mxu0 0
        %4547 = vmatmul.mubr.bf16.gmra.mrb[0].mxu0 %v4404
        %v4548 = vpop.f32.mrb[0].mxu0
        %v4549 = vadd.f32 0.0, %v4548
        %v4550 = vpop.f32.mrb[0].mxu0
        %v4551 = vpop.f32.mrb[0].mxu0
        %v4552 = vadd.f32 0.0, %v4551
        %v4553 = vpop.f32.mrb[0].mxu0
        %4554 = vmatprep.mubr.bf16.mxu0 0
        %4555 = vmatmul.mubr.bf16.gmra.mrb[0].mxu0 %v4407
        %v4556 = vpop.f32.mrb[0].mxu0
        %v4557 = vadd.f32 0.0, %v4556
        %v4558 = vpop.f32.mrb[0].mxu0
        %v4559 = vpop.f32.mrb[0].mxu0
        %v4560 = vadd.f32 0.0, %v4559
        %v4561 = vpop.f32.mrb[0].mxu0
        %4562 = vmatprep.mubr.bf16.mxu0 0
        %4563 = vmatmul.mubr.bf16.gmra.mrb[0].mxu0 %v4410
        %v4564 = vpop.f32.mrb[0].mxu0
        %v4565 = vadd.f32 0.0, %v4564
        %v4566 = vpop.f32.mrb[0].mxu0
        %v4567 = vpop.f32.mrb[0].mxu0
        %v4568 = vadd.f32 0.0, %v4567
        %v4569 = vpop.f32.mrb[0].mxu0
        %4570 = vmatprep.mubr.bf16.mxu0 0
        %4571 = vmatmul.mubr.bf16.gmra.mrb[0].mxu0 %v4413
        %v4572 = vpop.f32.mrb[0].mxu0
        %v4573 = vadd.f32 0.0, %v4572
        %v4574 = vpop.f32.mrb[0].mxu0
        %v4575 = vpop.f32.mrb[0].mxu0
        %v4576 = vadd.f32 0.0, %v4575
        %v4577 = vpop.f32.mrb[0].mxu0
        %4578 = vdwg.mxu0
        %v4579 = vadd.f32 %v4085, %v4453
        %v4580 = vadd.f32 %v4086, %v4456
        %v4581 = vadd.f32 %v4087, %v4461
        %v4582 = vadd.f32 %v4088, %v4464
        %v4583 = vadd.f32 %v4089, %v4469
        %v4584 = vadd.f32 %v4090, %v4472
        %v4585 = vadd.f32 %v4091, %v4477
        %v4586 = vadd.f32 %v4092, %v4480
        %v4587 = vadd.f32 %v4093, %v4485
        %v4588 = vadd.f32 %v4094, %v4488
        %v4589 = vadd.f32 %v4095, %v4493
        %v4590 = vadd.f32 %v4096, %v4496
        %v4591 = vadd.f32 %v4097, %v4501
        %v4592 = vadd.f32 %v4098, %v4504
        %v4593 = vadd.f32 %v4099, %v4509
        %v4594 = vadd.f32 %v4100, %v4512
        %v4595 = vadd.f32 %v4101, %v4517
        %v4596 = vadd.f32 %v4102, %v4520
        %v4597 = vadd.f32 %v4103, %v4525
        %v4598 = vadd.f32 %v4104, %v4528
        %v4599 = vadd.f32 %v4105, %v4533
        %v4600 = vadd.f32 %v4106, %v4536
        %v4601 = vadd.f32 %v4107, %v4541
        %v4602 = vadd.f32 %v4108, %v4544
        %v4603 = vadd.f32 %v4109, %v4549
        %v4604 = vadd.f32 %v4110, %v4552
        %v4605 = vadd.f32 %v4111, %v4557
        %v4606 = vadd.f32 %v4112, %v4560
        %v4607 = vadd.f32 %v4113, %v4565
        %v4608 = vadd.f32 %v4114, %v4568
        %v4609 = vadd.f32 %v4115, %v4573
        %v4610 = vadd.f32 %v4116, %v4576
        %v4611 = vld [vmem:[%s420 + $0x10] sm:$0xe]
        %v4612 = vsel %vm2018, %v4611, 0
        %v4613 = vsel %vm2019, %v4118, 0
        %v4614 = vsel %vm2020, %v4119, 0
        %v4615 = vsel %vm2021, %v4120, 0
        %v4616 = vsel %vm2022, %v4121, 0
        %v4617 = vsel %vm2023, %v4122, 0
        %v4618 = vsel %vm2024, %v4123, 0
        %v4619 = vsel %vm2025, %v4124, 0
        %v4620 = vsel %vm2026, %v4125, 0
        %v4621 = vsel %vm2027, %v4126, 0
        %v4622 = vsel %vm2028, %v4127, 0
        %v4623 = vsel %vm2029, %v4128, 0
        %v4624 = vsel %vm2030, %v4129, 0
        %v4625 = vsel %vm2031, %v4130, 0
        %v4626 = vsel %vm2032, %v4131, 0
        %v4627 = vsel %vm2033, %v4132, 0
        %v4628 = vsel %vm2034, %v4133, 0
        %v4629 = vsel %vm2035, %v4134, 0
        %v4630 = vsel %vm2036, %v4135, 0
        %v4631 = vsel %vm2037, %v4136, 0
        %v4632 = vsel %vm2038, %v4137, 0
        %v4633 = vsel %vm2039, %v4138, 0
        %v4634 = vsel %vm2040, %v4139, 0
        %v4635 = vsel %vm2041, %v4140, 0
        %v4636 = vsel %vm2042, %v4141, 0
        %v4637 = vsel %vm2043, %v4142, 0
        %v4638 = vsel %vm2044, %v4143, 0
        %v4639 = vsel %vm2045, %v4144, 0
        %v4640 = vsel %vm2046, %v4145, 0
        %v4641 = vsel %vm2047, %v4146, 0
        %v4642 = vsel %vm2048, %v4147, 0
        %v4643 = vsel %vm2049, %v4148, 0
        %v4644 = vsel %vm2050, %v4149, 0
        %s4645 = scalar_lea.vmem %s1, 16
        %v4646 = vld [vmem:[%s4645] sm:$0x3]
        %v4680 = vunpack.c.l.b16 %v4612
        %v4681 = vunpack.c.l.b16 %v4613
        %v4682 = vunpack.c.l.b16 %v4614
        %v4683 = vunpack.c.l.b16 %v4615
        %v4684 = vunpack.c.l.b16 %v4616
        %v4685 = vunpack.c.l.b16 %v4617
        %v4686 = vunpack.c.l.b16 %v4618
        %v4687 = vunpack.c.l.b16 %v4619
        %v4688 = vunpack.c.l.b16 %v4620
        %v4689 = vunpack.c.l.b16 %v4621
        %v4690 = vunpack.c.l.b16 %v4622
        %v4691 = vunpack.c.l.b16 %v4623
        %v4692 = vunpack.c.l.b16 %v4624
        %v4693 = vunpack.c.l.b16 %v4625
        %v4694 = vunpack.c.l.b16 %v4626
        %v4695 = vunpack.c.l.b16 %v4627
        %v4696 = vunpack.c.l.b16 %v4628
        %v4697 = vunpack.c.l.b16 %v4629
        %v4698 = vunpack.c.l.b16 %v4630
        %v4699 = vunpack.c.l.b16 %v4631
        %v4700 = vunpack.c.l.b16 %v4632
        %v4701 = vunpack.c.l.b16 %v4633
        %v4702 = vunpack.c.l.b16 %v4634
        %v4703 = vunpack.c.l.b16 %v4635
        %v4704 = vunpack.c.l.b16 %v4636
        %v4705 = vunpack.c.l.b16 %v4637
        %v4706 = vunpack.c.l.b16 %v4638
        %v4707 = vunpack.c.l.b16 %v4639
        %v4708 = vunpack.c.l.b16 %v4640
        %v4709 = vunpack.c.l.b16 %v4641
        %v4710 = vunpack.c.l.b16 %v4642
        %v4711 = vunpack.c.l.b16 %v4643
        %v4712 = vunpack.c.l.b16 %v4644
        %v4713 = vpack.c.b16 %v4681, %v4680
        %v4714 = vpack.c.b16 %v4683, %v4682
        %v4715 = vpack.c.b16 %v4685, %v4684
        %v4716 = vpack.c.b16 %v4687, %v4686
        %v4717 = vpack.c.b16 %v4689, %v4688
        %v4718 = vpack.c.b16 %v4691, %v4690
        %v4719 = vpack.c.b16 %v4693, %v4692
        %v4720 = vpack.c.b16 %v4695, %v4694
        %v4721 = vpack.c.b16 %v4697, %v4696
        %v4722 = vpack.c.b16 %v4699, %v4698
        %v4723 = vpack.c.b16 %v4701, %v4700
        %v4724 = vpack.c.b16 %v4703, %v4702
        %v4725 = vpack.c.b16 %v4705, %v4704
        %v4726 = vpack.c.b16 %v4707, %v4706
        %v4727 = vpack.c.b16 %v4709, %v4708
        %v4728 = vpack.c.b16 %v4711, %v4710
        %v4729 = vpack.c.b16 %v4712, %v4712
        %v4730 = vrot.slane %v4713, 1
        %v4731 = vrot.slane %v4714, 1
        %v4732 = vsel %vm2169, %v4730, %v4731
        %v4733 = vrot.slane %v4715, 1
        %v4734 = vsel %vm2169, %v4731, %v4733
        %v4735 = vrot.slane %v4716, 1
        %v4736 = vsel %vm2169, %v4733, %v4735
        %v4737 = vrot.slane %v4717, 1
        %v4738 = vsel %vm2169, %v4735, %v4737
        %v4739 = vrot.slane %v4718, 1
        %v4740 = vsel %vm2169, %v4737, %v4739
        %v4741 = vrot.slane %v4719, 1
        %v4742 = vsel %vm2169, %v4739, %v4741
        %v4743 = vrot.slane %v4720, 1
        %v4744 = vsel %vm2169, %v4741, %v4743
        %v4745 = vrot.slane %v4721, 1
        %v4746 = vsel %vm2169, %v4743, %v4745
        %v4747 = vrot.slane %v4722, 1
        %v4748 = vsel %vm2169, %v4745, %v4747
        %v4749 = vrot.slane %v4723, 1
        %v4750 = vsel %vm2169, %v4747, %v4749
        %v4751 = vrot.slane %v4724, 1
        %v4752 = vsel %vm2169, %v4749, %v4751
        %v4753 = vrot.slane %v4725, 1
        %v4754 = vsel %vm2169, %v4751, %v4753
        %v4755 = vrot.slane %v4726, 1
        %v4756 = vsel %vm2169, %v4753, %v4755
        %v4757 = vrot.slane %v4727, 1
        %v4758 = vsel %vm2169, %v4755, %v4757
        %v4759 = vrot.slane %v4728, 1
        %v4760 = vsel %vm2169, %v4757, %v4759
        %v4761 = vrot.slane %v4729, 1
        %v4762 = vsel %vm2169, %v4759, %v4761
        %v4764 = vsel %vm1285, %v4732, 0
        %v4767 = vsel %vm1285, %v4734, 0
        %v4770 = vsel %vm1285, %v4736, 0
        %v4773 = vsel %vm1285, %v4738, 0
        %v4776 = vsel %vm1285, %v4740, 0
        %v4779 = vsel %vm1285, %v4742, 0
        %v4782 = vsel %vm1285, %v4744, 0
        %v4785 = vsel %vm1285, %v4746, 0
        %v4788 = vsel %vm1285, %v4748, 0
        %v4791 = vsel %vm1285, %v4750, 0
        %v4794 = vsel %vm1285, %v4752, 0
        %v4797 = vsel %vm1285, %v4754, 0
        %v4800 = vsel %vm1285, %v4756, 0
        %v4803 = vsel %vm1285, %v4758, 0
        %v4806 = vsel %vm1285, %v4760, 0
        %v4809 = vsel %vm1285, %v4762, 0
        %v4812 = vsel %vm1334, %v4646, 0
        %4814 = vmatprep.subr.bf16.mxu0 0
        %4815 = vmatpush1.bf16.msra.mxu0 %v4812
        %4816 = vmatprep.subr.bf16.mxu0 0
        %4817 = vmatpush1.bf16.msra.mxu0 0
        %4818 = vmatprep.subr.bf16.mxu0 0
        %4819 = vmatpush1.bf16.msra.mxu0 0
        %4820 = vmatprep.subr.bf16.mxu0 0
        %4821 = vmatpush1.bf16.msra.mxu0 0
        %4822 = vmatprep.subr.bf16.mxu0 0
        %4823 = vmatpush1.bf16.msra.mxu0 0
        %4824 = vmatprep.subr.bf16.mxu0 0
        %4825 = vmatpush1.bf16.msra.mxu0 0
        %4826 = vmatprep.subr.bf16.mxu0 0
        %4827 = vmatpush1.bf16.msra.mxu0 0
        %4828 = vmatprep.subr.bf16.mxu0 0
        %4829 = vmatpush1.bf16.msra.mxu0 0
        %4830 = vmatprep.subr.bf16.mxu0 0
        %4831 = vmatpush1.bf16.msra.mxu0 0
        %4832 = vmatprep.subr.bf16.mxu0 0
        %4833 = vmatpush1.bf16.msra.mxu0 0
        %4834 = vmatprep.subr.bf16.mxu0 0
        %4835 = vmatpush1.bf16.msra.mxu0 0
        %4836 = vmatprep.subr.bf16.mxu0 0
        %4837 = vmatpush1.bf16.msra.mxu0 0
        %4838 = vmatprep.subr.bf16.mxu0 0
        %4839 = vmatpush1.bf16.msra.mxu0 0
        %4840 = vmatprep.subr.bf16.mxu0 0
        %4841 = vmatpush1.bf16.msra.mxu0 0
        %4842 = vmatprep.subr.bf16.mxu0 0
        %4843 = vmatpush1.bf16.msra.mxu0 0
        %4844 = vmatprep.subr.bf16.mxu0 0
        %4845 = vmatpush1.bf16.msra.mxu0 0
        %4846 = vmatprep.mubr.bf16.mxu0 0
        %4847 = vmatmul.mubr.bf16.gmra.mrb[0].mxu0 %v4764
        %v4848 = vpop.f32.mrb[0].mxu0
        %v4849 = vadd.f32 0.0, %v4848
        %v4850 = vpop.f32.mrb[0].mxu0
        %v4851 = vpop.f32.mrb[0].mxu0
        %v4852 = vadd.f32 0.0, %v4851
        %v4853 = vpop.f32.mrb[0].mxu0
        %4854 = vmatprep.mubr.bf16.mxu0 0
        %4855 = vmatmul.mubr.bf16.gmra.mrb[0].mxu0 %v4767
        %v4856 = vpop.f32.mrb[0].mxu0
        %v4857 = vadd.f32 0.0, %v4856
        %v4858 = vpop.f32.mrb[0].mxu0
        %v4859 = vpop.f32.mrb[0].mxu0
        %v4860 = vadd.f32 0.0, %v4859
        %v4861 = vpop.f32.mrb[0].mxu0
        %4862 = vmatprep.mubr.bf16.mxu0 0
        %4863 = vmatmul.mubr.bf16.gmra.mrb[0].mxu0 %v4770
        %v4864 = vpop.f32.mrb[0].mxu0
        %v4865 = vadd.f32 0.0, %v4864
        %v4866 = vpop.f32.mrb[0].mxu0
        %v4867 = vpop.f32.mrb[0].mxu0
        %v4868 = vadd.f32 0.0, %v4867
        %v4869 = vpop.f32.mrb[0].mxu0
        %4870 = vmatprep.mubr.bf16.mxu0 0
        %4871 = vmatmul.mubr.bf16.gmra.mrb[0].mxu0 %v4773
        %v4872 = vpop.f32.mrb[0].mxu0
        %v4873 = vadd.f32 0.0, %v4872
        %v4874 = vpop.f32.mrb[0].mxu0
        %v4875 = vpop.f32.mrb[0].mxu0
        %v4876 = vadd.f32 0.0, %v4875
        %v4877 = vpop.f32.mrb[0].mxu0
        %4878 = vmatprep.mubr.bf16.mxu0 0
        %4879 = vmatmul.mubr.bf16.gmra.mrb[0].mxu0 %v4776
        %v4880 = vpop.f32.mrb[0].mxu0
        %v4881 = vadd.f32 0.0, %v4880
        %v4882 = vpop.f32.mrb[0].mxu0
        %v4883 = vpop.f32.mrb[0].mxu0
        %v4884 = vadd.f32 0.0, %v4883
        %v4885 = vpop.f32.mrb[0].mxu0
        %4886 = vmatprep.mubr.bf16.mxu0 0
        %4887 = vmatmul.mubr.bf16.gmra.mrb[0].mxu0 %v4779
        %v4888 = vpop.f32.mrb[0].mxu0
        %v4889 = vadd.f32 0.0, %v4888
        %v4890 = vpop.f32.mrb[0].mxu0
        %v4891 = vpop.f32.mrb[0].mxu0
        %v4892 = vadd.f32 0.0, %v4891
        %v4893 = vpop.f32.mrb[0].mxu0
        %4894 = vmatprep.mubr.bf16.mxu0 0
        %4895 = vmatmul.mubr.bf16.gmra.mrb[0].mxu0 %v4782
        %v4896 = vpop.f32.mrb[0].mxu0
        %v4897 = vadd.f32 0.0, %v4896
        %v4898 = vpop.f32.mrb[0].mxu0
        %v4899 = vpop.f32.mrb[0].mxu0
        %v4900 = vadd.f32 0.0, %v4899
        %v4901 = vpop.f32.mrb[0].mxu0
        %4902 = vmatprep.mubr.bf16.mxu0 0
        %4903 = vmatmul.mubr.bf16.gmra.mrb[0].mxu0 %v4785
        %v4904 = vpop.f32.mrb[0].mxu0
        %v4905 = vadd.f32 0.0, %v4904
        %v4906 = vpop.f32.mrb[0].mxu0
        %v4907 = vpop.f32.mrb[0].mxu0
        %v4908 = vadd.f32 0.0, %v4907
        %v4909 = vpop.f32.mrb[0].mxu0
        %4910 = vmatprep.mubr.bf16.mxu0 0
        %4911 = vmatmul.mubr.bf16.gmra.mrb[0].mxu0 %v4788
        %v4912 = vpop.f32.mrb[0].mxu0
        %v4913 = vadd.f32 0.0, %v4912
        %v4914 = vpop.f32.mrb[0].mxu0
        %v4915 = vpop.f32.mrb[0].mxu0
        %v4916 = vadd.f32 0.0, %v4915
        %v4917 = vpop.f32.mrb[0].mxu0
        %4918 = vmatprep.mubr.bf16.mxu0 0
        %4919 = vmatmul.mubr.bf16.gmra.mrb[0].mxu0 %v4791
        %v4920 = vpop.f32.mrb[0].mxu0
        %v4921 = vadd.f32 0.0, %v4920
        %v4922 = vpop.f32.mrb[0].mxu0
        %v4923 = vpop.f32.mrb[0].mxu0
        %v4924 = vadd.f32 0.0, %v4923
        %v4925 = vpop.f32.mrb[0].mxu0
        %4926 = vmatprep.mubr.bf16.mxu0 0
        %4927 = vmatmul.mubr.bf16.gmra.mrb[0].mxu0 %v4794
        %v4928 = vpop.f32.mrb[0].mxu0
        %v4929 = vadd.f32 0.0, %v4928
        %v4930 = vpop.f32.mrb[0].mxu0
        %v4931 = vpop.f32.mrb[0].mxu0
        %v4932 = vadd.f32 0.0, %v4931
        %v4933 = vpop.f32.mrb[0].mxu0
        %4934 = vmatprep.mubr.bf16.mxu0 0
        %4935 = vmatmul.mubr.bf16.gmra.mrb[0].mxu0 %v4797
        %v4936 = vpop.f32.mrb[0].mxu0
        %v4937 = vadd.f32 0.0, %v4936
        %v4938 = vpop.f32.mrb[0].mxu0
        %v4939 = vpop.f32.mrb[0].mxu0
        %v4940 = vadd.f32 0.0, %v4939
        %v4941 = vpop.f32.mrb[0].mxu0
        %4942 = vmatprep.mubr.bf16.mxu0 0
        %4943 = vmatmul.mubr.bf16.gmra.mrb[0].mxu0 %v4800
        %v4944 = vpop.f32.mrb[0].mxu0
        %v4945 = vadd.f32 0.0, %v4944
        %v4946 = vpop.f32.mrb[0].mxu0
        %v4947 = vpop.f32.mrb[0].mxu0
        %v4948 = vadd.f32 0.0, %v4947
        %v4949 = vpop.f32.mrb[0].mxu0
        %4950 = vmatprep.mubr.bf16.mxu0 0
        %4951 = vmatmul.mubr.bf16.gmra.mrb[0].mxu0 %v4803
        %v4952 = vpop.f32.mrb[0].mxu0
        %v4953 = vadd.f32 0.0, %v4952
        %v4954 = vpop.f32.mrb[0].mxu0
        %v4955 = vpop.f32.mrb[0].mxu0
        %v4956 = vadd.f32 0.0, %v4955
        %v4957 = vpop.f32.mrb[0].mxu0
        %4958 = vmatprep.mubr.bf16.mxu0 0
        %4959 = vmatmul.mubr.bf16.gmra.mrb[0].mxu0 %v4806
        %v4960 = vpop.f32.mrb[0].mxu0
        %v4961 = vadd.f32 0.0, %v4960
        %v4962 = vpop.f32.mrb[0].mxu0
        %v4963 = vpop.f32.mrb[0].mxu0
        %v4964 = vadd.f32 0.0, %v4963
        %v4965 = vpop.f32.mrb[0].mxu0
        %4966 = vmatprep.mubr.bf16.mxu0 0
        %4967 = vmatmul.mubr.bf16.gmra.mrb[0].mxu0 %v4809
        %v4968 = vpop.f32.mrb[0].mxu0
        %v4969 = vadd.f32 0.0, %v4968
        %v4970 = vpop.f32.mrb[0].mxu0
        %v4971 = vpop.f32.mrb[0].mxu0
        %v4972 = vadd.f32 0.0, %v4971
        %v4973 = vpop.f32.mrb[0].mxu0
        %4974 = vdwg.mxu0
        %v4975 = vadd.f32 %v4579, %v4849
        %v4976 = vadd.f32 %v4580, %v4852
        %v4977 = vadd.f32 %v4581, %v4857
        %v4978 = vadd.f32 %v4582, %v4860
        %v4979 = vadd.f32 %v4583, %v4865
        %v4980 = vadd.f32 %v4584, %v4868
        %v4981 = vadd.f32 %v4585, %v4873
        %v4982 = vadd.f32 %v4586, %v4876
        %v4983 = vadd.f32 %v4587, %v4881
        %v4984 = vadd.f32 %v4588, %v4884
        %v4985 = vadd.f32 %v4589, %v4889
        %v4986 = vadd.f32 %v4590, %v4892
        %v4987 = vadd.f32 %v4591, %v4897
        %v4988 = vadd.f32 %v4592, %v4900
        %v4989 = vadd.f32 %v4593, %v4905
        %v4990 = vadd.f32 %v4594, %v4908
        %v4991 = vadd.f32 %v4595, %v4913
        %v4992 = vadd.f32 %v4596, %v4916
        %v4993 = vadd.f32 %v4597, %v4921
        %v4994 = vadd.f32 %v4598, %v4924
        %v4995 = vadd.f32 %v4599, %v4929
        %v4996 = vadd.f32 %v4600, %v4932
        %v4997 = vadd.f32 %v4601, %v4937
        %v4998 = vadd.f32 %v4602, %v4940
        %v4999 = vadd.f32 %v4603, %v4945
        %v5000 = vadd.f32 %v4604, %v4948
        %v5001 = vadd.f32 %v4605, %v4953
        %v5002 = vadd.f32 %v4606, %v4956
        %v5003 = vadd.f32 %v4607, %v4961
        %v5004 = vadd.f32 %v4608, %v4964
        %v5005 = vadd.f32 %v4609, %v4969
        %v5006 = vadd.f32 %v4610, %v4972
        %v5007 = vld [vmem:[%s2] sm:$0x1]
        %v5009 = vlaneseq
        %v5010 = vshrl.u32 %v5009, 7
        %v5011 = vsub.s32 0, %v5010
        %v5012 = vrot.slane %v5007, %v5011
        %v5014 = vadd.f32 %v4975, %v5012
        %v5015 = vadd.f32 %v4976, %v5012
        %v5016 = vadd.f32 %v4977, %v5012
        %v5017 = vadd.f32 %v4978, %v5012
        %v5018 = vadd.f32 %v4979, %v5012
        %v5019 = vadd.f32 %v4980, %v5012
        %v5020 = vadd.f32 %v4981, %v5012
        %v5021 = vadd.f32 %v4982, %v5012
        %v5022 = vadd.f32 %v4983, %v5012
        %v5023 = vadd.f32 %v4984, %v5012
        %v5024 = vadd.f32 %v4985, %v5012
        %v5025 = vadd.f32 %v4986, %v5012
        %v5026 = vadd.f32 %v4987, %v5012
        %v5027 = vadd.f32 %v4988, %v5012
        %v5028 = vadd.f32 %v4989, %v5012
        %v5029 = vadd.f32 %v4990, %v5012
        %v5030 = vadd.f32 %v4991, %v5012
        %v5031 = vadd.f32 %v4992, %v5012
        %v5032 = vadd.f32 %v4993, %v5012
        %v5033 = vadd.f32 %v4994, %v5012
        %v5034 = vadd.f32 %v4995, %v5012
        %v5035 = vadd.f32 %v4996, %v5012
        %v5036 = vadd.f32 %v4997, %v5012
        %v5037 = vadd.f32 %v4998, %v5012
        %v5038 = vadd.f32 %v4999, %v5012
        %v5039 = vadd.f32 %v5000, %v5012
        %v5040 = vadd.f32 %v5001, %v5012
        %v5041 = vadd.f32 %v5002, %v5012
        %v5042 = vadd.f32 %v5003, %v5012
        %v5043 = vadd.f32 %v5004, %v5012
        %v5044 = vadd.f32 %v5005, %v5012
        %v5045 = vadd.f32 %v5006, %v5012
        %v5046 = vmax.f32 %v5014, 0.0
        %v5047 = vmax.f32 %v5015, 0.0
        %v5048 = vmax.f32 %v5016, 0.0
        %v5049 = vmax.f32 %v5017, 0.0
        %v5050 = vmax.f32 %v5018, 0.0
        %v5051 = vmax.f32 %v5019, 0.0
        %v5052 = vmax.f32 %v5020, 0.0
        %v5053 = vmax.f32 %v5021, 0.0
        %v5054 = vmax.f32 %v5022, 0.0
        %v5055 = vmax.f32 %v5023, 0.0
        %v5056 = vmax.f32 %v5024, 0.0
        %v5057 = vmax.f32 %v5025, 0.0
        %v5058 = vmax.f32 %v5026, 0.0
        %v5059 = vmax.f32 %v5027, 0.0
        %v5060 = vmax.f32 %v5028, 0.0
        %v5061 = vmax.f32 %v5029, 0.0
        %v5062 = vmax.f32 %v5030, 0.0
        %v5063 = vmax.f32 %v5031, 0.0
        %v5064 = vmax.f32 %v5032, 0.0
        %v5065 = vmax.f32 %v5033, 0.0
        %v5066 = vmax.f32 %v5034, 0.0
        %v5067 = vmax.f32 %v5035, 0.0
        %v5068 = vmax.f32 %v5036, 0.0
        %v5069 = vmax.f32 %v5037, 0.0
        %v5070 = vmax.f32 %v5038, 0.0
        %v5071 = vmax.f32 %v5039, 0.0
        %v5072 = vmax.f32 %v5040, 0.0
        %v5073 = vmax.f32 %v5041, 0.0
        %v5074 = vmax.f32 %v5042, 0.0
        %v5075 = vmax.f32 %v5043, 0.0
        %v5076 = vmax.f32 %v5044, 0.0
        %v5077 = vmax.f32 %v5045, 0.0
        %5078 = vmatprep.subr.mxu0 0.0
        %5079 = vmatpush1.msra.mxu0 %v5046
        %5080 = vmatprep.subr.mxu0 0.0
        %5081 = vmatpush1.msra.mxu0 %v5047
        %5082 = vmatprep.subr.mxu0 0.0
        %5083 = vmatpush1.msra.mxu0 %v5048
        %5084 = vmatprep.subr.mxu0 0.0
        %5085 = vmatpush1.msra.mxu0 %v5049
        %5086 = vmatprep.subr.mxu0 0.0
        %5087 = vmatpush1.msra.mxu0 %v5050
        %5088 = vmatprep.subr.mxu0 0.0
        %5089 = vmatpush1.msra.mxu0 %v5051
        %5090 = vmatprep.subr.mxu0 0.0
        %5091 = vmatpush1.msra.mxu0 %v5052
        %5092 = vmatprep.subr.mxu0 0.0
        %5093 = vmatpush1.msra.mxu0 %v5053
        %5094 = vmatprep.subr.mxu0 0.0
        %5095 = vmatpush1.msra.mxu0 %v5054
        %5096 = vmatprep.subr.mxu0 0.0
        %5097 = vmatpush1.msra.mxu0 %v5055
        %5098 = vmatprep.subr.mxu0 0.0
        %5099 = vmatpush1.msra.mxu0 %v5056
        %5100 = vmatprep.subr.mxu0 0.0
        %5101 = vmatpush1.msra.mxu0 %v5057
        %5102 = vmatprep.subr.mxu0 0.0
        %5103 = vmatpush1.msra.mxu0 %v5058
        %5104 = vmatprep.subr.mxu0 0.0
        %5105 = vmatpush1.msra.mxu0 %v5059
        %5106 = vmatprep.subr.mxu0 0.0
        %5107 = vmatpush1.msra.mxu0 %v5060
        %5108 = vmatprep.subr.mxu0 0.0
        %5109 = vmatpush1.msra.mxu0 %v5061
        %5110 = vmatprep.subr.mxu0 0.0
        %5111 = vmatpush1.msra.mxu0 %v5062
        %5112 = vmatprep.subr.mxu0 0.0
        %5113 = vmatpush1.msra.mxu0 %v5063
        %5114 = vmatprep.subr.mxu0 0.0
        %5115 = vmatpush1.msra.mxu0 %v5064
        %5116 = vmatprep.subr.mxu0 0.0
        %5117 = vmatpush1.msra.mxu0 %v5065
        %5118 = vmatprep.subr.mxu0 0.0
        %5119 = vmatpush1.msra.mxu0 %v5066
        %5120 = vmatprep.subr.mxu0 0.0
        %5121 = vmatpush1.msra.mxu0 %v5067
        %5122 = vmatprep.subr.mxu0 0.0
        %5123 = vmatpush1.msra.mxu0 %v5068
        %5124 = vmatprep.subr.mxu0 0.0
        %5125 = vmatpush1.msra.mxu0 %v5069
        %5126 = vmatprep.subr.mxu0 0.0
        %5127 = vmatpush1.msra.mxu0 %v5070
        %5128 = vmatprep.subr.mxu0 0.0
        %5129 = vmatpush1.msra.mxu0 %v5071
        %5130 = vmatprep.subr.mxu0 0.0
        %5131 = vmatpush1.msra.mxu0 %v5072
        %5132 = vmatprep.subr.mxu0 0.0
        %5133 = vmatpush1.msra.mxu0 %v5073
        %5134 = vmatprep.subr.mxu0 0.0
        %5135 = vmatpush1.msra.mxu0 %v5074
        %5136 = vmatprep.subr.mxu0 0.0
        %5137 = vmatpush1.msra.mxu0 %v5075
        %5138 = vmatprep.subr.mxu0 0.0
        %5139 = vmatpush1.msra.mxu0 %v5076
        %5140 = vmatprep.subr.mxu0 0.0
        %5141 = vmatpush1.msra.mxu0 %v5077
        %5142 = vmatprep.mubr.f32.mxu0 0.00390625
        %5143 = vmatmul.mubr.f32.gmra.mrb[0].mxu0 0.00390625
        %v5144 = vpop.f32.mrb[0].mxu0
        %v5145 = vadd.f32 0.0, %v5144
        %v5146 = vpop.f32.mrb[0].mxu0
        %5147 = vdwg.mxu0
        %v5148 = vpack.c.bf16 %v5145, %v5145
        %v5149 = vld [vmem:[%s3] sm:$0xf]
        %v5150 = vld [vmem:[%s3 + $0x4] sm:$0xf]
        %v5151 = vld [vmem:[%s3 + $0x8] sm:$0xf]
        %v5152 = vld [vmem:[%s3 + $0xc] sm:$0xf]
        %v5153 = vld [vmem:[%s3 + $0x10] sm:$0xf]
        %v5154 = vld [vmem:[%s3 + $0x14] sm:$0xf]
        %v5155 = vld [vmem:[%s3 + $0x18] sm:$0xf]
        %v5156 = vld [vmem:[%s3 + $0x1c] sm:$0xf]
        %v5157 = vld [vmem:[%s4] sm:$0x1]
        %v5166 = vunpack.c.l.b16 %v5149
        %v5167 = vunpack.c.l.b16 %v5150
        %v5168 = vunpack.c.l.b16 %v5151
        %v5169 = vunpack.c.l.b16 %v5152
        %v5170 = vunpack.c.l.b16 %v5153
        %v5171 = vunpack.c.l.b16 %v5154
        %v5172 = vunpack.c.l.b16 %v5155
        %v5173 = vunpack.c.l.b16 %v5156
        %v5174 = vpack.c.b16 %v5167, %v5166
        %v5175 = vpack.c.b16 %v5169, %v5168
        %v5176 = vpack.c.b16 %v5171, %v5170
        %v5177 = vpack.c.b16 %v5173, %v5172
        %vm5182 = vcmask 523264
        %v5184 = vsel %vm5182, %v5148, 0
        %5186 = vmatprep.subr.bf16.mxu0 0
        %5187 = vmatpush1.bf16.msra.mxu0 %v5174
        %5188 = vmatprep.subr.bf16.mxu0 0
        %5189 = vmatpush1.bf16.msra.mxu0 %v5175
        %5190 = vmatprep.subr.bf16.mxu0 0
        %5191 = vmatpush1.bf16.msra.mxu0 %v5176
        %5192 = vmatprep.subr.bf16.mxu0 0
        %5193 = vmatpush1.bf16.msra.mxu0 %v5177
        %5194 = vmatprep.subr.bf16.mxu0 0
        %5195 = vmatpush1.bf16.msra.mxu0 0
        %5196 = vmatprep.subr.bf16.mxu0 0
        %5197 = vmatpush1.bf16.msra.mxu0 0
        %5198 = vmatprep.subr.bf16.mxu0 0
        %5199 = vmatpush1.bf16.msra.mxu0 0
        %5200 = vmatprep.subr.bf16.mxu0 0
        %5201 = vmatpush1.bf16.msra.mxu0 0
        %5202 = vmatprep.subr.bf16.mxu0 0
        %5203 = vmatpush1.bf16.msra.mxu0 0
        %5204 = vmatprep.subr.bf16.mxu0 0
        %5205 = vmatpush1.bf16.msra.mxu0 0
        %5206 = vmatprep.subr.bf16.mxu0 0
        %5207 = vmatpush1.bf16.msra.mxu0 0
        %5208 = vmatprep.subr.bf16.mxu0 0
        %5209 = vmatpush1.bf16.msra.mxu0 0
        %5210 = vmatprep.subr.bf16.mxu0 0
        %5211 = vmatpush1.bf16.msra.mxu0 0
        %5212 = vmatprep.subr.bf16.mxu0 0
        %5213 = vmatpush1.bf16.msra.mxu0 0
        %5214 = vmatprep.subr.bf16.mxu0 0
        %5215 = vmatpush1.bf16.msra.mxu0 0
        %5216 = vmatprep.subr.bf16.mxu0 0
        %5217 = vmatpush1.bf16.msra.mxu0 0
        %5218 = vmatprep.mubr.bf16.mxu0 0
        %5219 = vmatmul.mubr.bf16.gmra.mrb[0].mxu0 %v5184
        %v5220 = vpop.f32.mrb[0].mxu0
        %v5221 = vadd.f32 %v5157, %v5220
        %v5222 = vpop.f32.mrb[0].mxu0
        %v5223 = vpop.f32.mrb[0].mxu0
        %v5224 = vpop.f32.mrb[0].mxu0
        %5225 = vdwg.mxu0
        %v5226 = vld [vmem:[%s5] sm:$0xff]
        %v5227 = vld [vmem:[%s5 + $0x8] sm:$0xff]
        %v5228 = vld [vmem:[%s5 + $0x10] sm:$0xff]
        %v5229 = vld [vmem:[%s5 + $0x18] sm:$0xff]
        %v5230 = vld [vmem:[%s5 + $0x20] sm:$0xff]
        %v5231 = vld [vmem:[%s5 + $0x28] sm:$0xff]
        %v5232 = vld [vmem:[%s5 + $0x30] sm:$0xff]
        %v5233 = vld [vmem:[%s5 + $0x38] sm:$0xff]
        %v5234 = vld [vmem:[%s5 + $0x40] sm:$0xff]
        %v5235 = vld [vmem:[%s5 + $0x48] sm:$0xff]
        %v5236 = vld [vmem:[%s5 + $0x50] sm:$0xff]
        %v5237 = vld [vmem:[%s5 + $0x58] sm:$0xff]
        %v5238 = vld [vmem:[%s5 + $0x60] sm:$0xff]
        %v5239 = vld [vmem:[%s5 + $0x68] sm:$0xff]
        %v5240 = vld [vmem:[%s5 + $0x70] sm:$0xff]
        %v5241 = vld [vmem:[%s5 + $0x78] sm:$0xff]
        %v5242 = vld [vmem:[%s6] sm:$0xf]
        %v5259 = vunpack.c.l.b16 %v5226
        %v5260 = vunpack.c.h.b16 %v5226
        %v5261 = vunpack.c.l.b16 %v5227
        %v5262 = vunpack.c.h.b16 %v5227
        %v5263 = vunpack.c.l.b16 %v5228
        %v5264 = vunpack.c.h.b16 %v5228
        %v5265 = vunpack.c.l.b16 %v5229
        %v5266 = vunpack.c.h.b16 %v5229
        %v5267 = vunpack.c.l.b16 %v5230
        %v5268 = vunpack.c.h.b16 %v5230
        %v5269 = vunpack.c.l.b16 %v5231
        %v5270 = vunpack.c.h.b16 %v5231
        %v5271 = vunpack.c.l.b16 %v5232
        %v5272 = vunpack.c.h.b16 %v5232
        %v5273 = vunpack.c.l.b16 %v5233
        %v5274 = vunpack.c.h.b16 %v5233
        %v5275 = vunpack.c.l.b16 %v5234
        %v5276 = vunpack.c.h.b16 %v5234
        %v5277 = vunpack.c.l.b16 %v5235
        %v5278 = vunpack.c.h.b16 %v5235
        %v5279 = vunpack.c.l.b16 %v5236
        %v5280 = vunpack.c.h.b16 %v5236
        %v5281 = vunpack.c.l.b16 %v5237
        %v5282 = vunpack.c.h.b16 %v5237
        %v5283 = vunpack.c.l.b16 %v5238
        %v5284 = vunpack.c.h.b16 %v5238
        %v5285 = vunpack.c.l.b16 %v5239
        %v5286 = vunpack.c.h.b16 %v5239
        %v5287 = vunpack.c.l.b16 %v5240
        %v5288 = vunpack.c.h.b16 %v5240
        %v5289 = vunpack.c.l.b16 %v5241
        %v5290 = vunpack.c.h.b16 %v5241
        %v5291 = vpack.c.b16 %v5263, %v5259
        %v5292 = vpack.c.b16 %v5264, %v5260
        %v5293 = vpack.c.b16 %v5265, %v5261
        %v5294 = vpack.c.b16 %v5266, %v5262
        %v5295 = vpack.c.b16 %v5271, %v5267
        %v5296 = vpack.c.b16 %v5272, %v5268
        %v5297 = vpack.c.b16 %v5273, %v5269
        %v5298 = vpack.c.b16 %v5274, %v5270
        %v5299 = vpack.c.b16 %v5279, %v5275
        %v5300 = vpack.c.b16 %v5280, %v5276
        %v5301 = vpack.c.b16 %v5281, %v5277
        %v5302 = vpack.c.b16 %v5282, %v5278
        %v5303 = vpack.c.b16 %v5287, %v5283
        %v5304 = vpack.c.b16 %v5288, %v5284
        %v5305 = vpack.c.b16 %v5289, %v5285
        %v5306 = vpack.c.b16 %v5290, %v5286
        %v5324 = vlaneseq
        %v5325 = vshrl.u32 %v5324, 7
        %v5326 = vsub.s32 0, %v5325
        %v5327 = vrot.slane %v5242, %v5326
        %v5328 = vlaneseq
        %v5329 = vshrl.u32 %v5328, 7
        %v5330 = vsub.s32 1, %v5329
        %v5331 = vrot.slane %v5242, %v5330
        %v5332 = vlaneseq
        %v5333 = vshrl.u32 %v5332, 7
        %v5334 = vsub.s32 2, %v5333
        %v5335 = vrot.slane %v5242, %v5334
        %v5336 = vlaneseq
        %v5337 = vshrl.u32 %v5336, 7
        %v5338 = vsub.s32 3, %v5337
        %v5339 = vrot.slane %v5242, %v5338
        %5344 = vmatprep.subr.bf16.mxu0 %v5292
        %5345 = vmatpush1.bf16.msra.mxu0 %v5291
        %5346 = vmatprep.subr.bf16.mxu0 %v5296
        %5347 = vmatpush1.bf16.msra.mxu0 %v5295
        %5348 = vmatprep.subr.bf16.mxu0 %v5300
        %5349 = vmatpush1.bf16.msra.mxu0 %v5299
        %5350 = vmatprep.subr.bf16.mxu0 %v5304
        %5351 = vmatpush1.bf16.msra.mxu0 %v5303
        %5352 = vmatprep.subr.bf16.mxu0 0
        %5353 = vmatpush1.bf16.msra.mxu0 0
        %5354 = vmatprep.subr.bf16.mxu0 0
        %5355 = vmatpush1.bf16.msra.mxu0 0
        %5356 = vmatprep.subr.bf16.mxu0 0
        %5357 = vmatpush1.bf16.msra.mxu0 0
        %5358 = vmatprep.subr.bf16.mxu0 0
        %5359 = vmatpush1.bf16.msra.mxu0 0
        %5360 = vmatprep.subr.bf16.mxu0 0
        %5361 = vmatpush1.bf16.msra.mxu0 0
        %5362 = vmatprep.subr.bf16.mxu0 0
        %5363 = vmatpush1.bf16.msra.mxu0 0
        %5364 = vmatprep.subr.bf16.mxu0 0
        %5365 = vmatpush1.bf16.msra.mxu0 0
        %5366 = vmatprep.subr.bf16.mxu0 0
        %5367 = vmatpush1.bf16.msra.mxu0 0
        %5368 = vmatprep.subr.bf16.mxu0 0
        %5369 = vmatpush1.bf16.msra.mxu0 0
        %5370 = vmatprep.subr.bf16.mxu0 0
        %5371 = vmatpush1.bf16.msra.mxu0 0
        %5372 = vmatprep.subr.bf16.mxu0 0
        %5373 = vmatpush1.bf16.msra.mxu0 0
        %5374 = vmatprep.subr.bf16.mxu0 0
        %5375 = vmatpush1.bf16.msra.mxu0 0
        %5376 = vmatprep.mubr.bf16.mxu0 0
        %5377 = vmatmul.mubr.bf16.gmra.mrb[0].mxu0 %v5184
        %v5378 = vpop.f32.mrb[0].mxu0
        %v5379 = vadd.f32 %v5327, %v5378
        %v5380 = vpop.f32.mrb[0].mxu0
        %v5381 = vadd.f32 %v5331, %v5380
        %v5382 = vpop.f32.mrb[0].mxu0
        %v5383 = vpop.f32.mrb[0].mxu0
        %5384 = vdwg.mxu0
        %5385 = vmatprep.subr.bf16.mxu0 %v5294
        %5386 = vmatpush1.bf16.msra.mxu0 %v5293
        %5387 = vmatprep.subr.bf16.mxu0 %v5298
        %5388 = vmatpush1.bf16.msra.mxu0 %v5297
        %5389 = vmatprep.subr.bf16.mxu0 %v5302
        %5390 = vmatpush1.bf16.msra.mxu0 %v5301
        %5391 = vmatprep.subr.bf16.mxu0 %v5306
        %5392 = vmatpush1.bf16.msra.mxu0 %v5305
        %5393 = vmatprep.subr.bf16.mxu0 0
        %5394 = vmatpush1.bf16.msra.mxu0 0
        %5395 = vmatprep.subr.bf16.mxu0 0
        %5396 = vmatpush1.bf16.msra.mxu0 0
        %5397 = vmatprep.subr.bf16.mxu0 0
        %5398 = vmatpush1.bf16.msra.mxu0 0
        %5399 = vmatprep.subr.bf16.mxu0 0
        %5400 = vmatpush1.bf16.msra.mxu0 0
        %5401 = vmatprep.subr.bf16.mxu0 0
        %5402 = vmatpush1.bf16.msra.mxu0 0
        %5403 = vmatprep.subr.bf16.mxu0 0
        %5404 = vmatpush1.bf16.msra.mxu0 0
        %5405 = vmatprep.subr.bf16.mxu0 0
        %5406 = vmatpush1.bf16.msra.mxu0 0
        %5407 = vmatprep.subr.bf16.mxu0 0
        %5408 = vmatpush1.bf16.msra.mxu0 0
        %5409 = vmatprep.subr.bf16.mxu0 0
        %5410 = vmatpush1.bf16.msra.mxu0 0
        %5411 = vmatprep.subr.bf16.mxu0 0
        %5412 = vmatpush1.bf16.msra.mxu0 0
        %5413 = vmatprep.subr.bf16.mxu0 0
        %5414 = vmatpush1.bf16.msra.mxu0 0
        %5415 = vmatprep.subr.bf16.mxu0 0
        %5416 = vmatpush1.bf16.msra.mxu0 0
        %5417 = vmatprep.mubr.bf16.mxu0 0
        %5418 = vmatmul.mubr.bf16.gmra.mrb[0].mxu0 %v5184
        %v5419 = vpop.f32.mrb[0].mxu0
        %v5420 = vadd.f32 %v5335, %v5419
        %v5421 = vpop.f32.mrb[0].mxu0
        %v5422 = vadd.f32 %v5339, %v5421
        %v5423 = vpop.f32.mrb[0].mxu0
        %v5424 = vpop.f32.mrb[0].mxu0
        %5425 = vdwg.mxu0
        %v5426 = vmax.f32 %v5379, 0.0
        %v5427 = vmax.f32 %v5381, 0.0
        %v5428 = vmax.f32 %v5420, 0.0
        %v5429 = vmax.f32 %v5422, 0.0
        %v5430 = vpack.c.bf16 %v5426, %v5426
        %v5431 = vpack.c.bf16 %v5427, %v5427
        %v5432 = vpack.c.bf16 %v5428, %v5428
        %v5433 = vpack.c.bf16 %v5429, %v5429
        %v5434 = vld [vmem:[%s7] sm:$0xff]
        %v5435 = vld [vmem:[%s7 + $0x8] sm:$0xff]
        %v5436 = vld [vmem:[%s7 + $0x10] sm:$0xff]
        %v5437 = vld [vmem:[%s7 + $0x18] sm:$0xff]
        %v5438 = vld [vmem:[%s7 + $0x20] sm:$0xff]
        %v5439 = vld [vmem:[%s7 + $0x28] sm:$0xff]
        %v5440 = vld [vmem:[%s7 + $0x30] sm:$0xff]
        %v5441 = vld [vmem:[%s7 + $0x38] sm:$0xff]
        %v5442 = vld [vmem:[%s7 + $0x40] sm:$0xff]
        %v5443 = vld [vmem:[%s7 + $0x48] sm:$0xff]
        %v5444 = vld [vmem:[%s7 + $0x50] sm:$0xff]
        %v5445 = vld [vmem:[%s7 + $0x58] sm:$0xff]
        %v5446 = vld [vmem:[%s7 + $0x60] sm:$0xff]
        %v5447 = vld [vmem:[%s7 + $0x68] sm:$0xff]
        %v5448 = vld [vmem:[%s7 + $0x70] sm:$0xff]
        %v5449 = vld [vmem:[%s7 + $0x78] sm:$0xff]
        %v5450 = vld [vmem:[%s7 + $0x80] sm:$0xff]
        %v5451 = vld [vmem:[%s7 + $0x88] sm:$0xff]
        %v5452 = vld [vmem:[%s7 + $0x90] sm:$0xff]
        %v5453 = vld [vmem:[%s7 + $0x98] sm:$0xff]
        %v5454 = vld [vmem:[%s7 + $0xa0] sm:$0xff]
        %v5455 = vld [vmem:[%s7 + $0xa8] sm:$0xff]
        %v5456 = vld [vmem:[%s7 + $0xb0] sm:$0xff]
        %v5457 = vld [vmem:[%s7 + $0xb8] sm:$0xff]
        %v5458 = vld [vmem:[%s7 + $0xc0] sm:$0xff]
        %v5459 = vld [vmem:[%s7 + $0xc8] sm:$0xff]
        %v5460 = vld [vmem:[%s7 + $0xd0] sm:$0xff]
        %v5461 = vld [vmem:[%s7 + $0xd8] sm:$0xff]
        %v5462 = vld [vmem:[%s7 + $0xe0] sm:$0xff]
        %v5463 = vld [vmem:[%s7 + $0xe8] sm:$0xff]
        %v5464 = vld [vmem:[%s7 + $0xf0] sm:$0xff]
        %v5465 = vld [vmem:[%s7 + $0xf8] sm:$0xff]
        %v5466 = vld [vmem:[%s7 + $0x100] sm:$0xff]
        %v5467 = vld [vmem:[%s7 + $0x108] sm:$0xff]
        %v5468 = vld [vmem:[%s7 + $0x110] sm:$0xff]
        %v5469 = vld [vmem:[%s7 + $0x118] sm:$0xff]
        %v5470 = vld [vmem:[%s7 + $0x120] sm:$0xff]
        %v5471 = vld [vmem:[%s7 + $0x128] sm:$0xff]
        %v5472 = vld [vmem:[%s7 + $0x130] sm:$0xff]
        %v5473 = vld [vmem:[%s7 + $0x138] sm:$0xff]
        %v5474 = vld [vmem:[%s7 + $0x140] sm:$0xff]
        %v5475 = vld [vmem:[%s7 + $0x148] sm:$0xff]
        %v5476 = vld [vmem:[%s7 + $0x150] sm:$0xff]
        %v5477 = vld [vmem:[%s7 + $0x158] sm:$0xff]
        %v5478 = vld [vmem:[%s7 + $0x160] sm:$0xff]
        %v5479 = vld [vmem:[%s7 + $0x168] sm:$0xff]
        %v5480 = vld [vmem:[%s7 + $0x170] sm:$0xff]
        %v5481 = vld [vmem:[%s7 + $0x178] sm:$0xff]
        %v5482 = vld [vmem:[%s7 + $0x180] sm:$0xff]
        %v5483 = vld [vmem:[%s7 + $0x188] sm:$0xff]
        %v5484 = vld [vmem:[%s7 + $0x190] sm:$0xff]
        %v5485 = vld [vmem:[%s7 + $0x198] sm:$0xff]
        %v5486 = vld [vmem:[%s7 + $0x1a0] sm:$0xff]
        %v5487 = vld [vmem:[%s7 + $0x1a8] sm:$0xff]
        %v5488 = vld [vmem:[%s7 + $0x1b0] sm:$0xff]
        %v5489 = vld [vmem:[%s7 + $0x1b8] sm:$0xff]
        %v5490 = vld [vmem:[%s7 + $0x1c0] sm:$0xff]
        %v5491 = vld [vmem:[%s7 + $0x1c8] sm:$0xff]
        %v5492 = vld [vmem:[%s7 + $0x1d0] sm:$0xff]
        %v5493 = vld [vmem:[%s7 + $0x1d8] sm:$0xff]
        %v5494 = vld [vmem:[%s7 + $0x1e0] sm:$0xff]
        %v5495 = vld [vmem:[%s7 + $0x1e8] sm:$0xff]
        %v5496 = vld [vmem:[%s7 + $0x1f0] sm:$0xff]
        %v5497 = vld [vmem:[%s7 + $0x1f8] sm:$0xff]
        %v5498 = vld [vmem:[%s8] sm:$0x3]
        %v5563 = vunpack.c.l.b16 %v5434
        %v5564 = vunpack.c.h.b16 %v5434
        %v5565 = vunpack.c.l.b16 %v5435
        %v5566 = vunpack.c.h.b16 %v5435
        %v5567 = vunpack.c.l.b16 %v5436
        %v5568 = vunpack.c.h.b16 %v5436
        %v5569 = vunpack.c.l.b16 %v5437
        %v5570 = vunpack.c.h.b16 %v5437
        %v5571 = vunpack.c.l.b16 %v5438
        %v5572 = vunpack.c.h.b16 %v5438
        %v5573 = vunpack.c.l.b16 %v5439
        %v5574 = vunpack.c.h.b16 %v5439
        %v5575 = vunpack.c.l.b16 %v5440
        %v5576 = vunpack.c.h.b16 %v5440
        %v5577 = vunpack.c.l.b16 %v5441
        %v5578 = vunpack.c.h.b16 %v5441
        %v5579 = vunpack.c.l.b16 %v5442
        %v5580 = vunpack.c.h.b16 %v5442
        %v5581 = vunpack.c.l.b16 %v5443
        %v5582 = vunpack.c.h.b16 %v5443
        %v5583 = vunpack.c.l.b16 %v5444
        %v5584 = vunpack.c.h.b16 %v5444
        %v5585 = vunpack.c.l.b16 %v5445
        %v5586 = vunpack.c.h.b16 %v5445
        %v5587 = vunpack.c.l.b16 %v5446
        %v5588 = vunpack.c.h.b16 %v5446
        %v5589 = vunpack.c.l.b16 %v5447
        %v5590 = vunpack.c.h.b16 %v5447
        %v5591 = vunpack.c.l.b16 %v5448
        %v5592 = vunpack.c.h.b16 %v5448
        %v5593 = vunpack.c.l.b16 %v5449
        %v5594 = vunpack.c.h.b16 %v5449
        %v5595 = vunpack.c.l.b16 %v5450
        %v5596 = vunpack.c.h.b16 %v5450
        %v5597 = vunpack.c.l.b16 %v5451
        %v5598 = vunpack.c.h.b16 %v5451
        %v5599 = vunpack.c.l.b16 %v5452
        %v5600 = vunpack.c.h.b16 %v5452
        %v5601 = vunpack.c.l.b16 %v5453
        %v5602 = vunpack.c.h.b16 %v5453
        %v5603 = vunpack.c.l.b16 %v5454
        %v5604 = vunpack.c.h.b16 %v5454
        %v5605 = vunpack.c.l.b16 %v5455
        %v5606 = vunpack.c.h.b16 %v5455
        %v5607 = vunpack.c.l.b16 %v5456
        %v5608 = vunpack.c.h.b16 %v5456
        %v5609 = vunpack.c.l.b16 %v5457
        %v5610 = vunpack.c.h.b16 %v5457
        %v5611 = vunpack.c.l.b16 %v5458
        %v5612 = vunpack.c.h.b16 %v5458
        %v5613 = vunpack.c.l.b16 %v5459
        %v5614 = vunpack.c.h.b16 %v5459
        %v5615 = vunpack.c.l.b16 %v5460
        %v5616 = vunpack.c.h.b16 %v5460
        %v5617 = vunpack.c.l.b16 %v5461
        %v5618 = vunpack.c.h.b16 %v5461
        %v5619 = vunpack.c.l.b16 %v5462
        %v5620 = vunpack.c.h.b16 %v5462
        %v5621 = vunpack.c.l.b16 %v5463
        %v5622 = vunpack.c.h.b16 %v5463
        %v5623 = vunpack.c.l.b16 %v5464
        %v5624 = vunpack.c.h.b16 %v5464
        %v5625 = vunpack.c.l.b16 %v5465
        %v5626 = vunpack.c.h.b16 %v5465
        %v5627 = vunpack.c.l.b16 %v5466
        %v5628 = vunpack.c.h.b16 %v5466
        %v5629 = vunpack.c.l.b16 %v5467
        %v5630 = vunpack.c.h.b16 %v5467
        %v5631 = vunpack.c.l.b16 %v5468
        %v5632 = vunpack.c.h.b16 %v5468
        %v5633 = vunpack.c.l.b16 %v5469
        %v5634 = vunpack.c.h.b16 %v5469
        %v5635 = vunpack.c.l.b16 %v5470
        %v5636 = vunpack.c.h.b16 %v5470
        %v5637 = vunpack.c.l.b16 %v5471
        %v5638 = vunpack.c.h.b16 %v5471
        %v5639 = vunpack.c.l.b16 %v5472
        %v5640 = vunpack.c.h.b16 %v5472
        %v5641 = vunpack.c.l.b16 %v5473
        %v5642 = vunpack.c.h.b16 %v5473
        %v5643 = vunpack.c.l.b16 %v5474
        %v5644 = vunpack.c.h.b16 %v5474
        %v5645 = vunpack.c.l.b16 %v5475
        %v5646 = vunpack.c.h.b16 %v5475
        %v5647 = vunpack.c.l.b16 %v5476
        %v5648 = vunpack.c.h.b16 %v5476
        %v5649 = vunpack.c.l.b16 %v5477
        %v5650 = vunpack.c.h.b16 %v5477
        %v5651 = vunpack.c.l.b16 %v5478
        %v5652 = vunpack.c.h.b16 %v5478
        %v5653 = vunpack.c.l.b16 %v5479
        %v5654 = vunpack.c.h.b16 %v5479
        %v5655 = vunpack.c.l.b16 %v5480
        %v5656 = vunpack.c.h.b16 %v5480
        %v5657 = vunpack.c.l.b16 %v5481
        %v5658 = vunpack.c.h.b16 %v5481
        %v5659 = vunpack.c.l.b16 %v5482
        %v5660 = vunpack.c.h.b16 %v5482
        %v5661 = vunpack.c.l.b16 %v5483
        %v5662 = vunpack.c.h.b16 %v5483
        %v5663 = vunpack.c.l.b16 %v5484
        %v5664 = vunpack.c.h.b16 %v5484
        %v5665 = vunpack.c.l.b16 %v5485
        %v5666 = vunpack.c.h.b16 %v5485
        %v5667 = vunpack.c.l.b16 %v5486
        %v5668 = vunpack.c.h.b16 %v5486
        %v5669 = vunpack.c.l.b16 %v5487
        %v5670 = vunpack.c.h.b16 %v5487
        %v5671 = vunpack.c.l.b16 %v5488
        %v5672 = vunpack.c.h.b16 %v5488
        %v5673 = vunpack.c.l.b16 %v5489
        %v5674 = vunpack.c.h.b16 %v5489
        %v5675 = vunpack.c.l.b16 %v5490
        %v5676 = vunpack.c.h.b16 %v5490
        %v5677 = vunpack.c.l.b16 %v5491
        %v5678 = vunpack.c.h.b16 %v5491
        %v5679 = vunpack.c.l.b16 %v5492
        %v5680 = vunpack.c.h.b16 %v5492
        %v5681 = vunpack.c.l.b16 %v5493
        %v5682 = vunpack.c.h.b16 %v5493
        %v5683 = vunpack.c.l.b16 %v5494
        %v5684 = vunpack.c.h.b16 %v5494
        %v5685 = vunpack.c.l.b16 %v5495
        %v5686 = vunpack.c.h.b16 %v5495
        %v5687 = vunpack.c.l.b16 %v5496
        %v5688 = vunpack.c.h.b16 %v5496
        %v5689 = vunpack.c.l.b16 %v5497
        %v5690 = vunpack.c.h.b16 %v5497
        %v5691 = vpack.c.b16 %v5565, %v5563
        %v5692 = vpack.c.b16 %v5566, %v5564
        %v5693 = vpack.c.b16 %v5569, %v5567
        %v5694 = vpack.c.b16 %v5570, %v5568
        %v5695 = vpack.c.b16 %v5573, %v5571
        %v5696 = vpack.c.b16 %v5574, %v5572
        %v5697 = vpack.c.b16 %v5577, %v5575
        %v5698 = vpack.c.b16 %v5578, %v5576
        %v5699 = vpack.c.b16 %v5581, %v5579
        %v5700 = vpack.c.b16 %v5582, %v5580
        %v5701 = vpack.c.b16 %v5585, %v5583
        %v5702 = vpack.c.b16 %v5586, %v5584
        %v5703 = vpack.c.b16 %v5589, %v5587
        %v5704 = vpack.c.b16 %v5590, %v5588
        %v5705 = vpack.c.b16 %v5593, %v5591
        %v5706 = vpack.c.b16 %v5594, %v5592
        %v5707 = vpack.c.b16 %v5597, %v5595
        %v5708 = vpack.c.b16 %v5598, %v5596
        %v5709 = vpack.c.b16 %v5601, %v5599
        %v5710 = vpack.c.b16 %v5602, %v5600
        %v5711 = vpack.c.b16 %v5605, %v5603
        %v5712 = vpack.c.b16 %v5606, %v5604
        %v5713 = vpack.c.b16 %v5609, %v5607
        %v5714 = vpack.c.b16 %v5610, %v5608
        %v5715 = vpack.c.b16 %v5613, %v5611
        %v5716 = vpack.c.b16 %v5614, %v5612
        %v5717 = vpack.c.b16 %v5617, %v5615
        %v5718 = vpack.c.b16 %v5618, %v5616
        %v5719 = vpack.c.b16 %v5621, %v5619
        %v5720 = vpack.c.b16 %v5622, %v5620
        %v5721 = vpack.c.b16 %v5625, %v5623
        %v5722 = vpack.c.b16 %v5626, %v5624
        %v5723 = vpack.c.b16 %v5629, %v5627
        %v5724 = vpack.c.b16 %v5630, %v5628
        %v5725 = vpack.c.b16 %v5633, %v5631
        %v5726 = vpack.c.b16 %v5634, %v5632
        %v5727 = vpack.c.b16 %v5637, %v5635
        %v5728 = vpack.c.b16 %v5638, %v5636
        %v5729 = vpack.c.b16 %v5641, %v5639
        %v5730 = vpack.c.b16 %v5642, %v5640
        %v5731 = vpack.c.b16 %v5645, %v5643
        %v5732 = vpack.c.b16 %v5646, %v5644
        %v5733 = vpack.c.b16 %v5649, %v5647
        %v5734 = vpack.c.b16 %v5650, %v5648
        %v5735 = vpack.c.b16 %v5653, %v5651
        %v5736 = vpack.c.b16 %v5654, %v5652
        %v5737 = vpack.c.b16 %v5657, %v5655
        %v5738 = vpack.c.b16 %v5658, %v5656
        %v5739 = vpack.c.b16 %v5661, %v5659
        %v5740 = vpack.c.b16 %v5662, %v5660
        %v5741 = vpack.c.b16 %v5665, %v5663
        %v5742 = vpack.c.b16 %v5666, %v5664
        %v5743 = vpack.c.b16 %v5669, %v5667
        %v5744 = vpack.c.b16 %v5670, %v5668
        %v5745 = vpack.c.b16 %v5673, %v5671
        %v5746 = vpack.c.b16 %v5674, %v5672
        %v5747 = vpack.c.b16 %v5677, %v5675
        %v5748 = vpack.c.b16 %v5678, %v5676
        %v5749 = vpack.c.b16 %v5681, %v5679
        %v5750 = vpack.c.b16 %v5682, %v5680
        %v5751 = vpack.c.b16 %v5685, %v5683
        %v5752 = vpack.c.b16 %v5686, %v5684
        %v5753 = vpack.c.b16 %v5689, %v5687
        %v5754 = vpack.c.b16 %v5690, %v5688
        %v5820 = vlaneseq
        %v5821 = vshrl.u32 %v5820, 7
        %v5822 = vsub.s32 0, %v5821
        %v5823 = vrot.slane %v5498, %v5822
        %v5824 = vlaneseq
        %v5825 = vshrl.u32 %v5824, 7
        %v5826 = vsub.s32 1, %v5825
        %v5827 = vrot.slane %v5498, %v5826
        %5830 = vmatprep.subr.bf16.mxu0 %v5692
        %5831 = vmatpush1.bf16.msra.mxu0 %v5691
        %5832 = vmatprep.subr.bf16.mxu0 %v5694
        %5833 = vmatpush1.bf16.msra.mxu0 %v5693
        %5834 = vmatprep.subr.bf16.mxu0 %v5696
        %5835 = vmatpush1.bf16.msra.mxu0 %v5695
        %5836 = vmatprep.subr.bf16.mxu0 %v5698
        %5837 = vmatpush1.bf16.msra.mxu0 %v5697
        %5838 = vmatprep.subr.bf16.mxu0 %v5700
        %5839 = vmatpush1.bf16.msra.mxu0 %v5699
        %5840 = vmatprep.subr.bf16.mxu0 %v5702
        %5841 = vmatpush1.bf16.msra.mxu0 %v5701
        %5842 = vmatprep.subr.bf16.mxu0 %v5704
        %5843 = vmatpush1.bf16.msra.mxu0 %v5703
        %5844 = vmatprep.subr.bf16.mxu0 %v5706
        %5845 = vmatpush1.bf16.msra.mxu0 %v5705
        %5846 = vmatprep.subr.bf16.mxu0 %v5708
        %5847 = vmatpush1.bf16.msra.mxu0 %v5707
        %5848 = vmatprep.subr.bf16.mxu0 %v5710
        %5849 = vmatpush1.bf16.msra.mxu0 %v5709
        %5850 = vmatprep.subr.bf16.mxu0 %v5712
        %5851 = vmatpush1.bf16.msra.mxu0 %v5711
        %5852 = vmatprep.subr.bf16.mxu0 %v5714
        %5853 = vmatpush1.bf16.msra.mxu0 %v5713
        %5854 = vmatprep.subr.bf16.mxu0 %v5716
        %5855 = vmatpush1.bf16.msra.mxu0 %v5715
        %5856 = vmatprep.subr.bf16.mxu0 %v5718
        %5857 = vmatpush1.bf16.msra.mxu0 %v5717
        %5858 = vmatprep.subr.bf16.mxu0 %v5720
        %5859 = vmatpush1.bf16.msra.mxu0 %v5719
        %5860 = vmatprep.subr.bf16.mxu0 %v5722
        %5861 = vmatpush1.bf16.msra.mxu0 %v5721
        %5862 = vmatprep.mubr.bf16.mxu0 %v5431
        %5863 = vmatmul.mubr.bf16.gmra.mrb[0].mxu0 %v5430
        %v5864 = vpop.f32.mrb[0].mxu0
        %v5865 = vadd.f32 %v5823, %v5864
        %v5866 = vpop.f32.mrb[0].mxu0
        %v5867 = vadd.f32 %v5827, %v5866
        %v5868 = vpop.f32.mrb[0].mxu0
        %v5869 = vpop.f32.mrb[0].mxu0
        %5870 = vdwg.mxu0
        %5871 = vmatprep.subr.bf16.mxu0 %v5724
        %5872 = vmatpush1.bf16.msra.mxu0 %v5723
        %5873 = vmatprep.subr.bf16.mxu0 %v5726
        %5874 = vmatpush1.bf16.msra.mxu0 %v5725
        %5875 = vmatprep.subr.bf16.mxu0 %v5728
        %5876 = vmatpush1.bf16.msra.mxu0 %v5727
        %5877 = vmatprep.subr.bf16.mxu0 %v5730
        %5878 = vmatpush1.bf16.msra.mxu0 %v5729
        %5879 = vmatprep.subr.bf16.mxu0 %v5732
        %5880 = vmatpush1.bf16.msra.mxu0 %v5731
        %5881 = vmatprep.subr.bf16.mxu0 %v5734
        %5882 = vmatpush1.bf16.msra.mxu0 %v5733
        %5883 = vmatprep.subr.bf16.mxu0 %v5736
        %5884 = vmatpush1.bf16.msra.mxu0 %v5735
        %5885 = vmatprep.subr.bf16.mxu0 %v5738
        %5886 = vmatpush1.bf16.msra.mxu0 %v5737
        %5887 = vmatprep.subr.bf16.mxu0 %v5740
        %5888 = vmatpush1.bf16.msra.mxu0 %v5739
        %5889 = vmatprep.subr.bf16.mxu0 %v5742
        %5890 = vmatpush1.bf16.msra.mxu0 %v5741
        %5891 = vmatprep.subr.bf16.mxu0 %v5744
        %5892 = vmatpush1.bf16.msra.mxu0 %v5743
        %5893 = vmatprep.subr.bf16.mxu0 %v5746
        %5894 = vmatpush1.bf16.msra.mxu0 %v5745
        %5895 = vmatprep.subr.bf16.mxu0 %v5748
        %5896 = vmatpush1.bf16.msra.mxu0 %v5747
        %5897 = vmatprep.subr.bf16.mxu0 %v5750
        %5898 = vmatpush1.bf16.msra.mxu0 %v5749
        %5899 = vmatprep.subr.bf16.mxu0 %v5752
        %5900 = vmatpush1.bf16.msra.mxu0 %v5751
        %5901 = vmatprep.subr.bf16.mxu0 %v5754
        %5902 = vmatpush1.bf16.msra.mxu0 %v5753
        %5903 = vmatprep.mubr.bf16.mxu0 %v5433
        %5904 = vmatmul.mubr.bf16.gmra.mrb[0].mxu0 %v5432
        %v5905 = vpop.f32.mrb[0].mxu0
        %v5906 = vadd.f32 %v5865, %v5905
        %v5907 = vpop.f32.mrb[0].mxu0
        %v5908 = vadd.f32 %v5867, %v5907
        %v5909 = vpop.f32.mrb[0].mxu0
        %v5910 = vpop.f32.mrb[0].mxu0
        %5911 = vdwg.mxu0
        %v5912 = vmax.f32 %v5906, 0.0
        %v5913 = vmax.f32 %v5908, 0.0
        %v5914 = vpack.c.bf16 %v5912, %v5912
        %v5915 = vpack.c.bf16 %v5913, %v5913
        %v5916 = vld [vmem:[%s9] sm:$0xf]
        %v5917 = vld [vmem:[%s9 + $0x4] sm:$0xf]
        %v5918 = vld [vmem:[%s9 + $0x8] sm:$0xf]
        %v5919 = vld [vmem:[%s9 + $0xc] sm:$0xf]
        %v5920 = vld [vmem:[%s9 + $0x10] sm:$0xf]
        %v5921 = vld [vmem:[%s9 + $0x14] sm:$0xf]
        %v5922 = vld [vmem:[%s9 + $0x18] sm:$0xf]
        %v5923 = vld [vmem:[%s9 + $0x1c] sm:$0xf]
        %v5924 = vld [vmem:[%s9 + $0x20] sm:$0xf]
        %v5925 = vld [vmem:[%s9 + $0x24] sm:$0xf]
        %v5926 = vld [vmem:[%s9 + $0x28] sm:$0xf]
        %v5927 = vld [vmem:[%s9 + $0x2c] sm:$0xf]
        %v5928 = vld [vmem:[%s9 + $0x30] sm:$0xf]
        %v5929 = vld [vmem:[%s9 + $0x34] sm:$0xf]
        %v5930 = vld [vmem:[%s9 + $0x38] sm:$0xf]
        %v5931 = vld [vmem:[%s9 + $0x3c] sm:$0xf]
        %v5932 = vld [vmem:[%s9 + $0x40] sm:$0xf]
        %v5933 = vld [vmem:[%s9 + $0x44] sm:$0xf]
        %v5934 = vld [vmem:[%s9 + $0x48] sm:$0xf]
        %v5935 = vld [vmem:[%s9 + $0x4c] sm:$0xf]
        %v5936 = vld [vmem:[%s9 + $0x50] sm:$0xf]
        %v5937 = vld [vmem:[%s9 + $0x54] sm:$0xf]
        %v5938 = vld [vmem:[%s9 + $0x58] sm:$0xf]
        %v5939 = vld [vmem:[%s9 + $0x5c] sm:$0xf]
        %v5940 = vld [vmem:[%s9 + $0x60] sm:$0xf]
        %v5941 = vld [vmem:[%s9 + $0x64] sm:$0xf]
        %v5942 = vld [vmem:[%s9 + $0x68] sm:$0xf]
        %v5943 = vld [vmem:[%s9 + $0x6c] sm:$0xf]
        %v5944 = vld [vmem:[%s9 + $0x70] sm:$0xf]
        %v5945 = vld [vmem:[%s9 + $0x74] sm:$0xf]
        %v5946 = vld [vmem:[%s9 + $0x78] sm:$0xf]
        %v5947 = vld [vmem:[%s9 + $0x7c] sm:$0xf]
        %v5948 = vld [vmem:[%s10] sm:$0x1]
        %v5981 = vunpack.c.l.b16 %v5916
        %v5982 = vunpack.c.l.b16 %v5917
        %v5983 = vunpack.c.l.b16 %v5918
        %v5984 = vunpack.c.l.b16 %v5919
        %v5985 = vunpack.c.l.b16 %v5920
        %v5986 = vunpack.c.l.b16 %v5921
        %v5987 = vunpack.c.l.b16 %v5922
        %v5988 = vunpack.c.l.b16 %v5923
        %v5989 = vunpack.c.l.b16 %v5924
        %v5990 = vunpack.c.l.b16 %v5925
        %v5991 = vunpack.c.l.b16 %v5926
        %v5992 = vunpack.c.l.b16 %v5927
        %v5993 = vunpack.c.l.b16 %v5928
        %v5994 = vunpack.c.l.b16 %v5929
        %v5995 = vunpack.c.l.b16 %v5930
        %v5996 = vunpack.c.l.b16 %v5931
        %v5997 = vunpack.c.l.b16 %v5932
        %v5998 = vunpack.c.l.b16 %v5933
        %v5999 = vunpack.c.l.b16 %v5934
        %v6000 = vunpack.c.l.b16 %v5935
        %v6001 = vunpack.c.l.b16 %v5936
        %v6002 = vunpack.c.l.b16 %v5937
        %v6003 = vunpack.c.l.b16 %v5938
        %v6004 = vunpack.c.l.b16 %v5939
        %v6005 = vunpack.c.l.b16 %v5940
        %v6006 = vunpack.c.l.b16 %v5941
        %v6007 = vunpack.c.l.b16 %v5942
        %v6008 = vunpack.c.l.b16 %v5943
        %v6009 = vunpack.c.l.b16 %v5944
        %v6010 = vunpack.c.l.b16 %v5945
        %v6011 = vunpack.c.l.b16 %v5946
        %v6012 = vunpack.c.l.b16 %v5947
        %v6013 = vpack.c.b16 %v5982, %v5981
        %v6014 = vpack.c.b16 %v5984, %v5983
        %v6015 = vpack.c.b16 %v5986, %v5985
        %v6016 = vpack.c.b16 %v5988, %v5987
        %v6017 = vpack.c.b16 %v5990, %v5989
        %v6018 = vpack.c.b16 %v5992, %v5991
        %v6019 = vpack.c.b16 %v5994, %v5993
        %v6020 = vpack.c.b16 %v5996, %v5995
        %v6021 = vpack.c.b16 %v5998, %v5997
        %v6022 = vpack.c.b16 %v6000, %v5999
        %v6023 = vpack.c.b16 %v6002, %v6001
        %v6024 = vpack.c.b16 %v6004, %v6003
        %v6025 = vpack.c.b16 %v6006, %v6005
        %v6026 = vpack.c.b16 %v6008, %v6007
        %v6027 = vpack.c.b16 %v6010, %v6009
        %v6028 = vpack.c.b16 %v6012, %v6011
        %6045 = vmatprep.subr.bf16.mxu0 0
        %6046 = vmatpush1.bf16.msra.mxu0 %v6013
        %6047 = vmatprep.subr.bf16.mxu0 0
        %6048 = vmatpush1.bf16.msra.mxu0 %v6014
        %6049 = vmatprep.subr.bf16.mxu0 0
        %6050 = vmatpush1.bf16.msra.mxu0 %v6015
        %6051 = vmatprep.subr.bf16.mxu0 0
        %6052 = vmatpush1.bf16.msra.mxu0 %v6016
        %6053 = vmatprep.subr.bf16.mxu0 0
        %6054 = vmatpush1.bf16.msra.mxu0 %v6017
        %6055 = vmatprep.subr.bf16.mxu0 0
        %6056 = vmatpush1.bf16.msra.mxu0 %v6018
        %6057 = vmatprep.subr.bf16.mxu0 0
        %6058 = vmatpush1.bf16.msra.mxu0 %v6019
        %6059 = vmatprep.subr.bf16.mxu0 0
        %6060 = vmatpush1.bf16.msra.mxu0 %v6020
        %6061 = vmatprep.subr.bf16.mxu0 0
        %6062 = vmatpush1.bf16.msra.mxu0 %v6021
        %6063 = vmatprep.subr.bf16.mxu0 0
        %6064 = vmatpush1.bf16.msra.mxu0 %v6022
        %6065 = vmatprep.subr.bf16.mxu0 0
        %6066 = vmatpush1.bf16.msra.mxu0 %v6023
        %6067 = vmatprep.subr.bf16.mxu0 0
        %6068 = vmatpush1.bf16.msra.mxu0 %v6024
        %6069 = vmatprep.subr.bf16.mxu0 0
        %6070 = vmatpush1.bf16.msra.mxu0 %v6025
        %6071 = vmatprep.subr.bf16.mxu0 0
        %6072 = vmatpush1.bf16.msra.mxu0 %v6026
        %6073 = vmatprep.subr.bf16.mxu0 0
        %6074 = vmatpush1.bf16.msra.mxu0 %v6027
        %6075 = vmatprep.subr.bf16.mxu0 0
        %6076 = vmatpush1.bf16.msra.mxu0 %v6028
        %6077 = vmatprep.mubr.bf16.mxu0 %v5915
        %6078 = vmatmul.mubr.bf16.gmra.mrb[0].mxu0 %v5914
        %v6079 = vpop.f32.mrb[0].mxu0
        %v6080 = vadd.f32 %v5948, %v6079
        %v6081 = vpop.f32.mrb[0].mxu0
        %v6082 = vpop.f32.mrb[0].mxu0
        %v6083 = vpop.f32.mrb[0].mxu0
        %6084 = vdwg.mxu0
        %6085 = vst [vmem:[%s409] sm:$0x1] %v5221
        %6086 = vst [vmem:[%s415] sm:$0x1] %v6080
        %s6087 = sand.u32 %s274, 1
        %s6088 = scalar_lea.sflag [#allocation3], %s6087
        %s6089 = sand.u32 %s274, 1
        %s6090 = scalar_lea.vmem [#allocation2], %s6089
        %s6091 = sand.u32 %s300, 1
        %s6092 = scalar_lea.sflag [#allocation5], %s6091
        %s6093 = sand.u32 %s300, 1
        %s6094 = scalar_lea.vmem [#allocation4], %s6093
        // Predicated region
        $region65: #{custom_resnet_forward.1} parent=63 // pred_check
          %p6095 = pneg %p284
        $region66: #{custom_resnet_forward.1} parent=63 // pred_check_branch
          %6097 = sbr.rel (%p6095) target = $region68
        $region67: #{custom_resnet_forward.1} parent=63 // pred_region
          %s6099 = ssub.s32 16, 16
          %6100 = vsyncadd %s6088, %s6099
          %s6101 = smul.addr %s30, 16
          %s6102 = scalar_lea.hbm %s11, %s6101
          %s6104 = sshll.u32 %s6090, 4
          %s6105 = int_to_ptr.vmem [resolvable:$true] %s6104
          %6107 = dma.vmem_to_hbm [thread:$0]  %s6105, 16, %s6102, %s6088
        $region68: #{custom_resnet_forward.1} parent=63 // pred_fallthru
          _
        // Predicated region
        $region69: #{custom_resnet_forward.1} parent=63 // pred_check
          %p6108 = pneg %p310
        $region70: #{custom_resnet_forward.1} parent=63 // pred_check_branch
          %6110 = sbr.rel (%p6108) target = $region72
        $region71: #{custom_resnet_forward.1} parent=63 // pred_region
          %s6112 = ssub.s32 16, 16
          %6113 = vsyncadd %s6092, %s6112
          %s6114 = smul.addr %s30, 16
          %s6115 = scalar_lea.hbm %s12, %s6114
          %s6117 = sshll.u32 %s6094, 4
          %s6118 = int_to_ptr.vmem [resolvable:$true] %s6117
          %6120 = dma.vmem_to_hbm [thread:$0]  %s6118, 16, %s6115, %s6092
        $region72: #{custom_resnet_forward.1} parent=63 // pred_fallthru
          _
      $region64: #{custom_resnet_forward.1} parent=5 // pred_fallthru
        _
      %p6121 = scmp.le.s32.totalorder 2, %s25
      // Predicated region
      $region73: #{custom_resnet_forward.1} parent=5 // pred_check
        %p6122 = pneg %p6121
      $region74: #{custom_resnet_forward.1} parent=5 // pred_check_branch
        %6124 = sbr.rel (%p6122) target = $region76
      $region75: #{custom_resnet_forward.1} parent=5 // pred_region
        %s6125 = ssub.s32 %s25, 2
        // Predicated region
        $region77: #{custom_resnet_forward.1} parent=75 // pred_check
          %p6126 = pneg %p290
        $region78: #{custom_resnet_forward.1} parent=75 // pred_check_branch
          %6128 = sbr.rel (%p6126) target = $region80
        $region79: #{custom_resnet_forward.1} parent=75 // pred_region
          %s6129 = sand.u32 %s275, 1
          %s6130 = scalar_lea.sflag [#allocation3], %s6129
          %s6131 = sand.u32 %s275, 1
          %s6132 = scalar_lea.vmem [#allocation2], %s6131
          %6133 = dma.done %s6130, 16
        $region80: #{custom_resnet_forward.1} parent=75 // pred_fallthru
          _
        // Predicated region
        $region81: #{custom_resnet_forward.1} parent=75 // pred_check
          %p6134 = pneg %p316
        $region82: #{custom_resnet_forward.1} parent=75 // pred_check_branch
          %6136 = sbr.rel (%p6134) target = $region84
        $region83: #{custom_resnet_forward.1} parent=75 // pred_region
          %s6137 = sand.u32 %s301, 1
          %s6138 = scalar_lea.sflag [#allocation5], %s6137
          %s6139 = sand.u32 %s301, 1
          %s6140 = scalar_lea.vmem [#allocation4], %s6139
          %6141 = dma.done %s6138, 16
        $region84: #{custom_resnet_forward.1} parent=75 // pred_fallthru
          _
      $region76: #{custom_resnet_forward.1} parent=5 // pred_fallthru
        _
    $region6: #{custom_resnet_forward.1} parent=1 // loop_footer
      %s29 = sadd.s32 1, %s25
    $region7: #{custom_resnet_forward.1} parent=1 // loop_footer_branch
      %24 = sbr.rel target = $region3
    $region8: #{custom_resnet_forward.1} parent=1 // loop_exit
      _
    %6142 = vsyncpa [#allocation3], 1
    %s6143 = scalar_lea.sflag [#allocation3], 1
    %6144 = vsyncpa %s6143, 1
    %6145 = vsyncpa [#allocation5], 1
    %s6146 = scalar_lea.sflag [#allocation5], 1
    %6147 = vsyncpa %s6146, 1

</llo_original>
